<compile_context>
chip_gen: v7x
topology: tpu7x:2x2x1
jax: 0.10.0
libtpu: 0.0.40
codegen_flags: <defaults>
</compile_context>

<pallas_src>
import functools

import numpy as np
import jax
import jax.numpy as jnp
from jax.experimental import pallas as pl
from jax.experimental.pallas import tpu as pltpu

LRELU_SLOPE = 0.2
BN_EPS = 0.8        # nn.BatchNorm2d(out_filters, 0.8) sets eps=0.8
CP = 128            # lane-dense padded channel width for every block
NUM_TAPS = 9        # 3x3 kernel


def _round_up(x, m):
    return (x + m - 1) // m * m


# ------------------------------ kernel body -------------------------------- #

def _leaky_relu(x):
    return jnp.where(x > 0, x, LRELU_SLOPE * x)


def _batch_norm(x, gamma, beta, n_valid):
    # Training-mode BatchNorm2d: per-channel stats over (N*H*W) rows, biased
    # variance, eps=0.8, affine.  When rows are sublane-padded, only the first
    # n_valid rows contribute to the statistics.
    m = x.shape[0]
    if n_valid == m:
        mu = jnp.mean(x, axis=0, keepdims=True)
        var = jnp.mean(jnp.square(x - mu), axis=0, keepdims=True)
    else:
        mask = (jax.lax.broadcasted_iota(jnp.int32, (m, 1), 0)
                < n_valid).astype(jnp.float32)
        inv_n = 1.0 / float(n_valid)
        mu = jnp.sum(x * mask, axis=0, keepdims=True) * inv_n
        var = jnp.sum(jnp.square(x - mu) * mask, axis=0, keepdims=True) * inv_n
    return (x - mu) * jax.lax.rsqrt(var + BN_EPS) * gamma + beta


def _tree_sum(parts):
    # Pairwise accumulation: breaks the serial 9-deep dependent-add chain.
    while len(parts) > 1:
        nxt = [parts[i] + parts[i + 1] for i in range(0, len(parts) - 1, 2)]
        if len(parts) % 2:
            nxt.append(parts[-1])
        parts = nxt
    return parts[0]


def _featurizer_kernel(cols1_ref, w1_ref, bias_ref,
                       sel2_ref, wp2_ref, sel3_ref, wp3_ref, sel4_ref, wp4_ref,
                       lw_ref, o_ref, wexp_ref, *, m_valid):
    bias = bias_ref[...]                       # (16, 128) f32, one DMA

    def brow(i):
        return bias[i:i + 1, :]

    # Shared expanded-weight scratch: zeroed once.  Each block overwrites a
    # superset of the previous block's rows inside every 128-row tap slot
    # (cin grows 16 -> 32 -> 64), so the zero padding stays valid.
    wexp_ref[...] = jnp.zeros_like(wexp_ref)

    # ---- Block 1 (no BN): host im2col patches, K zero-padded to 128. -------
    a1 = jnp.dot(cols1_ref[...], w1_ref[...],
                 preferred_element_type=jnp.float32) + brow(0)
    x = _leaky_relu(a1).astype(jnp.bfloat16)                  # (m1_p, 128)

    # ---- Blocks 2-4: in-VMEM stride-2 gather + conv + LeakyReLU + BN. -------
    for sel_ref, wp_ref, row0, m_true in (
            (sel2_ref, wp2_ref, 1, m_valid[0]),
            (sel3_ref, wp3_ref, 4, m_valid[1]),
            (sel4_ref, wp4_ref, 7, m_valid[2])):
        cin = wp_ref.shape[0] // NUM_TAPS
        m_p = sel_ref.shape[0] // NUM_TAPS

        # Expand the true-size packed weight into the zero-padded scratch
        # (static sub-slice stores; offsets/counts are multiples of 16).
        for k in range(NUM_TAPS):
            wexp_ref[k * CP:k * CP + cin, :] = wp_ref[k * cin:(k + 1) * cin, :]

        # One fused gather: all nine 0/1 tap selections in a single MXU push
        # (all-zero selection rows encode the conv zero padding).
        gv = jnp.dot(sel_ref[...], x, preferred_element_type=jnp.float32)

        # Nine per-tap weight matmuls on static sublane slices of gv.
        parts = []
        for k in range(NUM_TAPS):
            g_k = gv[k * m_p:(k + 1) * m_p, :].astype(jnp.bfloat16)
            parts.append(jnp.dot(g_k, wexp_ref[k * CP:(k + 1) * CP, :],
                                 preferred_element_type=jnp.float32))
        acc = _tree_sum(parts)

        act = _leaky_relu(acc + brow(row0))
        # Dropout2d(p=0) is the identity.
        x = _batch_norm(act, brow(row0 + 1), brow(row0 + 2),
                        m_true).astype(jnp.bfloat16)

    # ds_size == 1 -> NCHW flatten of (N, 128, 1, 1) is just (N, 128).
    out = jnp.dot(x, lw_ref[...], preferred_element_type=jnp.float32) + brow(10)
    o_ref[...] = out[:o_ref.shape[0], :].astype(o_ref.dtype)


# ------------------------------- host glue --------------------------------- #

def _im2col_first(x_nhwc, k_pad, m_pad):
    """3x3 / stride-2 / pad-1 patches of the raw input, K ordered (tap, cin),
    rows padded to m_pad and K zero-padded to k_pad."""
    n, h, w, c = x_nhwc.shape
    ho, wo = h // 2, w // 2
    xp = jnp.pad(x_nhwc, ((0, 0), (1, 1), (1, 1), (0, 0)))
    taps = [xp[:, i:i + 2 * ho:2, j:j + 2 * wo:2, :]
            for i in range(3) for j in range(3)]
    patches = jnp.stack(taps, axis=3)                 # (N, Ho, Wo, 9, C)
    cols = patches.reshape(n * ho * wo, NUM_TAPS * c)
    cols = jnp.pad(cols, ((0, m_pad - cols.shape[0]),
                          (0, k_pad - cols.shape[1])))
    return cols.astype(jnp.bfloat16)


def _stacked_selection_matrix(n, h_in, w_in, m_in_cols):
    """All nine 0/1 tap-selection matrices stacked along rows:
    (9 * m_out_pad8, m_in_cols) bf16.  Row k*m_out_pad + ro selects the input
    row of tap k for output position ro; all-zero rows encode padding."""
    # TODO(synk): make this batch-independent (per-example (Ho*Wo, H*W) blocks)
    # for large N so VMEM usage stays flat instead of O(N^2).
    ho, wo = h_in // 2, w_in // 2
    m_out = n * ho * wo
    m_out_p = _round_up(m_out, 8)
    sel = np.zeros((NUM_TAPS * m_out_p, m_in_cols), np.float32)
    for b in range(n):
        for oi in range(ho):
            for oj in range(wo):
                ro = (b * ho + oi) * wo + oj
                for di in range(3):
                    for dj in range(3):
                        ii, jj = 2 * oi + di - 1, 2 * oj + dj - 1
                        if 0 <= ii < h_in and 0 <= jj < w_in:
                            ri = (b * h_in + ii) * w_in + jj
                            sel[(di * 3 + dj) * m_out_p + ro, ri] = 1.0
    return jnp.asarray(sel, jnp.bfloat16)


def _packed_conv_weight(w):
    """(cout, cin, 3, 3) -> (9*cin, 128) bf16, tap-major rows, cout padded."""
    cout, cin = w.shape[:2]
    taps = jnp.transpose(w, (2, 3, 1, 0)).reshape(NUM_TAPS * cin, cout)
    return jnp.pad(taps, ((0, 0), (0, CP - cout))).astype(jnp.bfloat16)


def _pack_bias_table(vectors):
    """Pack the 11 per-channel row vectors into one (16, 128) f32 tile."""
    tab = np.zeros((16, CP), np.float32)
    for i, v in enumerate(vectors):
        v = np.asarray(v, np.float32)
        tab[i, :v.shape[0]] = v
    return jnp.asarray(tab)


def init_params(key, channels, img_size):
    """Deterministic synthetic parameters with the module's shapes."""
    specs = [(channels, 16, False), (16, 32, True), (32, 64, True), (64, 128, True)]
    params = []
    for cin, cout, bn in specs:
        key, kw_, kb_ = jax.random.split(key, 3)
        params.append(dict(
            w=jax.random.normal(kw_, (cout, cin, 3, 3), jnp.float32) * 0.05,
            b=jax.random.normal(kb_, (cout,), jnp.float32) * 0.05,
            gamma=jnp.ones((cout,), jnp.float32),    # BN affine init: weight=1
            beta=jnp.zeros((cout,), jnp.float32),    # BN affine init: bias=0
            bn=bn))
    ds = img_size // 2 ** 4
    key, kw_, kb_ = jax.random.split(key, 3)
    lw = jax.random.normal(kw_, (100, 128 * ds * ds), jnp.float32) * 0.05
    lb = jax.random.normal(kb_, (100,), jnp.float32) * 0.05
    return params, (lw, lb)


def prepare_featurizer(params, linear_params, batch, channels, img_size):
    """One-time host prep of all parameter-derived kernel operands."""
    assert img_size // 2 ** 4 == 1, "demo specialised to img_size // 16 == 1"
    # TODO(synk): for ds_size > 1, fold the NCHW-flatten permutation into the
    # linear-weight columns and reshape the last block's output in-kernel.
    p1, p2, p3, p4 = params
    lw, lb = linear_params

    h = w = img_size
    m1 = batch * (h // 2) * (w // 2)
    m1_p = _round_up(m1, 8)
    k1 = NUM_TAPS * channels
    k1_p = _round_up(max(k1, CP), CP)

    w1 = jnp.transpose(p1["w"], (2, 3, 1, 0)).reshape(k1, -1)
    w1 = jnp.pad(w1, ((0, k1_p - k1), (0, CP - w1.shape[1]))).astype(jnp.bfloat16)

    sel2 = _stacked_selection_matrix(batch, h // 2, w // 2, m1_p)
    sel3 = _stacked_selection_matrix(batch, h // 4, w // 4,
                                     sel2.shape[0] // NUM_TAPS)
    sel4 = _stacked_selection_matrix(batch, h // 8, w // 8,
                                     sel3.shape[0] // NUM_TAPS)

    bias_tab = _pack_bias_table([p1["b"],
                                 p2["b"], p2["gamma"], p2["beta"],
                                 p3["b"], p3["gamma"], p3["beta"],
                                 p4["b"], p4["gamma"], p4["beta"],
                                 lb])

    lw_mat = jnp.pad(jnp.transpose(lw),
                     ((0, 0), (0, CP - lw.shape[0]))).astype(jnp.bfloat16)

    return dict(w1=w1, bias_tab=bias_tab,
                sel2=sel2, wp2=_packed_conv_weight(p2["w"]),
                sel3=sel3, wp3=_packed_conv_weight(p3["w"]),
                sel4=sel4, wp4=_packed_conv_weight(p4["w"]),
                lw_mat=lw_mat)


@jax.jit
def featurizer_forward(img_nchw, prep):
    n, c, h, w = img_nchw.shape
    ds = h // 2 ** 4
    assert ds == 1, "demo specialised to img_size // 16 == 1"

    # True (unpadded) output-row counts of blocks 2, 3, 4 (for BN statistics).
    m_valid = (n * (h // 4) * (w // 4), n * (h // 8) * (w // 8), n * ds * ds)

    m1_p = _round_up(n * (h // 2) * (w // 2), 8)
    k1_p = prep["w1"].shape[0]
    cols1 = _im2col_first(jnp.transpose(img_nchw, (0, 2, 3, 1)), k1_p, m1_p)

    operands = (cols1, prep["w1"], prep["bias_tab"],
                prep["sel2"], prep["wp2"], prep["sel3"], prep["wp3"],
                prep["sel4"], prep["wp4"], prep["lw_mat"])

    # Cost estimate for the XLA scheduler.
    m4_p = prep["sel4"].shape[0] // NUM_TAPS
    flops = 2 * m1_p * k1_p * CP
    for sel in (prep["sel2"], prep["sel3"], prep["sel4"]):
        m_p = sel.shape[0] // NUM_TAPS
        flops += 2 * sel.shape[0] * sel.shape[1] * CP + NUM_TAPS * 2 * m_p * CP * CP
    flops += 2 * m4_p * CP * CP
    bytes_accessed = sum(int(op.size) * op.dtype.itemsize for op in operands) \
        + m_valid[2] * CP * 4

    kernel = functools.partial(_featurizer_kernel, m_valid=m_valid)
    out = pl.pallas_call(
        kernel,
        out_shape=jax.ShapeDtypeStruct((m_valid[2], CP), jnp.float32),
        in_specs=[pl.BlockSpec(memory_space=pltpu.MemorySpace.VMEM)] * len(operands),
        out_specs=pl.BlockSpec(memory_space=pltpu.MemorySpace.VMEM),
        scratch_shapes=[pltpu.VMEM((NUM_TAPS * CP, CP), jnp.bfloat16)],
        compiler_params=pltpu.CompilerParams(vmem_limit_bytes=4 * 1024 * 1024),
        cost_estimate=pl.CostEstimate(flops=int(flops), transcendentals=3 * CP,
                                      bytes_accessed=int(bytes_accessed)),
    )(*operands)
    return out[:, :100]


if __name__ == "__main__":
    batch, channels, img_size = 2, 4, 16   # ds_size = 16 // 2**4 = 1
    key = jax.random.PRNGKey(0)
    key, k_img, k_par = jax.random.split(key, 3)
    img = jax.random.normal(k_img, (batch, channels, img_size, img_size),
                            jnp.float32)

    params, linear_params = init_params(k_par, channels, img_size)
    prep = prepare_featurizer(params, linear_params, batch, channels, img_size)

    feature = featurizer_forward(img, prep)
    feature = jax.block_until_ready(feature)

    assert feature.shape == (batch, 100), feature.shape
    assert bool(jnp.all(jnp.isfinite(feature)))
    print("KERNEL_OK")
</pallas_src>

<mosaic_0001>
module attributes {stable_mosaic.version = 11 : i64} {
  func.func @_featurizer_kernel(%arg0: memref<128x128xbf16, #tpu.memory_space<vmem>>, %arg1: memref<128x128xbf16, #tpu.memory_space<vmem>>, %arg2: memref<16x128xf32, #tpu.memory_space<vmem>>, %arg3: memref<288x128xbf16, #tpu.memory_space<vmem>>, %arg4: memref<144x128xbf16, #tpu.memory_space<vmem>>, %arg5: memref<72x32xbf16, #tpu.memory_space<vmem>>, %arg6: memref<288x128xbf16, #tpu.memory_space<vmem>>, %arg7: memref<72x8xbf16, #tpu.memory_space<vmem>>, %arg8: memref<576x128xbf16, #tpu.memory_space<vmem>>, %arg9: memref<128x128xbf16, #tpu.memory_space<vmem>>, %arg10: memref<2x128xf32, #tpu.memory_space<vmem>>, %arg11: memref<1152x128xbf16, #tpu.memory_space<vmem>>) attributes {dimension_semantics = [], scalar_prefetch = 0 : i64, scratch_operands = 1 : i64, tpu.core_type = #tpu.core_type<tc>} {
    %c0 = arith.constant 0 : index
    %c0_0 = arith.constant 0 : index
    %0 = vector.load %arg2[%c0, %c0_0] : memref<16x128xf32, #tpu.memory_space<vmem>>, vector<16x128xf32>
    %cst = arith.constant 0.000000e+00 : bf16
    %1 = vector.broadcast %cst : bf16 to vector<1152x128xbf16>
    %c0_1 = arith.constant 0 : index
    %c0_2 = arith.constant 0 : index
    %2 = vector.load %arg11[%c0_1, %c0_2] : memref<1152x128xbf16, #tpu.memory_space<vmem>>, vector<1152x128xbf16>
    tpu.vector_store %arg11[%c0_1, %c0_2], %1 {strides = array<i32>} : memref<1152x128xbf16, #tpu.memory_space<vmem>>, vector<1152x128xbf16>,
    %c0_3 = arith.constant 0 : index
    %c0_4 = arith.constant 0 : index
    %3 = vector.load %arg0[%c0_3, %c0_4] : memref<128x128xbf16, #tpu.memory_space<vmem>>, vector<128x128xbf16>
    %c0_5 = arith.constant 0 : index
    %c0_6 = arith.constant 0 : index
    %4 = vector.load %arg1[%c0_5, %c0_6] : memref<128x128xbf16, #tpu.memory_space<vmem>>, vector<128x128xbf16>
    %cst_7 = arith.constant dense<0.000000e+00> : vector<128x128xf32>
    %5 = tpu.matmul %3, %4, %cst_7 {dimension_numbers = #tpu.dot_dimension_numbers<[1], [0], [0], [1], [0, 0, 1, 1], [], []>} : vector<128x128xbf16>, vector<128x128xbf16>, vector<128x128xf32> -> vector<128x128xf32>
    %6 = vector.extract_strided_slice %0 {offsets = [0, 0], sizes = [1, 128], strides = [1, 1]} : vector<16x128xf32> to vector<1x128xf32>
    %7 = vector.broadcast %6 : vector<1x128xf32> to vector<128x128xf32>
    %8 = arith.addf %5, %7 : vector<128x128xf32>
    %cst_8 = arith.constant 0.000000e+00 : f32
    %9 = vector.broadcast %cst_8 : f32 to vector<128x128xf32>
    %10 = arith.cmpf ogt, %8, %9 : vector<128x128xf32>
    %cst_9 = arith.constant 2.000000e-01 : f32
    %11 = vector.broadcast %cst_9 : f32 to vector<128x128xf32>
    %12 = arith.mulf %11, %8 : vector<128x128xf32>
    %13 = arith.select %10, %8, %12 : vector<128x128xi1>, vector<128x128xf32>
    %14 = arith.truncf %13 : vector<128x128xf32> to vector<128x128xbf16>
    %c0_10 = arith.constant 0 : index
    %c0_11 = arith.constant 0 : index
    %15 = vector.load %arg4[%c0_10, %c0_11] : memref<144x128xbf16, #tpu.memory_space<vmem>>, vector<16x128xbf16>
    %c0_12 = arith.constant 0 : index
    %c0_13 = arith.constant 0 : index
    %16 = vector.load %arg11[%c0_12, %c0_13] : memref<1152x128xbf16, #tpu.memory_space<vmem>>, vector<16x128xbf16>
    tpu.vector_store %arg11[%c0_12, %c0_13], %15 {strides = array<i32>} : memref<1152x128xbf16, #tpu.memory_space<vmem>>, vector<16x128xbf16>,
    %c16 = arith.constant 16 : index
    %c0_14 = arith.constant 0 : index
    %17 = vector.load %arg4[%c16, %c0_14] : memref<144x128xbf16, #tpu.memory_space<vmem>>, vector<16x128xbf16>
    %c128 = arith.constant 128 : index
    %c0_15 = arith.constant 0 : index
    %18 = vector.load %arg11[%c128, %c0_15] : memref<1152x128xbf16, #tpu.memory_space<vmem>>, vector<16x128xbf16>
    tpu.vector_store %arg11[%c128, %c0_15], %17 {strides = array<i32>} : memref<1152x128xbf16, #tpu.memory_space<vmem>>, vector<16x128xbf16>,
    %c32 = arith.constant 32 : index
    %c0_16 = arith.constant 0 : index
    %19 = vector.load %arg4[%c32, %c0_16] : memref<144x128xbf16, #tpu.memory_space<vmem>>, vector<16x128xbf16>
    %c256 = arith.constant 256 : index
    %c0_17 = arith.constant 0 : index
    %20 = vector.load %arg11[%c256, %c0_17] : memref<1152x128xbf16, #tpu.memory_space<vmem>>, vector<16x128xbf16>
    tpu.vector_store %arg11[%c256, %c0_17], %19 {strides = array<i32>} : memref<1152x128xbf16, #tpu.memory_space<vmem>>, vector<16x128xbf16>,
    %c48 = arith.constant 48 : index
    %c0_18 = arith.constant 0 : index
    %21 = vector.load %arg4[%c48, %c0_18] : memref<144x128xbf16, #tpu.memory_space<vmem>>, vector<16x128xbf16>
    %c384 = arith.constant 384 : index
    %c0_19 = arith.constant 0 : index
    %22 = vector.load %arg11[%c384, %c0_19] : memref<1152x128xbf16, #tpu.memory_space<vmem>>, vector<16x128xbf16>
    tpu.vector_store %arg11[%c384, %c0_19], %21 {strides = array<i32>} : memref<1152x128xbf16, #tpu.memory_space<vmem>>, vector<16x128xbf16>,
    %c64 = arith.constant 64 : index
    %c0_20 = arith.constant 0 : index
    %23 = vector.load %arg4[%c64, %c0_20] : memref<144x128xbf16, #tpu.memory_space<vmem>>, vector<16x128xbf16>
    %c512 = arith.constant 512 : index
    %c0_21 = arith.constant 0 : index
    %24 = vector.load %arg11[%c512, %c0_21] : memref<1152x128xbf16, #tpu.memory_space<vmem>>, vector<16x128xbf16>
    tpu.vector_store %arg11[%c512, %c0_21], %23 {strides = array<i32>} : memref<1152x128xbf16, #tpu.memory_space<vmem>>, vector<16x128xbf16>,
    %c80 = arith.constant 80 : index
    %c0_22 = arith.constant 0 : index
    %25 = vector.load %arg4[%c80, %c0_22] : memref<144x128xbf16, #tpu.memory_space<vmem>>, vector<16x128xbf16>
    %c640 = arith.constant 640 : index
    %c0_23 = arith.constant 0 : index
    %26 = vector.load %arg11[%c640, %c0_23] : memref<1152x128xbf16, #tpu.memory_space<vmem>>, vector<16x128xbf16>
    tpu.vector_store %arg11[%c640, %c0_23], %25 {strides = array<i32>} : memref<1152x128xbf16, #tpu.memory_space<vmem>>, vector<16x128xbf16>,
    %c96 = arith.constant 96 : index
    %c0_24 = arith.constant 0 : index
    %27 = vector.load %arg4[%c96, %c0_24] : memref<144x128xbf16, #tpu.memory_space<vmem>>, vector<16x128xbf16>
    %c768 = arith.constant 768 : index
    %c0_25 = arith.constant 0 : index
    %28 = vector.load %arg11[%c768, %c0_25] : memref<1152x128xbf16, #tpu.memory_space<vmem>>, vector<16x128xbf16>
    tpu.vector_store %arg11[%c768, %c0_25], %27 {strides = array<i32>} : memref<1152x128xbf16, #tpu.memory_space<vmem>>, vector<16x128xbf16>,
    %c112 = arith.constant 112 : index
    %c0_26 = arith.constant 0 : index
    %29 = vector.load %arg4[%c112, %c0_26] : memref<144x128xbf16, #tpu.memory_space<vmem>>, vector<16x128xbf16>
    %c896 = arith.constant 896 : index
    %c0_27 = arith.constant 0 : index
    %30 = vector.load %arg11[%c896, %c0_27] : memref<1152x128xbf16, #tpu.memory_space<vmem>>, vector<16x128xbf16>
    tpu.vector_store %arg11[%c896, %c0_27], %29 {strides = array<i32>} : memref<1152x128xbf16, #tpu.memory_space<vmem>>, vector<16x128xbf16>,
    %c128_28 = arith.constant 128 : index
    %c0_29 = arith.constant 0 : index
    %31 = vector.load %arg4[%c128_28, %c0_29] : memref<144x128xbf16, #tpu.memory_space<vmem>>, vector<16x128xbf16>
    %c1024 = arith.constant 1024 : index
    %c0_30 = arith.constant 0 : index
    %32 = vector.load %arg11[%c1024, %c0_30] : memref<1152x128xbf16, #tpu.memory_space<vmem>>, vector<16x128xbf16>
    tpu.vector_store %arg11[%c1024, %c0_30], %31 {strides = array<i32>} : memref<1152x128xbf16, #tpu.memory_space<vmem>>, vector<16x128xbf16>,
    %c0_31 = arith.constant 0 : index
    %c0_32 = arith.constant 0 : index
    %33 = vector.load %arg3[%c0_31, %c0_32] : memref<288x128xbf16, #tpu.memory_space<vmem>>, vector<288x128xbf16>
    %cst_33 = arith.constant dense<0.000000e+00> : vector<288x128xf32>
    %34 = tpu.matmul %33, %14, %cst_33 {dimension_numbers = #tpu.dot_dimension_numbers<[1], [0], [0], [1], [0, 0, 1, 1], [], []>} : vector<288x128xbf16>, vector<128x128xbf16>, vector<288x128xf32> -> vector<288x128xf32>
    %35 = vector.extract_strided_slice %34 {offsets = [0, 0], sizes = [32, 128], strides = [1, 1]} : vector<288x128xf32> to vector<32x128xf32>
    %36 = arith.truncf %35 : vector<32x128xf32> to vector<32x128xbf16>
    %c0_34 = arith.constant 0 : index
    %c0_35 = arith.constant 0 : index
    %37 = vector.load %arg11[%c0_34, %c0_35] : memref<1152x128xbf16, #tpu.memory_space<vmem>>, vector<128x128xbf16>
    %cst_36 = arith.constant dense<0.000000e+00> : vector<32x128xf32>
    %38 = tpu.matmul %36, %37, %cst_36 {dimension_numbers = #tpu.dot_dimension_numbers<[1], [0], [0], [1], [0, 0, 1, 1], [], []>} : vector<32x128xbf16>, vector<128x128xbf16>, vector<32x128xf32> -> vector<32x128xf32>
    %39 = vector.extract_strided_slice %34 {offsets = [32, 0], sizes = [32, 128], strides = [1, 1]} : vector<288x128xf32> to vector<32x128xf32>
    %40 = arith.truncf %39 : vector<32x128xf32> to vector<32x128xbf16>
    %c128_37 = arith.constant 128 : index
    %c0_38 = arith.constant 0 : index
    %41 = vector.load %arg11[%c128_37, %c0_38] : memref<1152x128xbf16, #tpu.memory_space<vmem>>, vector<128x128xbf16>
    %cst_39 = arith.constant dense<0.000000e+00> : vector<32x128xf32>
    %42 = tpu.matmul %40, %41, %cst_39 {dimension_numbers = #tpu.dot_dimension_numbers<[1], [0], [0], [1], [0, 0, 1, 1], [], []>} : vector<32x128xbf16>, vector<128x128xbf16>, vector<32x128xf32> -> vector<32x128xf32>
    %43 = vector.extract_strided_slice %34 {offsets = [64, 0], sizes = [32, 128], strides = [1, 1]} : vector<288x128xf32> to vector<32x128xf32>
    %44 = arith.truncf %43 : vector<32x128xf32> to vector<32x128xbf16>
    %c256_40 = arith.constant 256 : index
    %c0_41 = arith.constant 0 : index
    %45 = vector.load %arg11[%c256_40, %c0_41] : memref<1152x128xbf16, #tpu.memory_space<vmem>>, vector<128x128xbf16>
    %cst_42 = arith.constant dense<0.000000e+00> : vector<32x128xf32>
    %46 = tpu.matmul %44, %45, %cst_42 {dimension_numbers = #tpu.dot_dimension_numbers<[1], [0], [0], [1], [0, 0, 1, 1], [], []>} : vector<32x128xbf16>, vector<128x128xbf16>, vector<32x128xf32> -> vector<32x128xf32>
    %47 = vector.extract_strided_slice %34 {offsets = [96, 0], sizes = [32, 128], strides = [1, 1]} : vector<288x128xf32> to vector<32x128xf32>
    %48 = arith.truncf %47 : vector<32x128xf32> to vector<32x128xbf16>
    %c384_43 = arith.constant 384 : index
    %c0_44 = arith.constant 0 : index
    %49 = vector.load %arg11[%c384_43, %c0_44] : memref<1152x128xbf16, #tpu.memory_space<vmem>>, vector<128x128xbf16>
    %cst_45 = arith.constant dense<0.000000e+00> : vector<32x128xf32>
    %50 = tpu.matmul %48, %49, %cst_45 {dimension_numbers = #tpu.dot_dimension_numbers<[1], [0], [0], [1], [0, 0, 1, 1], [], []>} : vector<32x128xbf16>, vector<128x128xbf16>, vector<32x128xf32> -> vector<32x128xf32>
    %51 = vector.extract_strided_slice %34 {offsets = [128, 0], sizes = [32, 128], strides = [1, 1]} : vector<288x128xf32> to vector<32x128xf32>
    %52 = arith.truncf %51 : vector<32x128xf32> to vector<32x128xbf16>
    %c512_46 = arith.constant 512 : index
    %c0_47 = arith.constant 0 : index
    %53 = vector.load %arg11[%c512_46, %c0_47] : memref<1152x128xbf16, #tpu.memory_space<vmem>>, vector<128x128xbf16>
    %cst_48 = arith.constant dense<0.000000e+00> : vector<32x128xf32>
    %54 = tpu.matmul %52, %53, %cst_48 {dimension_numbers = #tpu.dot_dimension_numbers<[1], [0], [0], [1], [0, 0, 1, 1], [], []>} : vector<32x128xbf16>, vector<128x128xbf16>, vector<32x128xf32> -> vector<32x128xf32>
    %55 = vector.extract_strided_slice %34 {offsets = [160, 0], sizes = [32, 128], strides = [1, 1]} : vector<288x128xf32> to vector<32x128xf32>
    %56 = arith.truncf %55 : vector<32x128xf32> to vector<32x128xbf16>
    %c640_49 = arith.constant 640 : index
    %c0_50 = arith.constant 0 : index
    %57 = vector.load %arg11[%c640_49, %c0_50] : memref<1152x128xbf16, #tpu.memory_space<vmem>>, vector<128x128xbf16>
    %cst_51 = arith.constant dense<0.000000e+00> : vector<32x128xf32>
    %58 = tpu.matmul %56, %57, %cst_51 {dimension_numbers = #tpu.dot_dimension_numbers<[1], [0], [0], [1], [0, 0, 1, 1], [], []>} : vector<32x128xbf16>, vector<128x128xbf16>, vector<32x128xf32> -> vector<32x128xf32>
    %59 = vector.extract_strided_slice %34 {offsets = [192, 0], sizes = [32, 128], strides = [1, 1]} : vector<288x128xf32> to vector<32x128xf32>
    %60 = arith.truncf %59 : vector<32x128xf32> to vector<32x128xbf16>
    %c768_52 = arith.constant 768 : index
    %c0_53 = arith.constant 0 : index
    %61 = vector.load %arg11[%c768_52, %c0_53] : memref<1152x128xbf16, #tpu.memory_space<vmem>>, vector<128x128xbf16>
    %cst_54 = arith.constant dense<0.000000e+00> : vector<32x128xf32>
    %62 = tpu.matmul %60, %61, %cst_54 {dimension_numbers = #tpu.dot_dimension_numbers<[1], [0], [0], [1], [0, 0, 1, 1], [], []>} : vector<32x128xbf16>, vector<128x128xbf16>, vector<32x128xf32> -> vector<32x128xf32>
    %63 = vector.extract_strided_slice %34 {offsets = [224, 0], sizes = [32, 128], strides = [1, 1]} : vector<288x128xf32> to vector<32x128xf32>
    %64 = arith.truncf %63 : vector<32x128xf32> to vector<32x128xbf16>
    %c896_55 = arith.constant 896 : index
    %c0_56 = arith.constant 0 : index
    %65 = vector.load %arg11[%c896_55, %c0_56] : memref<1152x128xbf16, #tpu.memory_space<vmem>>, vector<128x128xbf16>
    %cst_57 = arith.constant dense<0.000000e+00> : vector<32x128xf32>
    %66 = tpu.matmul %64, %65, %cst_57 {dimension_numbers = #tpu.dot_dimension_numbers<[1], [0], [0], [1], [0, 0, 1, 1], [], []>} : vector<32x128xbf16>, vector<128x128xbf16>, vector<32x128xf32> -> vector<32x128xf32>
    %67 = vector.extract_strided_slice %34 {offsets = [256, 0], sizes = [32, 128], strides = [1, 1]} : vector<288x128xf32> to vector<32x128xf32>
    %68 = arith.truncf %67 : vector<32x128xf32> to vector<32x128xbf16>
    %c1024_58 = arith.constant 1024 : index
    %c0_59 = arith.constant 0 : index
    %69 = vector.load %arg11[%c1024_58, %c0_59] : memref<1152x128xbf16, #tpu.memory_space<vmem>>, vector<128x128xbf16>
    %cst_60 = arith.constant dense<0.000000e+00> : vector<32x128xf32>
    %70 = tpu.matmul %68, %69, %cst_60 {dimension_numbers = #tpu.dot_dimension_numbers<[1], [0], [0], [1], [0, 0, 1, 1], [], []>} : vector<32x128xbf16>, vector<128x128xbf16>, vector<32x128xf32> -> vector<32x128xf32>
    %71 = arith.addf %38, %42 : vector<32x128xf32>
    %72 = arith.addf %46, %50 : vector<32x128xf32>
    %73 = arith.addf %54, %58 : vector<32x128xf32>
    %74 = arith.addf %62, %66 : vector<32x128xf32>
    %75 = arith.addf %71, %72 : vector<32x128xf32>
    %76 = arith.addf %73, %74 : vector<32x128xf32>
    %77 = arith.addf %75, %76 : vector<32x128xf32>
    %78 = arith.addf %77, %70 : vector<32x128xf32>
    %79 = vector.extract_strided_slice %0 {offsets = [1, 0], sizes = [1, 128], strides = [1, 1]} : vector<16x128xf32> to vector<1x128xf32>
    %80 = vector.broadcast %79 : vector<1x128xf32> to vector<32x128xf32>
    %81 = arith.addf %78, %80 : vector<32x128xf32>
    %cst_61 = arith.constant 0.000000e+00 : f32
    %82 = vector.broadcast %cst_61 : f32 to vector<32x128xf32>
    %83 = arith.cmpf ogt, %81, %82 : vector<32x128xf32>
    %cst_62 = arith.constant 2.000000e-01 : f32
    %84 = vector.broadcast %cst_62 : f32 to vector<32x128xf32>
    %85 = arith.mulf %84, %81 : vector<32x128xf32>
    %86 = arith.select %83, %81, %85 : vector<32x128xi1>, vector<32x128xf32>
    %87 = vector.extract_strided_slice %0 {offsets = [2, 0], sizes = [1, 128], strides = [1, 1]} : vector<16x128xf32> to vector<1x128xf32>
    %88 = vector.extract_strided_slice %0 {offsets = [3, 0], sizes = [1, 128], strides = [1, 1]} : vector<16x128xf32> to vector<1x128xf32>
    %cst_63 = arith.constant dense<0.000000e+00> : vector<128xf32>
    %89 = vector.multi_reduction <add>, %86, %cst_63 [0] : vector<32x128xf32> to vector<128xf32>
    %90 = vector.shape_cast %89 : vector<128xf32> to vector<1x128xf32>
    %cst_64 = arith.constant 3.200000e+01 : f32
    %91 = vector.broadcast %cst_64 : f32 to vector<1x128xf32>
    %92 = arith.divf %90, %91 : vector<1x128xf32>
    %93 = vector.broadcast %92 : vector<1x128xf32> to vector<32x128xf32>
    %94 = arith.subf %86, %93 : vector<32x128xf32>
    %95 = arith.mulf %94, %94 : vector<32x128xf32>
    %cst_65 = arith.constant dense<0.000000e+00> : vector<128xf32>
    %96 = vector.multi_reduction <add>, %95, %cst_65 [0] : vector<32x128xf32> to vector<128xf32>
    %97 = vector.shape_cast %96 : vector<128xf32> to vector<1x128xf32>
    %cst_66 = arith.constant 3.200000e+01 : f32
    %98 = vector.broadcast %cst_66 : f32 to vector<1x128xf32>
    %99 = arith.divf %97, %98 : vector<1x128xf32>
    %100 = vector.broadcast %92 : vector<1x128xf32> to vector<32x128xf32>
    %101 = arith.subf %86, %100 : vector<32x128xf32>
    %cst_67 = arith.constant 8.000000e-01 : f32
    %102 = vector.broadcast %cst_67 : f32 to vector<1x128xf32>
    %103 = arith.addf %99, %102 : vector<1x128xf32>
    %104 = math.rsqrt %103 : vector<1x128xf32>
    %105 = vector.broadcast %104 : vector<1x128xf32> to vector<32x128xf32>
    %106 = arith.mulf %101, %105 : vector<32x128xf32>
    %107 = vector.broadcast %87 : vector<1x128xf32> to vector<32x128xf32>
    %108 = arith.mulf %106, %107 : vector<32x128xf32>
    %109 = vector.broadcast %88 : vector<1x128xf32> to vector<32x128xf32>
    %110 = arith.addf %108, %109 : vector<32x128xf32>
    %111 = arith.truncf %110 : vector<32x128xf32> to vector<32x128xbf16>
    %c0_68 = arith.constant 0 : index
    %c0_69 = arith.constant 0 : index
    %112 = vector.load %arg6[%c0_68, %c0_69] : memref<288x128xbf16, #tpu.memory_space<vmem>>, vector<32x128xbf16>
    %c0_70 = arith.constant 0 : index
    %c0_71 = arith.constant 0 : index
    %113 = vector.load %arg11[%c0_70, %c0_71] : memref<1152x128xbf16, #tpu.memory_space<vmem>>, vector<32x128xbf16>
    tpu.vector_store %arg11[%c0_70, %c0_71], %112 {strides = array<i32>} : memref<1152x128xbf16, #tpu.memory_space<vmem>>, vector<32x128xbf16>,
    %c32_72 = arith.constant 32 : index
    %c0_73 = arith.constant 0 : index
    %114 = vector.load %arg6[%c32_72, %c0_73] : memref<288x128xbf16, #tpu.memory_space<vmem>>, vector<32x128xbf16>
    %c128_74 = arith.constant 128 : index
    %c0_75 = arith.constant 0 : index
    %115 = vector.load %arg11[%c128_74, %c0_75] : memref<1152x128xbf16, #tpu.memory_space<vmem>>, vector<32x128xbf16>
    tpu.vector_store %arg11[%c128_74, %c0_75], %114 {strides = array<i32>} : memref<1152x128xbf16, #tpu.memory_space<vmem>>, vector<32x128xbf16>,
    %c64_76 = arith.constant 64 : index
    %c0_77 = arith.constant 0 : index
    %116 = vector.load %arg6[%c64_76, %c0_77] : memref<288x128xbf16, #tpu.memory_space<vmem>>, vector<32x128xbf16>
    %c256_78 = arith.constant 256 : index
    %c0_79 = arith.constant 0 : index
    %117 = vector.load %arg11[%c256_78, %c0_79] : memref<1152x128xbf16, #tpu.memory_space<vmem>>, vector<32x128xbf16>
    tpu.vector_store %arg11[%c256_78, %c0_79], %116 {strides = array<i32>} : memref<1152x128xbf16, #tpu.memory_space<vmem>>, vector<32x128xbf16>,
    %c96_80 = arith.constant 96 : index
    %c0_81 = arith.constant 0 : index
    %118 = vector.load %arg6[%c96_80, %c0_81] : memref<288x128xbf16, #tpu.memory_space<vmem>>, vector<32x128xbf16>
    %c384_82 = arith.constant 384 : index
    %c0_83 = arith.constant 0 : index
    %119 = vector.load %arg11[%c384_82, %c0_83] : memref<1152x128xbf16, #tpu.memory_space<vmem>>, vector<32x128xbf16>
    tpu.vector_store %arg11[%c384_82, %c0_83], %118 {strides = array<i32>} : memref<1152x128xbf16, #tpu.memory_space<vmem>>, vector<32x128xbf16>,
    %c128_84 = arith.constant 128 : index
    %c0_85 = arith.constant 0 : index
    %120 = vector.load %arg6[%c128_84, %c0_85] : memref<288x128xbf16, #tpu.memory_space<vmem>>, vector<32x128xbf16>
    %c512_86 = arith.constant 512 : index
    %c0_87 = arith.constant 0 : index
    %121 = vector.load %arg11[%c512_86, %c0_87] : memref<1152x128xbf16, #tpu.memory_space<vmem>>, vector<32x128xbf16>
    tpu.vector_store %arg11[%c512_86, %c0_87], %120 {strides = array<i32>} : memref<1152x128xbf16, #tpu.memory_space<vmem>>, vector<32x128xbf16>,
    %c160 = arith.constant 160 : index
    %c0_88 = arith.constant 0 : index
    %122 = vector.load %arg6[%c160, %c0_88] : memref<288x128xbf16, #tpu.memory_space<vmem>>, vector<32x128xbf16>
    %c640_89 = arith.constant 640 : index
    %c0_90 = arith.constant 0 : index
    %123 = vector.load %arg11[%c640_89, %c0_90] : memref<1152x128xbf16, #tpu.memory_space<vmem>>, vector<32x128xbf16>
    tpu.vector_store %arg11[%c640_89, %c0_90], %122 {strides = array<i32>} : memref<1152x128xbf16, #tpu.memory_space<vmem>>, vector<32x128xbf16>,
    %c192 = arith.constant 192 : index
    %c0_91 = arith.constant 0 : index
    %124 = vector.load %arg6[%c192, %c0_91] : memref<288x128xbf16, #tpu.memory_space<vmem>>, vector<32x128xbf16>
    %c768_92 = arith.constant 768 : index
    %c0_93 = arith.constant 0 : index
    %125 = vector.load %arg11[%c768_92, %c0_93] : memref<1152x128xbf16, #tpu.memory_space<vmem>>, vector<32x128xbf16>
    tpu.vector_store %arg11[%c768_92, %c0_93], %124 {strides = array<i32>} : memref<1152x128xbf16, #tpu.memory_space<vmem>>, vector<32x128xbf16>,
    %c224 = arith.constant 224 : index
    %c0_94 = arith.constant 0 : index
    %126 = vector.load %arg6[%c224, %c0_94] : memref<288x128xbf16, #tpu.memory_space<vmem>>, vector<32x128xbf16>
    %c896_95 = arith.constant 896 : index
    %c0_96 = arith.constant 0 : index
    %127 = vector.load %arg11[%c896_95, %c0_96] : memref<1152x128xbf16, #tpu.memory_space<vmem>>, vector<32x128xbf16>
    tpu.vector_store %arg11[%c896_95, %c0_96], %126 {strides = array<i32>} : memref<1152x128xbf16, #tpu.memory_space<vmem>>, vector<32x128xbf16>,
    %c256_97 = arith.constant 256 : index
    %c0_98 = arith.constant 0 : index
    %128 = vector.load %arg6[%c256_97, %c0_98] : memref<288x128xbf16, #tpu.memory_space<vmem>>, vector<32x128xbf16>
    %c1024_99 = arith.constant 1024 : index
    %c0_100 = arith.constant 0 : index
    %129 = vector.load %arg11[%c1024_99, %c0_100] : memref<1152x128xbf16, #tpu.memory_space<vmem>>, vector<32x128xbf16>
    tpu.vector_store %arg11[%c1024_99, %c0_100], %128 {strides = array<i32>} : memref<1152x128xbf16, #tpu.memory_space<vmem>>, vector<32x128xbf16>,
    %c0_101 = arith.constant 0 : index
    %c0_102 = arith.constant 0 : index
    %130 = vector.load %arg5[%c0_101, %c0_102] : memref<72x32xbf16, #tpu.memory_space<vmem>>, vector<72x32xbf16>
    %cst_103 = arith.constant dense<0.000000e+00> : vector<72x128xf32>
    %131 = tpu.matmul %130, %111, %cst_103 {dimension_numbers = #tpu.dot_dimension_numbers<[1], [0], [0], [1], [0, 0, 1, 1], [], []>} : vector<72x32xbf16>, vector<32x128xbf16>, vector<72x128xf32> -> vector<72x128xf32>
    %132 = vector.extract_strided_slice %131 {offsets = [0, 0], sizes = [8, 128], strides = [1, 1]} : vector<72x128xf32> to vector<8x128xf32>
    %133 = arith.truncf %132 : vector<8x128xf32> to vector<8x128xbf16>
    %c0_104 = arith.constant 0 : index
    %c0_105 = arith.constant 0 : index
    %134 = vector.load %arg11[%c0_104, %c0_105] : memref<1152x128xbf16, #tpu.memory_space<vmem>>, vector<128x128xbf16>
    %cst_106 = arith.constant dense<0.000000e+00> : vector<8x128xf32>
    %135 = tpu.matmul %133, %134, %cst_106 {dimension_numbers = #tpu.dot_dimension_numbers<[1], [0], [0], [1], [0, 0, 1, 1], [], []>} : vector<8x128xbf16>, vector<128x128xbf16>, vector<8x128xf32> -> vector<8x128xf32>
    %136 = vector.extract_strided_slice %131 {offsets = [8, 0], sizes = [8, 128], strides = [1, 1]} : vector<72x128xf32> to vector<8x128xf32>
    %137 = arith.truncf %136 : vector<8x128xf32> to vector<8x128xbf16>
    %c128_107 = arith.constant 128 : index
    %c0_108 = arith.constant 0 : index
    %138 = vector.load %arg11[%c128_107, %c0_108] : memref<1152x128xbf16, #tpu.memory_space<vmem>>, vector<128x128xbf16>
    %cst_109 = arith.constant dense<0.000000e+00> : vector<8x128xf32>
    %139 = tpu.matmul %137, %138, %cst_109 {dimension_numbers = #tpu.dot_dimension_numbers<[1], [0], [0], [1], [0, 0, 1, 1], [], []>} : vector<8x128xbf16>, vector<128x128xbf16>, vector<8x128xf32> -> vector<8x128xf32>
    %140 = vector.extract_strided_slice %131 {offsets = [16, 0], sizes = [8, 128], strides = [1, 1]} : vector<72x128xf32> to vector<8x128xf32>
    %141 = arith.truncf %140 : vector<8x128xf32> to vector<8x128xbf16>
    %c256_110 = arith.constant 256 : index
    %c0_111 = arith.constant 0 : index
    %142 = vector.load %arg11[%c256_110, %c0_111] : memref<1152x128xbf16, #tpu.memory_space<vmem>>, vector<128x128xbf16>
    %cst_112 = arith.constant dense<0.000000e+00> : vector<8x128xf32>
    %143 = tpu.matmul %141, %142, %cst_112 {dimension_numbers = #tpu.dot_dimension_numbers<[1], [0], [0], [1], [0, 0, 1, 1], [], []>} : vector<8x128xbf16>, vector<128x128xbf16>, vector<8x128xf32> -> vector<8x128xf32>
    %144 = vector.extract_strided_slice %131 {offsets = [24, 0], sizes = [8, 128], strides = [1, 1]} : vector<72x128xf32> to vector<8x128xf32>
    %145 = arith.truncf %144 : vector<8x128xf32> to vector<8x128xbf16>
    %c384_113 = arith.constant 384 : index
    %c0_114 = arith.constant 0 : index
    %146 = vector.load %arg11[%c384_113, %c0_114] : memref<1152x128xbf16, #tpu.memory_space<vmem>>, vector<128x128xbf16>
    %cst_115 = arith.constant dense<0.000000e+00> : vector<8x128xf32>
    %147 = tpu.matmul %145, %146, %cst_115 {dimension_numbers = #tpu.dot_dimension_numbers<[1], [0], [0], [1], [0, 0, 1, 1], [], []>} : vector<8x128xbf16>, vector<128x128xbf16>, vector<8x128xf32> -> vector<8x128xf32>
    %148 = vector.extract_strided_slice %131 {offsets = [32, 0], sizes = [8, 128], strides = [1, 1]} : vector<72x128xf32> to vector<8x128xf32>
    %149 = arith.truncf %148 : vector<8x128xf32> to vector<8x128xbf16>
    %c512_116 = arith.constant 512 : index
    %c0_117 = arith.constant 0 : index
    %150 = vector.load %arg11[%c512_116, %c0_117] : memref<1152x128xbf16, #tpu.memory_space<vmem>>, vector<128x128xbf16>
    %cst_118 = arith.constant dense<0.000000e+00> : vector<8x128xf32>
    %151 = tpu.matmul %149, %150, %cst_118 {dimension_numbers = #tpu.dot_dimension_numbers<[1], [0], [0], [1], [0, 0, 1, 1], [], []>} : vector<8x128xbf16>, vector<128x128xbf16>, vector<8x128xf32> -> vector<8x128xf32>
    %152 = vector.extract_strided_slice %131 {offsets = [40, 0], sizes = [8, 128], strides = [1, 1]} : vector<72x128xf32> to vector<8x128xf32>
    %153 = arith.truncf %152 : vector<8x128xf32> to vector<8x128xbf16>
    %c640_119 = arith.constant 640 : index
    %c0_120 = arith.constant 0 : index
    %154 = vector.load %arg11[%c640_119, %c0_120] : memref<1152x128xbf16, #tpu.memory_space<vmem>>, vector<128x128xbf16>
    %cst_121 = arith.constant dense<0.000000e+00> : vector<8x128xf32>
    %155 = tpu.matmul %153, %154, %cst_121 {dimension_numbers = #tpu.dot_dimension_numbers<[1], [0], [0], [1], [0, 0, 1, 1], [], []>} : vector<8x128xbf16>, vector<128x128xbf16>, vector<8x128xf32> -> vector<8x128xf32>
    %156 = vector.extract_strided_slice %131 {offsets = [48, 0], sizes = [8, 128], strides = [1, 1]} : vector<72x128xf32> to vector<8x128xf32>
    %157 = arith.truncf %156 : vector<8x128xf32> to vector<8x128xbf16>
    %c768_122 = arith.constant 768 : index
    %c0_123 = arith.constant 0 : index
    %158 = vector.load %arg11[%c768_122, %c0_123] : memref<1152x128xbf16, #tpu.memory_space<vmem>>, vector<128x128xbf16>
    %cst_124 = arith.constant dense<0.000000e+00> : vector<8x128xf32>
    %159 = tpu.matmul %157, %158, %cst_124 {dimension_numbers = #tpu.dot_dimension_numbers<[1], [0], [0], [1], [0, 0, 1, 1], [], []>} : vector<8x128xbf16>, vector<128x128xbf16>, vector<8x128xf32> -> vector<8x128xf32>
    %160 = vector.extract_strided_slice %131 {offsets = [56, 0], sizes = [8, 128], strides = [1, 1]} : vector<72x128xf32> to vector<8x128xf32>
    %161 = arith.truncf %160 : vector<8x128xf32> to vector<8x128xbf16>
    %c896_125 = arith.constant 896 : index
    %c0_126 = arith.constant 0 : index
    %162 = vector.load %arg11[%c896_125, %c0_126] : memref<1152x128xbf16, #tpu.memory_space<vmem>>, vector<128x128xbf16>
    %cst_127 = arith.constant dense<0.000000e+00> : vector<8x128xf32>
    %163 = tpu.matmul %161, %162, %cst_127 {dimension_numbers = #tpu.dot_dimension_numbers<[1], [0], [0], [1], [0, 0, 1, 1], [], []>} : vector<8x128xbf16>, vector<128x128xbf16>, vector<8x128xf32> -> vector<8x128xf32>
    %164 = vector.extract_strided_slice %131 {offsets = [64, 0], sizes = [8, 128], strides = [1, 1]} : vector<72x128xf32> to vector<8x128xf32>
    %165 = arith.truncf %164 : vector<8x128xf32> to vector<8x128xbf16>
    %c1024_128 = arith.constant 1024 : index
    %c0_129 = arith.constant 0 : index
    %166 = vector.load %arg11[%c1024_128, %c0_129] : memref<1152x128xbf16, #tpu.memory_space<vmem>>, vector<128x128xbf16>
    %cst_130 = arith.constant dense<0.000000e+00> : vector<8x128xf32>
    %167 = tpu.matmul %165, %166, %cst_130 {dimension_numbers = #tpu.dot_dimension_numbers<[1], [0], [0], [1], [0, 0, 1, 1], [], []>} : vector<8x128xbf16>, vector<128x128xbf16>, vector<8x128xf32> -> vector<8x128xf32>
    %168 = arith.addf %135, %139 : vector<8x128xf32>
    %169 = arith.addf %143, %147 : vector<8x128xf32>
    %170 = arith.addf %151, %155 : vector<8x128xf32>
    %171 = arith.addf %159, %163 : vector<8x128xf32>
    %172 = arith.addf %168, %169 : vector<8x128xf32>
    %173 = arith.addf %170, %171 : vector<8x128xf32>
    %174 = arith.addf %172, %173 : vector<8x128xf32>
    %175 = arith.addf %174, %167 : vector<8x128xf32>
    %176 = vector.extract_strided_slice %0 {offsets = [4, 0], sizes = [1, 128], strides = [1, 1]} : vector<16x128xf32> to vector<1x128xf32>
    %177 = vector.broadcast %176 : vector<1x128xf32> to vector<8x128xf32>
    %178 = arith.addf %175, %177 : vector<8x128xf32>
    %cst_131 = arith.constant 0.000000e+00 : f32
    %179 = vector.broadcast %cst_131 : f32 to vector<8x128xf32>
    %180 = arith.cmpf ogt, %178, %179 : vector<8x128xf32>
    %cst_132 = arith.constant 2.000000e-01 : f32
    %181 = vector.broadcast %cst_132 : f32 to vector<8x128xf32>
    %182 = arith.mulf %181, %178 : vector<8x128xf32>
    %183 = arith.select %180, %178, %182 : vector<8x128xi1>, vector<8x128xf32>
    %184 = vector.extract_strided_slice %0 {offsets = [5, 0], sizes = [1, 128], strides = [1, 1]} : vector<16x128xf32> to vector<1x128xf32>
    %185 = vector.extract_strided_slice %0 {offsets = [6, 0], sizes = [1, 128], strides = [1, 1]} : vector<16x128xf32> to vector<1x128xf32>
    %cst_133 = arith.constant dense<0.000000e+00> : vector<128xf32>
    %186 = vector.multi_reduction <add>, %183, %cst_133 [0] : vector<8x128xf32> to vector<128xf32>
    %187 = vector.shape_cast %186 : vector<128xf32> to vector<1x128xf32>
    %cst_134 = arith.constant 8.000000e+00 : f32
    %188 = vector.broadcast %cst_134 : f32 to vector<1x128xf32>
    %189 = arith.divf %187, %188 : vector<1x128xf32>
    %190 = vector.broadcast %189 : vector<1x128xf32> to vector<8x128xf32>
    %191 = arith.subf %183, %190 : vector<8x128xf32>
    %192 = arith.mulf %191, %191 : vector<8x128xf32>
    %cst_135 = arith.constant dense<0.000000e+00> : vector<128xf32>
    %193 = vector.multi_reduction <add>, %192, %cst_135 [0] : vector<8x128xf32> to vector<128xf32>
    %194 = vector.shape_cast %193 : vector<128xf32> to vector<1x128xf32>
    %cst_136 = arith.constant 8.000000e+00 : f32
    %195 = vector.broadcast %cst_136 : f32 to vector<1x128xf32>
    %196 = arith.divf %194, %195 : vector<1x128xf32>
    %197 = vector.broadcast %189 : vector<1x128xf32> to vector<8x128xf32>
    %198 = arith.subf %183, %197 : vector<8x128xf32>
    %cst_137 = arith.constant 8.000000e-01 : f32
    %199 = vector.broadcast %cst_137 : f32 to vector<1x128xf32>
    %200 = arith.addf %196, %199 : vector<1x128xf32>
    %201 = math.rsqrt %200 : vector<1x128xf32>
    %202 = vector.broadcast %201 : vector<1x128xf32> to vector<8x128xf32>
    %203 = arith.mulf %198, %202 : vector<8x128xf32>
    %204 = vector.broadcast %184 : vector<1x128xf32> to vector<8x128xf32>
    %205 = arith.mulf %203, %204 : vector<8x128xf32>
    %206 = vector.broadcast %185 : vector<1x128xf32> to vector<8x128xf32>
    %207 = arith.addf %205, %206 : vector<8x128xf32>
    %208 = arith.truncf %207 : vector<8x128xf32> to vector<8x128xbf16>
    %c0_138 = arith.constant 0 : index
    %c0_139 = arith.constant 0 : index
    %209 = vector.load %arg8[%c0_138, %c0_139] : memref<576x128xbf16, #tpu.memory_space<vmem>>, vector<64x128xbf16>
    %c0_140 = arith.constant 0 : index
    %c0_141 = arith.constant 0 : index
    %210 = vector.load %arg11[%c0_140, %c0_141] : memref<1152x128xbf16, #tpu.memory_space<vmem>>, vector<64x128xbf16>
    tpu.vector_store %arg11[%c0_140, %c0_141], %209 {strides = array<i32>} : memref<1152x128xbf16, #tpu.memory_space<vmem>>, vector<64x128xbf16>,
    %c64_142 = arith.constant 64 : index
    %c0_143 = arith.constant 0 : index
    %211 = vector.load %arg8[%c64_142, %c0_143] : memref<576x128xbf16, #tpu.memory_space<vmem>>, vector<64x128xbf16>
    %c128_144 = arith.constant 128 : index
    %c0_145 = arith.constant 0 : index
    %212 = vector.load %arg11[%c128_144, %c0_145] : memref<1152x128xbf16, #tpu.memory_space<vmem>>, vector<64x128xbf16>
    tpu.vector_store %arg11[%c128_144, %c0_145], %211 {strides = array<i32>} : memref<1152x128xbf16, #tpu.memory_space<vmem>>, vector<64x128xbf16>,
    %c128_146 = arith.constant 128 : index
    %c0_147 = arith.constant 0 : index
    %213 = vector.load %arg8[%c128_146, %c0_147] : memref<576x128xbf16, #tpu.memory_space<vmem>>, vector<64x128xbf16>
    %c256_148 = arith.constant 256 : index
    %c0_149 = arith.constant 0 : index
    %214 = vector.load %arg11[%c256_148, %c0_149] : memref<1152x128xbf16, #tpu.memory_space<vmem>>, vector<64x128xbf16>
    tpu.vector_store %arg11[%c256_148, %c0_149], %213 {strides = array<i32>} : memref<1152x128xbf16, #tpu.memory_space<vmem>>, vector<64x128xbf16>,
    %c192_150 = arith.constant 192 : index
    %c0_151 = arith.constant 0 : index
    %215 = vector.load %arg8[%c192_150, %c0_151] : memref<576x128xbf16, #tpu.memory_space<vmem>>, vector<64x128xbf16>
    %c384_152 = arith.constant 384 : index
    %c0_153 = arith.constant 0 : index
    %216 = vector.load %arg11[%c384_152, %c0_153] : memref<1152x128xbf16, #tpu.memory_space<vmem>>, vector<64x128xbf16>
    tpu.vector_store %arg11[%c384_152, %c0_153], %215 {strides = array<i32>} : memref<1152x128xbf16, #tpu.memory_space<vmem>>, vector<64x128xbf16>,
    %c256_154 = arith.constant 256 : index
    %c0_155 = arith.constant 0 : index
    %217 = vector.load %arg8[%c256_154, %c0_155] : memref<576x128xbf16, #tpu.memory_space<vmem>>, vector<64x128xbf16>
    %c512_156 = arith.constant 512 : index
    %c0_157 = arith.constant 0 : index
    %218 = vector.load %arg11[%c512_156, %c0_157] : memref<1152x128xbf16, #tpu.memory_space<vmem>>, vector<64x128xbf16>
    tpu.vector_store %arg11[%c512_156, %c0_157], %217 {strides = array<i32>} : memref<1152x128xbf16, #tpu.memory_space<vmem>>, vector<64x128xbf16>,
    %c320 = arith.constant 320 : index
    %c0_158 = arith.constant 0 : index
    %219 = vector.load %arg8[%c320, %c0_158] : memref<576x128xbf16, #tpu.memory_space<vmem>>, vector<64x128xbf16>
    %c640_159 = arith.constant 640 : index
    %c0_160 = arith.constant 0 : index
    %220 = vector.load %arg11[%c640_159, %c0_160] : memref<1152x128xbf16, #tpu.memory_space<vmem>>, vector<64x128xbf16>
    tpu.vector_store %arg11[%c640_159, %c0_160], %219 {strides = array<i32>} : memref<1152x128xbf16, #tpu.memory_space<vmem>>, vector<64x128xbf16>,
    %c384_161 = arith.constant 384 : index
    %c0_162 = arith.constant 0 : index
    %221 = vector.load %arg8[%c384_161, %c0_162] : memref<576x128xbf16, #tpu.memory_space<vmem>>, vector<64x128xbf16>
    %c768_163 = arith.constant 768 : index
    %c0_164 = arith.constant 0 : index
    %222 = vector.load %arg11[%c768_163, %c0_164] : memref<1152x128xbf16, #tpu.memory_space<vmem>>, vector<64x128xbf16>
    tpu.vector_store %arg11[%c768_163, %c0_164], %221 {strides = array<i32>} : memref<1152x128xbf16, #tpu.memory_space<vmem>>, vector<64x128xbf16>,
    %c448 = arith.constant 448 : index
    %c0_165 = arith.constant 0 : index
    %223 = vector.load %arg8[%c448, %c0_165] : memref<576x128xbf16, #tpu.memory_space<vmem>>, vector<64x128xbf16>
    %c896_166 = arith.constant 896 : index
    %c0_167 = arith.constant 0 : index
    %224 = vector.load %arg11[%c896_166, %c0_167] : memref<1152x128xbf16, #tpu.memory_space<vmem>>, vector<64x128xbf16>
    tpu.vector_store %arg11[%c896_166, %c0_167], %223 {strides = array<i32>} : memref<1152x128xbf16, #tpu.memory_space<vmem>>, vector<64x128xbf16>,
    %c512_168 = arith.constant 512 : index
    %c0_169 = arith.constant 0 : index
    %225 = vector.load %arg8[%c512_168, %c0_169] : memref<576x128xbf16, #tpu.memory_space<vmem>>, vector<64x128xbf16>
    %c1024_170 = arith.constant 1024 : index
    %c0_171 = arith.constant 0 : index
    %226 = vector.load %arg11[%c1024_170, %c0_171] : memref<1152x128xbf16, #tpu.memory_space<vmem>>, vector<64x128xbf16>
    tpu.vector_store %arg11[%c1024_170, %c0_171], %225 {strides = array<i32>} : memref<1152x128xbf16, #tpu.memory_space<vmem>>, vector<64x128xbf16>,
    %c0_172 = arith.constant 0 : index
    %c0_173 = arith.constant 0 : index
    %227 = vector.load %arg7[%c0_172, %c0_173] : memref<72x8xbf16, #tpu.memory_space<vmem>>, vector<72x8xbf16>
    %cst_174 = arith.constant dense<0.000000e+00> : vector<72x128xf32>
    %228 = tpu.matmul %227, %208, %cst_174 {dimension_numbers = #tpu.dot_dimension_numbers<[1], [0], [0], [1], [0, 0, 1, 1], [], []>} : vector<72x8xbf16>, vector<8x128xbf16>, vector<72x128xf32> -> vector<72x128xf32>
    %229 = vector.extract_strided_slice %228 {offsets = [0, 0], sizes = [8, 128], strides = [1, 1]} : vector<72x128xf32> to vector<8x128xf32>
    %230 = arith.truncf %229 : vector<8x128xf32> to vector<8x128xbf16>
    %c0_175 = arith.constant 0 : index
    %c0_176 = arith.constant 0 : index
    %231 = vector.load %arg11[%c0_175, %c0_176] : memref<1152x128xbf16, #tpu.memory_space<vmem>>, vector<128x128xbf16>
    %cst_177 = arith.constant dense<0.000000e+00> : vector<8x128xf32>
    %232 = tpu.matmul %230, %231, %cst_177 {dimension_numbers = #tpu.dot_dimension_numbers<[1], [0], [0], [1], [0, 0, 1, 1], [], []>} : vector<8x128xbf16>, vector<128x128xbf16>, vector<8x128xf32> -> vector<8x128xf32>
    %233 = vector.extract_strided_slice %228 {offsets = [8, 0], sizes = [8, 128], strides = [1, 1]} : vector<72x128xf32> to vector<8x128xf32>
    %234 = arith.truncf %233 : vector<8x128xf32> to vector<8x128xbf16>
    %c128_178 = arith.constant 128 : index
    %c0_179 = arith.constant 0 : index
    %235 = vector.load %arg11[%c128_178, %c0_179] : memref<1152x128xbf16, #tpu.memory_space<vmem>>, vector<128x128xbf16>
    %cst_180 = arith.constant dense<0.000000e+00> : vector<8x128xf32>
    %236 = tpu.matmul %234, %235, %cst_180 {dimension_numbers = #tpu.dot_dimension_numbers<[1], [0], [0], [1], [0, 0, 1, 1], [], []>} : vector<8x128xbf16>, vector<128x128xbf16>, vector<8x128xf32> -> vector<8x128xf32>
    %237 = vector.extract_strided_slice %228 {offsets = [16, 0], sizes = [8, 128], strides = [1, 1]} : vector<72x128xf32> to vector<8x128xf32>
    %238 = arith.truncf %237 : vector<8x128xf32> to vector<8x128xbf16>
    %c256_181 = arith.constant 256 : index
    %c0_182 = arith.constant 0 : index
    %239 = vector.load %arg11[%c256_181, %c0_182] : memref<1152x128xbf16, #tpu.memory_space<vmem>>, vector<128x128xbf16>
    %cst_183 = arith.constant dense<0.000000e+00> : vector<8x128xf32>
    %240 = tpu.matmul %238, %239, %cst_183 {dimension_numbers = #tpu.dot_dimension_numbers<[1], [0], [0], [1], [0, 0, 1, 1], [], []>} : vector<8x128xbf16>, vector<128x128xbf16>, vector<8x128xf32> -> vector<8x128xf32>
    %241 = vector.extract_strided_slice %228 {offsets = [24, 0], sizes = [8, 128], strides = [1, 1]} : vector<72x128xf32> to vector<8x128xf32>
    %242 = arith.truncf %241 : vector<8x128xf32> to vector<8x128xbf16>
    %c384_184 = arith.constant 384 : index
    %c0_185 = arith.constant 0 : index
    %243 = vector.load %arg11[%c384_184, %c0_185] : memref<1152x128xbf16, #tpu.memory_space<vmem>>, vector<128x128xbf16>
    %cst_186 = arith.constant dense<0.000000e+00> : vector<8x128xf32>
    %244 = tpu.matmul %242, %243, %cst_186 {dimension_numbers = #tpu.dot_dimension_numbers<[1], [0], [0], [1], [0, 0, 1, 1], [], []>} : vector<8x128xbf16>, vector<128x128xbf16>, vector<8x128xf32> -> vector<8x128xf32>
    %245 = vector.extract_strided_slice %228 {offsets = [32, 0], sizes = [8, 128], strides = [1, 1]} : vector<72x128xf32> to vector<8x128xf32>
    %246 = arith.truncf %245 : vector<8x128xf32> to vector<8x128xbf16>
    %c512_187 = arith.constant 512 : index
    %c0_188 = arith.constant 0 : index
    %247 = vector.load %arg11[%c512_187, %c0_188] : memref<1152x128xbf16, #tpu.memory_space<vmem>>, vector<128x128xbf16>
    %cst_189 = arith.constant dense<0.000000e+00> : vector<8x128xf32>
    %248 = tpu.matmul %246, %247, %cst_189 {dimension_numbers = #tpu.dot_dimension_numbers<[1], [0], [0], [1], [0, 0, 1, 1], [], []>} : vector<8x128xbf16>, vector<128x128xbf16>, vector<8x128xf32> -> vector<8x128xf32>
    %249 = vector.extract_strided_slice %228 {offsets = [40, 0], sizes = [8, 128], strides = [1, 1]} : vector<72x128xf32> to vector<8x128xf32>
    %250 = arith.truncf %249 : vector<8x128xf32> to vector<8x128xbf16>
    %c640_190 = arith.constant 640 : index
    %c0_191 = arith.constant 0 : index
    %251 = vector.load %arg11[%c640_190, %c0_191] : memref<1152x128xbf16, #tpu.memory_space<vmem>>, vector<128x128xbf16>
    %cst_192 = arith.constant dense<0.000000e+00> : vector<8x128xf32>
    %252 = tpu.matmul %250, %251, %cst_192 {dimension_numbers = #tpu.dot_dimension_numbers<[1], [0], [0], [1], [0, 0, 1, 1], [], []>} : vector<8x128xbf16>, vector<128x128xbf16>, vector<8x128xf32> -> vector<8x128xf32>
    %253 = vector.extract_strided_slice %228 {offsets = [48, 0], sizes = [8, 128], strides = [1, 1]} : vector<72x128xf32> to vector<8x128xf32>
    %254 = arith.truncf %253 : vector<8x128xf32> to vector<8x128xbf16>
    %c768_193 = arith.constant 768 : index
    %c0_194 = arith.constant 0 : index
    %255 = vector.load %arg11[%c768_193, %c0_194] : memref<1152x128xbf16, #tpu.memory_space<vmem>>, vector<128x128xbf16>
    %cst_195 = arith.constant dense<0.000000e+00> : vector<8x128xf32>
    %256 = tpu.matmul %254, %255, %cst_195 {dimension_numbers = #tpu.dot_dimension_numbers<[1], [0], [0], [1], [0, 0, 1, 1], [], []>} : vector<8x128xbf16>, vector<128x128xbf16>, vector<8x128xf32> -> vector<8x128xf32>
    %257 = vector.extract_strided_slice %228 {offsets = [56, 0], sizes = [8, 128], strides = [1, 1]} : vector<72x128xf32> to vector<8x128xf32>
    %258 = arith.truncf %257 : vector<8x128xf32> to vector<8x128xbf16>
    %c896_196 = arith.constant 896 : index
    %c0_197 = arith.constant 0 : index
    %259 = vector.load %arg11[%c896_196, %c0_197] : memref<1152x128xbf16, #tpu.memory_space<vmem>>, vector<128x128xbf16>
    %cst_198 = arith.constant dense<0.000000e+00> : vector<8x128xf32>
    %260 = tpu.matmul %258, %259, %cst_198 {dimension_numbers = #tpu.dot_dimension_numbers<[1], [0], [0], [1], [0, 0, 1, 1], [], []>} : vector<8x128xbf16>, vector<128x128xbf16>, vector<8x128xf32> -> vector<8x128xf32>
    %261 = vector.extract_strided_slice %228 {offsets = [64, 0], sizes = [8, 128], strides = [1, 1]} : vector<72x128xf32> to vector<8x128xf32>
    %262 = arith.truncf %261 : vector<8x128xf32> to vector<8x128xbf16>
    %c1024_199 = arith.constant 1024 : index
    %c0_200 = arith.constant 0 : index
    %263 = vector.load %arg11[%c1024_199, %c0_200] : memref<1152x128xbf16, #tpu.memory_space<vmem>>, vector<128x128xbf16>
    %cst_201 = arith.constant dense<0.000000e+00> : vector<8x128xf32>
    %264 = tpu.matmul %262, %263, %cst_201 {dimension_numbers = #tpu.dot_dimension_numbers<[1], [0], [0], [1], [0, 0, 1, 1], [], []>} : vector<8x128xbf16>, vector<128x128xbf16>, vector<8x128xf32> -> vector<8x128xf32>
    %265 = arith.addf %232, %236 : vector<8x128xf32>
    %266 = arith.addf %240, %244 : vector<8x128xf32>
    %267 = arith.addf %248, %252 : vector<8x128xf32>
    %268 = arith.addf %256, %260 : vector<8x128xf32>
    %269 = arith.addf %265, %266 : vector<8x128xf32>
    %270 = arith.addf %267, %268 : vector<8x128xf32>
    %271 = arith.addf %269, %270 : vector<8x128xf32>
    %272 = arith.addf %271, %264 : vector<8x128xf32>
    %273 = vector.extract_strided_slice %0 {offsets = [7, 0], sizes = [1, 128], strides = [1, 1]} : vector<16x128xf32> to vector<1x128xf32>
    %274 = vector.broadcast %273 : vector<1x128xf32> to vector<8x128xf32>
    %275 = arith.addf %272, %274 : vector<8x128xf32>
    %cst_202 = arith.constant 0.000000e+00 : f32
    %276 = vector.broadcast %cst_202 : f32 to vector<8x128xf32>
    %277 = arith.cmpf ogt, %275, %276 : vector<8x128xf32>
    %cst_203 = arith.constant 2.000000e-01 : f32
    %278 = vector.broadcast %cst_203 : f32 to vector<8x128xf32>
    %279 = arith.mulf %278, %275 : vector<8x128xf32>
    %280 = arith.select %277, %275, %279 : vector<8x128xi1>, vector<8x128xf32>
    %281 = vector.extract_strided_slice %0 {offsets = [8, 0], sizes = [1, 128], strides = [1, 1]} : vector<16x128xf32> to vector<1x128xf32>
    %282 = vector.extract_strided_slice %0 {offsets = [9, 0], sizes = [1, 128], strides = [1, 1]} : vector<16x128xf32> to vector<1x128xf32>
    %283 = tpu.iota {dimensions = array<i32: 0>} : vector<8x1xi32>
    %c2_i32 = arith.constant 2 : i32
    %284 = vector.broadcast %c2_i32 : i32 to vector<8x1xi32>
    %285 = arith.cmpi slt, %283, %284 : vector<8x1xi32>
    %286 = arith.extui %285 : vector<8x1xi1> to vector<8x1xi32>
    %287 = arith.sitofp %286 : vector<8x1xi32> to vector<8x1xf32>
    %288 = vector.broadcast %287 : vector<8x1xf32> to vector<8x128xf32>
    %289 = arith.mulf %280, %288 : vector<8x128xf32>
    %cst_204 = arith.constant dense<0.000000e+00> : vector<128xf32>
    %290 = vector.multi_reduction <add>, %289, %cst_204 [0] : vector<8x128xf32> to vector<128xf32>
    %291 = vector.shape_cast %290 : vector<128xf32> to vector<1x128xf32>
    %cst_205 = arith.constant 5.000000e-01 : f32
    %292 = vector.broadcast %cst_205 : f32 to vector<1x128xf32>
    %293 = arith.mulf %291, %292 : vector<1x128xf32>
    %294 = vector.broadcast %293 : vector<1x128xf32> to vector<8x128xf32>
    %295 = arith.subf %280, %294 : vector<8x128xf32>
    %296 = arith.mulf %295, %295 : vector<8x128xf32>
    %297 = vector.broadcast %287 : vector<8x1xf32> to vector<8x128xf32>
    %298 = arith.mulf %296, %297 : vector<8x128xf32>
    %cst_206 = arith.constant dense<0.000000e+00> : vector<128xf32>
    %299 = vector.multi_reduction <add>, %298, %cst_206 [0] : vector<8x128xf32> to vector<128xf32>
    %300 = vector.shape_cast %299 : vector<128xf32> to vector<1x128xf32>
    %cst_207 = arith.constant 5.000000e-01 : f32
    %301 = vector.broadcast %cst_207 : f32 to vector<1x128xf32>
    %302 = arith.mulf %300, %301 : vector<1x128xf32>
    %303 = vector.broadcast %293 : vector<1x128xf32> to vector<8x128xf32>
    %304 = arith.subf %280, %303 : vector<8x128xf32>
    %cst_208 = arith.constant 8.000000e-01 : f32
    %305 = vector.broadcast %cst_208 : f32 to vector<1x128xf32>
    %306 = arith.addf %302, %305 : vector<1x128xf32>
    %307 = math.rsqrt %306 : vector<1x128xf32>
    %308 = vector.broadcast %307 : vector<1x128xf32> to vector<8x128xf32>
    %309 = arith.mulf %304, %308 : vector<8x128xf32>
    %310 = vector.broadcast %281 : vector<1x128xf32> to vector<8x128xf32>
    %311 = arith.mulf %309, %310 : vector<8x128xf32>
    %312 = vector.broadcast %282 : vector<1x128xf32> to vector<8x128xf32>
    %313 = arith.addf %311, %312 : vector<8x128xf32>
    %314 = arith.truncf %313 : vector<8x128xf32> to vector<8x128xbf16>
    %c0_209 = arith.constant 0 : index
    %c0_210 = arith.constant 0 : index
    %315 = vector.load %arg9[%c0_209, %c0_210] : memref<128x128xbf16, #tpu.memory_space<vmem>>, vector<128x128xbf16>
    %cst_211 = arith.constant dense<0.000000e+00> : vector<8x128xf32>
    %316 = tpu.matmul %314, %315, %cst_211 {dimension_numbers = #tpu.dot_dimension_numbers<[1], [0], [0], [1], [0, 0, 1, 1], [], []>} : vector<8x128xbf16>, vector<128x128xbf16>, vector<8x128xf32> -> vector<8x128xf32>
    %317 = vector.extract_strided_slice %0 {offsets = [10, 0], sizes = [1, 128], strides = [1, 1]} : vector<16x128xf32> to vector<1x128xf32>
    %318 = vector.broadcast %317 : vector<1x128xf32> to vector<8x128xf32>
    %319 = arith.addf %316, %318 : vector<8x128xf32>
    %320 = vector.extract_strided_slice %319 {offsets = [0, 0], sizes = [2, 128], strides = [1, 1]} : vector<8x128xf32> to vector<2x128xf32>
    %c0_212 = arith.constant 0 : index
    %c0_213 = arith.constant 0 : index
    %321 = vector.load %arg10[%c0_212, %c0_213] : memref<2x128xf32, #tpu.memory_space<vmem>>, vector<2x128xf32>
    tpu.vector_store %arg10[%c0_212, %c0_213], %320 {strides = array<i32>} : memref<2x128xf32, #tpu.memory_space<vmem>>, vector<2x128xf32>,
    return
  }
}

</mosaic_0001>

<llo_original>
// kernel: featurizer_forward.1
$region0: #{featurizer_forward.1}
  #allocation0 [shape = 'u32[]', space=smem, size = 0x4, offset = 0x4, fixed_abs, tag = 'smem constant byte address 0x4 - core index']
  #allocation1 [shape = 'u32[144,128]{1,0:T(1,128)}', space=vmem, size = 0x12000, scoped, tag = 'internal scratch']
  #allocation2 [shape = 'bf16[1152,128]{1,0:T(16,128)(2,1)}', space=vmem, size = 0x48000, scoped, tag = 'scratch operand']
  %s0 = inlined_call_operand.vmem [shape: bf16[128,128], index: 0, kind: input, shape index: {}]
  %s1 = inlined_call_operand.vmem [shape: bf16[128,128], index: 1, kind: input, shape index: {}]
  %s2 = inlined_call_operand.vmem [shape: f32[16,128], index: 2, kind: input, shape index: {}]
  %s3 = inlined_call_operand.vmem [shape: bf16[288,128], index: 3, kind: input, shape index: {}]
  %s4 = inlined_call_operand.vmem [shape: bf16[144,128], index: 4, kind: input, shape index: {}]
  %s5 = inlined_call_operand.vmem [shape: bf16[72,32], index: 5, kind: input, shape index: {}]
  %s6 = inlined_call_operand.vmem [shape: bf16[288,128], index: 6, kind: input, shape index: {}]
  %s7 = inlined_call_operand.vmem [shape: bf16[72,8], index: 7, kind: input, shape index: {}]
  %s8 = inlined_call_operand.vmem [shape: bf16[576,128], index: 8, kind: input, shape index: {}]
  %s9 = inlined_call_operand.vmem [shape: bf16[128,128], index: 9, kind: input, shape index: {}]
  %s10 = inlined_call_operand.hbm [shape: f32[2,128], index: 10, kind: output, shape index: {}]
  %s11 = sld [smem:[#allocation0]]
  $region50: #{featurizer_forward.1} parent=0
    _
  %s13 = ssub.s32 1, %s11
  %s14 = scalar_select 0, %s13, %s11
  $region1: #{featurizer_forward.1} parent=0
    #allocation3 [shape = 'u8[1024]{0}', space=vmem, size = 0x400, scoped, tag = 'output window, operand 0, single buffered']
    #allocation4 [shape = 's32[1]{0}', space=sflag, size = 0x4, scoped, tag = 'scoped memory for featurizer_forward.1']
    %15 = vsyncpa [#allocation4], 0
    // Predicated region
    $region2: #{featurizer_forward.1} parent=1 // pred_check
      _
    $region3: #{featurizer_forward.1} parent=1 // pred_check_branch
      %17 = sbr.rel (0) target = $region5
    $region4: #{featurizer_forward.1} parent=1 // pred_region
      _
    $region5: #{featurizer_forward.1} parent=1 // pred_fallthru
      _
    // Predicated region
    $region6: #{featurizer_forward.1} parent=1 // pred_check
      _
    $region7: #{featurizer_forward.1} parent=1 // pred_check_branch
      %19 = sbr.rel (0) target = $region9
    $region8: #{featurizer_forward.1} parent=1 // pred_region
      _
    $region9: #{featurizer_forward.1} parent=1 // pred_fallthru
      _
    // Predicated region
    $region10: #{featurizer_forward.1} parent=1 // pred_check
      _
    $region11: #{featurizer_forward.1} parent=1 // pred_check_branch
      %21 = sbr.rel (0) target = $region13
    $region12: #{featurizer_forward.1} parent=1 // pred_region
      _
    $region13: #{featurizer_forward.1} parent=1 // pred_fallthru
      _
    // Predicated region
    $region14: #{featurizer_forward.1} parent=1 // pred_check
      _
    $region15: #{featurizer_forward.1} parent=1 // pred_check_branch
      %23 = sbr.rel (0) target = $region17
    $region16: #{featurizer_forward.1} parent=1 // pred_region
      _
    $region17: #{featurizer_forward.1} parent=1 // pred_fallthru
      _
    // Predicated region
    $region18: #{featurizer_forward.1} parent=1 // pred_check
      _
    $region19: #{featurizer_forward.1} parent=1 // pred_check_branch
      %25 = sbr.rel (0) target = $region21
    $region20: #{featurizer_forward.1} parent=1 // pred_region
      _
    $region21: #{featurizer_forward.1} parent=1 // pred_fallthru
      _
    // Predicated region
    $region22: #{featurizer_forward.1} parent=1 // pred_check
      _
    $region23: #{featurizer_forward.1} parent=1 // pred_check_branch
      %27 = sbr.rel (0) target = $region25
    $region24: #{featurizer_forward.1} parent=1 // pred_region
      _
    $region25: #{featurizer_forward.1} parent=1 // pred_fallthru
      _
    // Predicated region
    $region26: #{featurizer_forward.1} parent=1 // pred_check
      _
    $region27: #{featurizer_forward.1} parent=1 // pred_check_branch
      %29 = sbr.rel (0) target = $region29
    $region28: #{featurizer_forward.1} parent=1 // pred_region
      _
    $region29: #{featurizer_forward.1} parent=1 // pred_fallthru
      _
    // Predicated region
    $region30: #{featurizer_forward.1} parent=1 // pred_check
      _
    $region31: #{featurizer_forward.1} parent=1 // pred_check_branch
      %31 = sbr.rel (0) target = $region33
    $region32: #{featurizer_forward.1} parent=1 // pred_region
      _
    $region33: #{featurizer_forward.1} parent=1 // pred_fallthru
      _
    // Predicated region
    $region34: #{featurizer_forward.1} parent=1 // pred_check
      _
    $region35: #{featurizer_forward.1} parent=1 // pred_check_branch
      %33 = sbr.rel (0) target = $region37
    $region36: #{featurizer_forward.1} parent=1 // pred_region
      _
    $region37: #{featurizer_forward.1} parent=1 // pred_fallthru
      _
    // Predicated region
    $region38: #{featurizer_forward.1} parent=1 // pred_check
      _
    $region39: #{featurizer_forward.1} parent=1 // pred_check_branch
      %35 = sbr.rel (0) target = $region41
    $region40: #{featurizer_forward.1} parent=1 // pred_region
      _
    $region41: #{featurizer_forward.1} parent=1 // pred_fallthru
      _
    %v37 = vld [vmem:[%s2] sm:$0xff]
    %v38 = vld [vmem:[%s2 + $0x8] sm:$0xff]
    %39 = vst [vmem:[#allocation2] sm:$0xff] 0
    %40 = vst [vmem:[#allocation2 + $0x8] sm:$0xff] 0
    %41 = vst [vmem:[#allocation2 + $0x10] sm:$0xff] 0
    %42 = vst [vmem:[#allocation2 + $0x18] sm:$0xff] 0
    %43 = vst [vmem:[#allocation2 + $0x20] sm:$0xff] 0
    %44 = vst [vmem:[#allocation2 + $0x28] sm:$0xff] 0
    %45 = vst [vmem:[#allocation2 + $0x30] sm:$0xff] 0
    %46 = vst [vmem:[#allocation2 + $0x38] sm:$0xff] 0
    %47 = vst [vmem:[#allocation2 + $0x40] sm:$0xff] 0
    %48 = vst [vmem:[#allocation2 + $0x48] sm:$0xff] 0
    %49 = vst [vmem:[#allocation2 + $0x50] sm:$0xff] 0
    %50 = vst [vmem:[#allocation2 + $0x58] sm:$0xff] 0
    %51 = vst [vmem:[#allocation2 + $0x60] sm:$0xff] 0
    %52 = vst [vmem:[#allocation2 + $0x68] sm:$0xff] 0
    %53 = vst [vmem:[#allocation2 + $0x70] sm:$0xff] 0
    %54 = vst [vmem:[#allocation2 + $0x78] sm:$0xff] 0
    %55 = vst [vmem:[#allocation2 + $0x80] sm:$0xff] 0
    %56 = vst [vmem:[#allocation2 + $0x88] sm:$0xff] 0
    %57 = vst [vmem:[#allocation2 + $0x90] sm:$0xff] 0
    %58 = vst [vmem:[#allocation2 + $0x98] sm:$0xff] 0
    %59 = vst [vmem:[#allocation2 + $0xa0] sm:$0xff] 0
    %60 = vst [vmem:[#allocation2 + $0xa8] sm:$0xff] 0
    %61 = vst [vmem:[#allocation2 + $0xb0] sm:$0xff] 0
    %62 = vst [vmem:[#allocation2 + $0xb8] sm:$0xff] 0
    %63 = vst [vmem:[#allocation2 + $0xc0] sm:$0xff] 0
    %64 = vst [vmem:[#allocation2 + $0xc8] sm:$0xff] 0
    %65 = vst [vmem:[#allocation2 + $0xd0] sm:$0xff] 0
    %66 = vst [vmem:[#allocation2 + $0xd8] sm:$0xff] 0
    %67 = vst [vmem:[#allocation2 + $0xe0] sm:$0xff] 0
    %68 = vst [vmem:[#allocation2 + $0xe8] sm:$0xff] 0
    %69 = vst [vmem:[#allocation2 + $0xf0] sm:$0xff] 0
    %70 = vst [vmem:[#allocation2 + $0xf8] sm:$0xff] 0
    %71 = vst [vmem:[#allocation2 + $0x100] sm:$0xff] 0
    %72 = vst [vmem:[#allocation2 + $0x108] sm:$0xff] 0
    %73 = vst [vmem:[#allocation2 + $0x110] sm:$0xff] 0
    %74 = vst [vmem:[#allocation2 + $0x118] sm:$0xff] 0
    %75 = vst [vmem:[#allocation2 + $0x120] sm:$0xff] 0
    %76 = vst [vmem:[#allocation2 + $0x128] sm:$0xff] 0
    %77 = vst [vmem:[#allocation2 + $0x130] sm:$0xff] 0
    %78 = vst [vmem:[#allocation2 + $0x138] sm:$0xff] 0
    %79 = vst [vmem:[#allocation2 + $0x140] sm:$0xff] 0
    %80 = vst [vmem:[#allocation2 + $0x148] sm:$0xff] 0
    %81 = vst [vmem:[#allocation2 + $0x150] sm:$0xff] 0
    %82 = vst [vmem:[#allocation2 + $0x158] sm:$0xff] 0
    %83 = vst [vmem:[#allocation2 + $0x160] sm:$0xff] 0
    %84 = vst [vmem:[#allocation2 + $0x168] sm:$0xff] 0
    %85 = vst [vmem:[#allocation2 + $0x170] sm:$0xff] 0
    %86 = vst [vmem:[#allocation2 + $0x178] sm:$0xff] 0
    %87 = vst [vmem:[#allocation2 + $0x180] sm:$0xff] 0
    %88 = vst [vmem:[#allocation2 + $0x188] sm:$0xff] 0
    %89 = vst [vmem:[#allocation2 + $0x190] sm:$0xff] 0
    %90 = vst [vmem:[#allocation2 + $0x198] sm:$0xff] 0
    %91 = vst [vmem:[#allocation2 + $0x1a0] sm:$0xff] 0
    %92 = vst [vmem:[#allocation2 + $0x1a8] sm:$0xff] 0
    %93 = vst [vmem:[#allocation2 + $0x1b0] sm:$0xff] 0
    %94 = vst [vmem:[#allocation2 + $0x1b8] sm:$0xff] 0
    %95 = vst [vmem:[#allocation2 + $0x1c0] sm:$0xff] 0
    %96 = vst [vmem:[#allocation2 + $0x1c8] sm:$0xff] 0
    %97 = vst [vmem:[#allocation2 + $0x1d0] sm:$0xff] 0
    %98 = vst [vmem:[#allocation2 + $0x1d8] sm:$0xff] 0
    %99 = vst [vmem:[#allocation2 + $0x1e0] sm:$0xff] 0
    %100 = vst [vmem:[#allocation2 + $0x1e8] sm:$0xff] 0
    %101 = vst [vmem:[#allocation2 + $0x1f0] sm:$0xff] 0
    %102 = vst [vmem:[#allocation2 + $0x1f8] sm:$0xff] 0
    %103 = vst [vmem:[#allocation2 + $0x200] sm:$0xff] 0
    %104 = vst [vmem:[#allocation2 + $0x208] sm:$0xff] 0
    %105 = vst [vmem:[#allocation2 + $0x210] sm:$0xff] 0
    %106 = vst [vmem:[#allocation2 + $0x218] sm:$0xff] 0
    %107 = vst [vmem:[#allocation2 + $0x220] sm:$0xff] 0
    %108 = vst [vmem:[#allocation2 + $0x228] sm:$0xff] 0
    %109 = vst [vmem:[#allocation2 + $0x230] sm:$0xff] 0
    %110 = vst [vmem:[#allocation2 + $0x238] sm:$0xff] 0
    %v111 = vld [vmem:[%s0] sm:$0xf]
    %v112 = vld [vmem:[%s0 + $0x4] sm:$0xf]
    %v113 = vld [vmem:[%s0 + $0x8] sm:$0xf]
    %v114 = vld [vmem:[%s0 + $0xc] sm:$0xf]
    %v115 = vld [vmem:[%s0 + $0x10] sm:$0xf]
    %v116 = vld [vmem:[%s0 + $0x14] sm:$0xf]
    %v117 = vld [vmem:[%s0 + $0x18] sm:$0xf]
    %v118 = vld [vmem:[%s0 + $0x1c] sm:$0xf]
    %v119 = vld [vmem:[%s0 + $0x20] sm:$0xf]
    %v120 = vld [vmem:[%s0 + $0x24] sm:$0xf]
    %v121 = vld [vmem:[%s0 + $0x28] sm:$0xf]
    %v122 = vld [vmem:[%s0 + $0x2c] sm:$0xf]
    %v123 = vld [vmem:[%s0 + $0x30] sm:$0xf]
    %v124 = vld [vmem:[%s0 + $0x34] sm:$0xf]
    %v125 = vld [vmem:[%s0 + $0x38] sm:$0xf]
    %v126 = vld [vmem:[%s0 + $0x3c] sm:$0xf]
    %v127 = vld [vmem:[%s1] sm:$0xf]
    %v128 = vld [vmem:[%s1 + $0x4] sm:$0xf]
    %v129 = vld [vmem:[%s1 + $0x8] sm:$0xf]
    %v130 = vld [vmem:[%s1 + $0xc] sm:$0xf]
    %v131 = vld [vmem:[%s1 + $0x10] sm:$0xf]
    %v132 = vld [vmem:[%s1 + $0x14] sm:$0xf]
    %v133 = vld [vmem:[%s1 + $0x18] sm:$0xf]
    %v134 = vld [vmem:[%s1 + $0x1c] sm:$0xf]
    %v135 = vld [vmem:[%s1 + $0x20] sm:$0xf]
    %v136 = vld [vmem:[%s1 + $0x24] sm:$0xf]
    %v137 = vld [vmem:[%s1 + $0x28] sm:$0xf]
    %v138 = vld [vmem:[%s1 + $0x2c] sm:$0xf]
    %v139 = vld [vmem:[%s1 + $0x30] sm:$0xf]
    %v140 = vld [vmem:[%s1 + $0x34] sm:$0xf]
    %v141 = vld [vmem:[%s1 + $0x38] sm:$0xf]
    %v142 = vld [vmem:[%s1 + $0x3c] sm:$0xf]
    %v143 = vlaneseq
    %v144 = vshrl.u32 %v143, 7
    %v145 = vsub.s32 0, %v144
    %v146 = vrot.slane %v37, %v145
    %v163 = vunpack.c.l.b16 %v111
    %v164 = vunpack.c.l.b16 %v112
    %v165 = vunpack.c.l.b16 %v113
    %v166 = vunpack.c.l.b16 %v114
    %v167 = vunpack.c.l.b16 %v115
    %v168 = vunpack.c.l.b16 %v116
    %v169 = vunpack.c.l.b16 %v117
    %v170 = vunpack.c.l.b16 %v118
    %v171 = vunpack.c.l.b16 %v119
    %v172 = vunpack.c.l.b16 %v120
    %v173 = vunpack.c.l.b16 %v121
    %v174 = vunpack.c.l.b16 %v122
    %v175 = vunpack.c.l.b16 %v123
    %v176 = vunpack.c.l.b16 %v124
    %v177 = vunpack.c.l.b16 %v125
    %v178 = vunpack.c.l.b16 %v126
    %v179 = vpack.c.b16 %v164, %v163
    %v180 = vpack.c.b16 %v166, %v165
    %v181 = vpack.c.b16 %v168, %v167
    %v182 = vpack.c.b16 %v170, %v169
    %v183 = vpack.c.b16 %v172, %v171
    %v184 = vpack.c.b16 %v174, %v173
    %v185 = vpack.c.b16 %v176, %v175
    %v186 = vpack.c.b16 %v178, %v177
    %v211 = vunpack.c.l.b16 %v127
    %v212 = vunpack.c.l.b16 %v128
    %v213 = vunpack.c.l.b16 %v129
    %v214 = vunpack.c.l.b16 %v130
    %v215 = vunpack.c.l.b16 %v131
    %v216 = vunpack.c.l.b16 %v132
    %v217 = vunpack.c.l.b16 %v133
    %v218 = vunpack.c.l.b16 %v134
    %v219 = vunpack.c.l.b16 %v135
    %v220 = vunpack.c.l.b16 %v136
    %v221 = vunpack.c.l.b16 %v137
    %v222 = vunpack.c.l.b16 %v138
    %v223 = vunpack.c.l.b16 %v139
    %v224 = vunpack.c.l.b16 %v140
    %v225 = vunpack.c.l.b16 %v141
    %v226 = vunpack.c.l.b16 %v142
    %v227 = vpack.c.b16 %v212, %v211
    %v228 = vpack.c.b16 %v214, %v213
    %v229 = vpack.c.b16 %v216, %v215
    %v230 = vpack.c.b16 %v218, %v217
    %v231 = vpack.c.b16 %v220, %v219
    %v232 = vpack.c.b16 %v222, %v221
    %v233 = vpack.c.b16 %v224, %v223
    %v234 = vpack.c.b16 %v226, %v225
    %243 = vmatprep.subr.bf16.mxu0 0
    %244 = vmatpush1.bf16.msra.mxu0 %v227
    %245 = vmatprep.subr.bf16.mxu0 0
    %246 = vmatpush1.bf16.msra.mxu0 %v228
    %247 = vmatprep.subr.bf16.mxu0 0
    %248 = vmatpush1.bf16.msra.mxu0 %v229
    %249 = vmatprep.subr.bf16.mxu0 0
    %250 = vmatpush1.bf16.msra.mxu0 %v230
    %251 = vmatprep.subr.bf16.mxu0 0
    %252 = vmatpush1.bf16.msra.mxu0 %v231
    %253 = vmatprep.subr.bf16.mxu0 0
    %254 = vmatpush1.bf16.msra.mxu0 %v232
    %255 = vmatprep.subr.bf16.mxu0 0
    %256 = vmatpush1.bf16.msra.mxu0 %v233
    %257 = vmatprep.subr.bf16.mxu0 0
    %258 = vmatpush1.bf16.msra.mxu0 %v234
    %259 = vmatprep.subr.bf16.mxu0 0
    %260 = vmatpush1.bf16.msra.mxu0 0
    %261 = vmatprep.subr.bf16.mxu0 0
    %262 = vmatpush1.bf16.msra.mxu0 0
    %263 = vmatprep.subr.bf16.mxu0 0
    %264 = vmatpush1.bf16.msra.mxu0 0
    %265 = vmatprep.subr.bf16.mxu0 0
    %266 = vmatpush1.bf16.msra.mxu0 0
    %267 = vmatprep.subr.bf16.mxu0 0
    %268 = vmatpush1.bf16.msra.mxu0 0
    %269 = vmatprep.subr.bf16.mxu0 0
    %270 = vmatpush1.bf16.msra.mxu0 0
    %271 = vmatprep.subr.bf16.mxu0 0
    %272 = vmatpush1.bf16.msra.mxu0 0
    %273 = vmatprep.subr.bf16.mxu0 0
    %274 = vmatpush1.bf16.msra.mxu0 0
    %275 = vmatprep.mubr.bf16.mxu0 0
    %276 = vmatmul.mubr.bf16.gmra.mrb[0].mxu0 %v179
    %v277 = vpop.f32.mrb[0].mxu0
    %v278 = vadd.f32 %v146, %v277
    %v279 = vpop.f32.mrb[0].mxu0
    %v280 = vpop.f32.mrb[0].mxu0
    %v281 = vadd.f32 %v146, %v280
    %v282 = vpop.f32.mrb[0].mxu0
    %283 = vmatprep.mubr.bf16.mxu0 0
    %284 = vmatmul.mubr.bf16.gmra.mrb[0].mxu0 %v180
    %v285 = vpop.f32.mrb[0].mxu0
    %v286 = vadd.f32 %v146, %v285
    %v287 = vpop.f32.mrb[0].mxu0
    %v288 = vpop.f32.mrb[0].mxu0
    %v289 = vadd.f32 %v146, %v288
    %v290 = vpop.f32.mrb[0].mxu0
    %291 = vmatprep.mubr.bf16.mxu0 0
    %292 = vmatmul.mubr.bf16.gmra.mrb[0].mxu0 %v181
    %v293 = vpop.f32.mrb[0].mxu0
    %v294 = vadd.f32 %v146, %v293
    %v295 = vpop.f32.mrb[0].mxu0
    %v296 = vpop.f32.mrb[0].mxu0
    %v297 = vadd.f32 %v146, %v296
    %v298 = vpop.f32.mrb[0].mxu0
    %299 = vmatprep.mubr.bf16.mxu0 0
    %300 = vmatmul.mubr.bf16.gmra.mrb[0].mxu0 %v182
    %v301 = vpop.f32.mrb[0].mxu0
    %v302 = vadd.f32 %v146, %v301
    %v303 = vpop.f32.mrb[0].mxu0
    %v304 = vpop.f32.mrb[0].mxu0
    %v305 = vadd.f32 %v146, %v304
    %v306 = vpop.f32.mrb[0].mxu0
    %307 = vmatprep.mubr.bf16.mxu0 0
    %308 = vmatmul.mubr.bf16.gmra.mrb[0].mxu0 %v183
    %v309 = vpop.f32.mrb[0].mxu0
    %v310 = vadd.f32 %v146, %v309
    %v311 = vpop.f32.mrb[0].mxu0
    %v312 = vpop.f32.mrb[0].mxu0
    %v313 = vadd.f32 %v146, %v312
    %v314 = vpop.f32.mrb[0].mxu0
    %315 = vmatprep.mubr.bf16.mxu0 0
    %316 = vmatmul.mubr.bf16.gmra.mrb[0].mxu0 %v184
    %v317 = vpop.f32.mrb[0].mxu0
    %v318 = vadd.f32 %v146, %v317
    %v319 = vpop.f32.mrb[0].mxu0
    %v320 = vpop.f32.mrb[0].mxu0
    %v321 = vadd.f32 %v146, %v320
    %v322 = vpop.f32.mrb[0].mxu0
    %323 = vmatprep.mubr.bf16.mxu0 0
    %324 = vmatmul.mubr.bf16.gmra.mrb[0].mxu0 %v185
    %v325 = vpop.f32.mrb[0].mxu0
    %v326 = vadd.f32 %v146, %v325
    %v327 = vpop.f32.mrb[0].mxu0
    %v328 = vpop.f32.mrb[0].mxu0
    %v329 = vadd.f32 %v146, %v328
    %v330 = vpop.f32.mrb[0].mxu0
    %331 = vmatprep.mubr.bf16.mxu0 0
    %332 = vmatmul.mubr.bf16.gmra.mrb[0].mxu0 %v186
    %v333 = vpop.f32.mrb[0].mxu0
    %v334 = vadd.f32 %v146, %v333
    %v335 = vpop.f32.mrb[0].mxu0
    %v336 = vpop.f32.mrb[0].mxu0
    %v337 = vadd.f32 %v146, %v336
    %v338 = vpop.f32.mrb[0].mxu0
    %339 = vdwg.mxu0
    %vm340 = vcmp.gt.f32.partialorder %v278, 0.0
    %vm341 = vcmp.gt.f32.partialorder %v281, 0.0
    %vm342 = vcmp.gt.f32.partialorder %v286, 0.0
    %vm343 = vcmp.gt.f32.partialorder %v289, 0.0
    %vm344 = vcmp.gt.f32.partialorder %v294, 0.0
    %vm345 = vcmp.gt.f32.partialorder %v297, 0.0
    %vm346 = vcmp.gt.f32.partialorder %v302, 0.0
    %vm347 = vcmp.gt.f32.partialorder %v305, 0.0
    %vm348 = vcmp.gt.f32.partialorder %v310, 0.0
    %vm349 = vcmp.gt.f32.partialorder %v313, 0.0
    %vm350 = vcmp.gt.f32.partialorder %v318, 0.0
    %vm351 = vcmp.gt.f32.partialorder %v321, 0.0
    %vm352 = vcmp.gt.f32.partialorder %v326, 0.0
    %vm353 = vcmp.gt.f32.partialorder %v329, 0.0
    %vm354 = vcmp.gt.f32.partialorder %v334, 0.0
    %vm355 = vcmp.gt.f32.partialorder %v337, 0.0
    %v356 = vmul.f32 %v278, 0.2
    %v357 = vmul.f32 %v281, 0.2
    %v358 = vmul.f32 %v286, 0.2
    %v359 = vmul.f32 %v289, 0.2
    %v360 = vmul.f32 %v294, 0.2
    %v361 = vmul.f32 %v297, 0.2
    %v362 = vmul.f32 %v302, 0.2
    %v363 = vmul.f32 %v305, 0.2
    %v364 = vmul.f32 %v310, 0.2
    %v365 = vmul.f32 %v313, 0.2
    %v366 = vmul.f32 %v318, 0.2
    %v367 = vmul.f32 %v321, 0.2
    %v368 = vmul.f32 %v326, 0.2
    %v369 = vmul.f32 %v329, 0.2
    %v370 = vmul.f32 %v334, 0.2
    %v371 = vmul.f32 %v337, 0.2
    %v372 = vsel %vm340, %v278, %v356
    %v373 = vsel %vm341, %v281, %v357
    %v374 = vsel %vm342, %v286, %v358
    %v375 = vsel %vm343, %v289, %v359
    %v376 = vsel %vm344, %v294, %v360
    %v377 = vsel %vm345, %v297, %v361
    %v378 = vsel %vm346, %v302, %v362
    %v379 = vsel %vm347, %v305, %v363
    %v380 = vsel %vm348, %v310, %v364
    %v381 = vsel %vm349, %v313, %v365
    %v382 = vsel %vm350, %v318, %v366
    %v383 = vsel %vm351, %v321, %v367
    %v384 = vsel %vm352, %v326, %v368
    %v385 = vsel %vm353, %v329, %v369
    %v386 = vsel %vm354, %v334, %v370
    %v387 = vsel %vm355, %v337, %v371
    %v388 = vpack.c.bf16 %v373, %v372
    %v389 = vpack.c.bf16 %v375, %v374
    %v390 = vpack.c.bf16 %v377, %v376
    %v391 = vpack.c.bf16 %v379, %v378
    %v392 = vpack.c.bf16 %v381, %v380
    %v393 = vpack.c.bf16 %v383, %v382
    %v394 = vpack.c.bf16 %v385, %v384
    %v395 = vpack.c.bf16 %v387, %v386
    %v396 = vld [vmem:[%s4] sm:$0xf]
    %v397 = vld [vmem:[%s4 + $0x4] sm:$0xf]
    %v400 = vunpack.c.l.b16 %v396
    %v401 = vunpack.c.l.b16 %v397
    %v402 = vpack.c.b16 %v401, %v400
    %404 = vst [vmem:[#allocation2] sm:$0xff] %v402
    %v405 = vld [vmem:[%s4 + $0x8] sm:$0xf]
    %v406 = vld [vmem:[%s4 + $0xc] sm:$0xf]
    %v409 = vunpack.c.l.b16 %v405
    %v410 = vunpack.c.l.b16 %v406
    %v411 = vpack.c.b16 %v410, %v409
    %413 = vst [vmem:[#allocation2 + $0x40] sm:$0xff] %v411
    %v414 = vld [vmem:[%s4 + $0x10] sm:$0xf]
    %v415 = vld [vmem:[%s4 + $0x14] sm:$0xf]
    %v418 = vunpack.c.l.b16 %v414
    %v419 = vunpack.c.l.b16 %v415
    %v420 = vpack.c.b16 %v419, %v418
    %422 = vst [vmem:[#allocation2 + $0x80] sm:$0xff] %v420
    %v423 = vld [vmem:[%s4 + $0x18] sm:$0xf]
    %v424 = vld [vmem:[%s4 + $0x1c] sm:$0xf]
    %v427 = vunpack.c.l.b16 %v423
    %v428 = vunpack.c.l.b16 %v424
    %v429 = vpack.c.b16 %v428, %v427
    %431 = vst [vmem:[#allocation2 + $0xc0] sm:$0xff] %v429
    %v432 = vld [vmem:[%s4 + $0x20] sm:$0xf]
    %v433 = vld [vmem:[%s4 + $0x24] sm:$0xf]
    %v436 = vunpack.c.l.b16 %v432
    %v437 = vunpack.c.l.b16 %v433
    %v438 = vpack.c.b16 %v437, %v436
    %440 = vst [vmem:[#allocation2 + $0x100] sm:$0xff] %v438
    %v441 = vld [vmem:[%s4 + $0x28] sm:$0xf]
    %v442 = vld [vmem:[%s4 + $0x2c] sm:$0xf]
    %v445 = vunpack.c.l.b16 %v441
    %v446 = vunpack.c.l.b16 %v442
    %v447 = vpack.c.b16 %v446, %v445
    %449 = vst [vmem:[#allocation2 + $0x140] sm:$0xff] %v447
    %v450 = vld [vmem:[%s4 + $0x30] sm:$0xf]
    %v451 = vld [vmem:[%s4 + $0x34] sm:$0xf]
    %v454 = vunpack.c.l.b16 %v450
    %v455 = vunpack.c.l.b16 %v451
    %v456 = vpack.c.b16 %v455, %v454
    %458 = vst [vmem:[#allocation2 + $0x180] sm:$0xff] %v456
    %v459 = vld [vmem:[%s4 + $0x38] sm:$0xf]
    %v460 = vld [vmem:[%s4 + $0x3c] sm:$0xf]
    %v463 = vunpack.c.l.b16 %v459
    %v464 = vunpack.c.l.b16 %v460
    %v465 = vpack.c.b16 %v464, %v463
    %467 = vst [vmem:[#allocation2 + $0x1c0] sm:$0xff] %v465
    %v468 = vld [vmem:[%s4 + $0x40] sm:$0xf]
    %v469 = vld [vmem:[%s4 + $0x44] sm:$0xf]
    %v472 = vunpack.c.l.b16 %v468
    %v473 = vunpack.c.l.b16 %v469
    %v474 = vpack.c.b16 %v473, %v472
    %476 = vst [vmem:[#allocation2 + $0x200] sm:$0xff] %v474
    %v477 = vld [vmem:[%s3] sm:$0xf]
    %v478 = vld [vmem:[%s3 + $0x4] sm:$0xf]
    %v479 = vld [vmem:[%s3 + $0x8] sm:$0xf]
    %v480 = vld [vmem:[%s3 + $0xc] sm:$0xf]
    %v481 = vld [vmem:[%s3 + $0x10] sm:$0xf]
    %v482 = vld [vmem:[%s3 + $0x14] sm:$0xf]
    %v483 = vld [vmem:[%s3 + $0x18] sm:$0xf]
    %v484 = vld [vmem:[%s3 + $0x1c] sm:$0xf]
    %v485 = vld [vmem:[%s3 + $0x20] sm:$0xf]
    %v486 = vld [vmem:[%s3 + $0x24] sm:$0xf]
    %v487 = vld [vmem:[%s3 + $0x28] sm:$0xf]
    %v488 = vld [vmem:[%s3 + $0x2c] sm:$0xf]
    %v489 = vld [vmem:[%s3 + $0x30] sm:$0xf]
    %v490 = vld [vmem:[%s3 + $0x34] sm:$0xf]
    %v491 = vld [vmem:[%s3 + $0x38] sm:$0xf]
    %v492 = vld [vmem:[%s3 + $0x3c] sm:$0xf]
    %v493 = vld [vmem:[%s3 + $0x40] sm:$0xf]
    %v494 = vld [vmem:[%s3 + $0x44] sm:$0xf]
    %v495 = vld [vmem:[%s3 + $0x48] sm:$0xf]
    %v496 = vld [vmem:[%s3 + $0x4c] sm:$0xf]
    %v497 = vld [vmem:[%s3 + $0x50] sm:$0xf]
    %v498 = vld [vmem:[%s3 + $0x54] sm:$0xf]
    %v499 = vld [vmem:[%s3 + $0x58] sm:$0xf]
    %v500 = vld [vmem:[%s3 + $0x5c] sm:$0xf]
    %v501 = vld [vmem:[%s3 + $0x60] sm:$0xf]
    %v502 = vld [vmem:[%s3 + $0x64] sm:$0xf]
    %v503 = vld [vmem:[%s3 + $0x68] sm:$0xf]
    %v504 = vld [vmem:[%s3 + $0x6c] sm:$0xf]
    %v505 = vld [vmem:[%s3 + $0x70] sm:$0xf]
    %v506 = vld [vmem:[%s3 + $0x74] sm:$0xf]
    %v507 = vld [vmem:[%s3 + $0x78] sm:$0xf]
    %v508 = vld [vmem:[%s3 + $0x7c] sm:$0xf]
    %v509 = vld [vmem:[%s3 + $0x80] sm:$0xf]
    %v510 = vld [vmem:[%s3 + $0x84] sm:$0xf]
    %v511 = vld [vmem:[%s3 + $0x88] sm:$0xf]
    %v512 = vld [vmem:[%s3 + $0x8c] sm:$0xf]
    %v549 = vunpack.c.l.b16 %v477
    %v550 = vunpack.c.l.b16 %v478
    %v551 = vunpack.c.l.b16 %v479
    %v552 = vunpack.c.l.b16 %v480
    %v553 = vunpack.c.l.b16 %v481
    %v554 = vunpack.c.l.b16 %v482
    %v555 = vunpack.c.l.b16 %v483
    %v556 = vunpack.c.l.b16 %v484
    %v557 = vunpack.c.l.b16 %v485
    %v558 = vunpack.c.l.b16 %v486
    %v559 = vunpack.c.l.b16 %v487
    %v560 = vunpack.c.l.b16 %v488
    %v561 = vunpack.c.l.b16 %v489
    %v562 = vunpack.c.l.b16 %v490
    %v563 = vunpack.c.l.b16 %v491
    %v564 = vunpack.c.l.b16 %v492
    %v565 = vunpack.c.l.b16 %v493
    %v566 = vunpack.c.l.b16 %v494
    %v567 = vunpack.c.l.b16 %v495
    %v568 = vunpack.c.l.b16 %v496
    %v569 = vunpack.c.l.b16 %v497
    %v570 = vunpack.c.l.b16 %v498
    %v571 = vunpack.c.l.b16 %v499
    %v572 = vunpack.c.l.b16 %v500
    %v573 = vunpack.c.l.b16 %v501
    %v574 = vunpack.c.l.b16 %v502
    %v575 = vunpack.c.l.b16 %v503
    %v576 = vunpack.c.l.b16 %v504
    %v577 = vunpack.c.l.b16 %v505
    %v578 = vunpack.c.l.b16 %v506
    %v579 = vunpack.c.l.b16 %v507
    %v580 = vunpack.c.l.b16 %v508
    %v581 = vunpack.c.l.b16 %v509
    %v582 = vunpack.c.l.b16 %v510
    %v583 = vunpack.c.l.b16 %v511
    %v584 = vunpack.c.l.b16 %v512
    %v585 = vpack.c.b16 %v550, %v549
    %v586 = vpack.c.b16 %v552, %v551
    %v587 = vpack.c.b16 %v554, %v553
    %v588 = vpack.c.b16 %v556, %v555
    %v589 = vpack.c.b16 %v558, %v557
    %v590 = vpack.c.b16 %v560, %v559
    %v591 = vpack.c.b16 %v562, %v561
    %v592 = vpack.c.b16 %v564, %v563
    %v593 = vpack.c.b16 %v566, %v565
    %v594 = vpack.c.b16 %v568, %v567
    %v595 = vpack.c.b16 %v570, %v569
    %v596 = vpack.c.b16 %v572, %v571
    %v597 = vpack.c.b16 %v574, %v573
    %v598 = vpack.c.b16 %v576, %v575
    %v599 = vpack.c.b16 %v578, %v577
    %v600 = vpack.c.b16 %v580, %v579
    %v601 = vpack.c.b16 %v582, %v581
    %v602 = vpack.c.b16 %v584, %v583
    %621 = vmatprep.subr.bf16.mxu0 0
    %622 = vmatpush1.bf16.msra.mxu0 %v388
    %623 = vmatprep.subr.bf16.mxu0 0
    %624 = vmatpush1.bf16.msra.mxu0 %v389
    %625 = vmatprep.subr.bf16.mxu0 0
    %626 = vmatpush1.bf16.msra.mxu0 %v390
    %627 = vmatprep.subr.bf16.mxu0 0
    %628 = vmatpush1.bf16.msra.mxu0 %v391
    %629 = vmatprep.subr.bf16.mxu0 0
    %630 = vmatpush1.bf16.msra.mxu0 %v392
    %631 = vmatprep.subr.bf16.mxu0 0
    %632 = vmatpush1.bf16.msra.mxu0 %v393
    %633 = vmatprep.subr.bf16.mxu0 0
    %634 = vmatpush1.bf16.msra.mxu0 %v394
    %635 = vmatprep.subr.bf16.mxu0 0
    %636 = vmatpush1.bf16.msra.mxu0 %v395
    %637 = vmatprep.subr.bf16.mxu0 0
    %638 = vmatpush1.bf16.msra.mxu0 0
    %639 = vmatprep.subr.bf16.mxu0 0
    %640 = vmatpush1.bf16.msra.mxu0 0
    %641 = vmatprep.subr.bf16.mxu0 0
    %642 = vmatpush1.bf16.msra.mxu0 0
    %643 = vmatprep.subr.bf16.mxu0 0
    %644 = vmatpush1.bf16.msra.mxu0 0
    %645 = vmatprep.subr.bf16.mxu0 0
    %646 = vmatpush1.bf16.msra.mxu0 0
    %647 = vmatprep.subr.bf16.mxu0 0
    %648 = vmatpush1.bf16.msra.mxu0 0
    %649 = vmatprep.subr.bf16.mxu0 0
    %650 = vmatpush1.bf16.msra.mxu0 0
    %651 = vmatprep.subr.bf16.mxu0 0
    %652 = vmatpush1.bf16.msra.mxu0 0
    %653 = vmatprep.mubr.bf16.mxu0 0
    %654 = vmatmul.mubr.bf16.gmra.mrb[0].mxu0 %v585
    %v655 = vpop.f32.mrb[0].mxu0
    %v656 = vadd.f32 0.0, %v655
    %v657 = vpop.f32.mrb[0].mxu0
    %v658 = vpop.f32.mrb[0].mxu0
    %v659 = vadd.f32 0.0, %v658
    %v660 = vpop.f32.mrb[0].mxu0
    %661 = vmatprep.mubr.bf16.mxu0 0
    %662 = vmatmul.mubr.bf16.gmra.mrb[0].mxu0 %v586
    %v663 = vpop.f32.mrb[0].mxu0
    %v664 = vadd.f32 0.0, %v663
    %v665 = vpop.f32.mrb[0].mxu0
    %v666 = vpop.f32.mrb[0].mxu0
    %v667 = vadd.f32 0.0, %v666
    %v668 = vpop.f32.mrb[0].mxu0
    %669 = vmatprep.mubr.bf16.mxu0 0
    %670 = vmatmul.mubr.bf16.gmra.mrb[0].mxu0 %v587
    %v671 = vpop.f32.mrb[0].mxu0
    %v672 = vadd.f32 0.0, %v671
    %v673 = vpop.f32.mrb[0].mxu0
    %v674 = vpop.f32.mrb[0].mxu0
    %v675 = vadd.f32 0.0, %v674
    %v676 = vpop.f32.mrb[0].mxu0
    %677 = vmatprep.mubr.bf16.mxu0 0
    %678 = vmatmul.mubr.bf16.gmra.mrb[0].mxu0 %v588
    %v679 = vpop.f32.mrb[0].mxu0
    %v680 = vadd.f32 0.0, %v679
    %v681 = vpop.f32.mrb[0].mxu0
    %v682 = vpop.f32.mrb[0].mxu0
    %v683 = vadd.f32 0.0, %v682
    %v684 = vpop.f32.mrb[0].mxu0
    %685 = vmatprep.mubr.bf16.mxu0 0
    %686 = vmatmul.mubr.bf16.gmra.mrb[0].mxu0 %v589
    %v687 = vpop.f32.mrb[0].mxu0
    %v688 = vadd.f32 0.0, %v687
    %v689 = vpop.f32.mrb[0].mxu0
    %v690 = vpop.f32.mrb[0].mxu0
    %v691 = vadd.f32 0.0, %v690
    %v692 = vpop.f32.mrb[0].mxu0
    %693 = vmatprep.mubr.bf16.mxu0 0
    %694 = vmatmul.mubr.bf16.gmra.mrb[0].mxu0 %v590
    %v695 = vpop.f32.mrb[0].mxu0
    %v696 = vadd.f32 0.0, %v695
    %v697 = vpop.f32.mrb[0].mxu0
    %v698 = vpop.f32.mrb[0].mxu0
    %v699 = vadd.f32 0.0, %v698
    %v700 = vpop.f32.mrb[0].mxu0
    %701 = vmatprep.mubr.bf16.mxu0 0
    %702 = vmatmul.mubr.bf16.gmra.mrb[0].mxu0 %v591
    %v703 = vpop.f32.mrb[0].mxu0
    %v704 = vadd.f32 0.0, %v703
    %v705 = vpop.f32.mrb[0].mxu0
    %v706 = vpop.f32.mrb[0].mxu0
    %v707 = vadd.f32 0.0, %v706
    %v708 = vpop.f32.mrb[0].mxu0
    %709 = vmatprep.mubr.bf16.mxu0 0
    %710 = vmatmul.mubr.bf16.gmra.mrb[0].mxu0 %v592
    %v711 = vpop.f32.mrb[0].mxu0
    %v712 = vadd.f32 0.0, %v711
    %v713 = vpop.f32.mrb[0].mxu0
    %v714 = vpop.f32.mrb[0].mxu0
    %v715 = vadd.f32 0.0, %v714
    %v716 = vpop.f32.mrb[0].mxu0
    %717 = vmatprep.mubr.bf16.mxu0 0
    %718 = vmatmul.mubr.bf16.gmra.mrb[0].mxu0 %v593
    %v719 = vpop.f32.mrb[0].mxu0
    %v720 = vadd.f32 0.0, %v719
    %v721 = vpop.f32.mrb[0].mxu0
    %v722 = vpop.f32.mrb[0].mxu0
    %v723 = vadd.f32 0.0, %v722
    %v724 = vpop.f32.mrb[0].mxu0
    %725 = vmatprep.mubr.bf16.mxu0 0
    %726 = vmatmul.mubr.bf16.gmra.mrb[0].mxu0 %v594
    %v727 = vpop.f32.mrb[0].mxu0
    %v728 = vadd.f32 0.0, %v727
    %v729 = vpop.f32.mrb[0].mxu0
    %v730 = vpop.f32.mrb[0].mxu0
    %v731 = vadd.f32 0.0, %v730
    %v732 = vpop.f32.mrb[0].mxu0
    %733 = vmatprep.mubr.bf16.mxu0 0
    %734 = vmatmul.mubr.bf16.gmra.mrb[0].mxu0 %v595
    %v735 = vpop.f32.mrb[0].mxu0
    %v736 = vadd.f32 0.0, %v735
    %v737 = vpop.f32.mrb[0].mxu0
    %v738 = vpop.f32.mrb[0].mxu0
    %v739 = vadd.f32 0.0, %v738
    %v740 = vpop.f32.mrb[0].mxu0
    %741 = vmatprep.mubr.bf16.mxu0 0
    %742 = vmatmul.mubr.bf16.gmra.mrb[0].mxu0 %v596
    %v743 = vpop.f32.mrb[0].mxu0
    %v744 = vadd.f32 0.0, %v743
    %v745 = vpop.f32.mrb[0].mxu0
    %v746 = vpop.f32.mrb[0].mxu0
    %v747 = vadd.f32 0.0, %v746
    %v748 = vpop.f32.mrb[0].mxu0
    %749 = vmatprep.mubr.bf16.mxu0 0
    %750 = vmatmul.mubr.bf16.gmra.mrb[0].mxu0 %v597
    %v751 = vpop.f32.mrb[0].mxu0
    %v752 = vadd.f32 0.0, %v751
    %v753 = vpop.f32.mrb[0].mxu0
    %v754 = vpop.f32.mrb[0].mxu0
    %v755 = vadd.f32 0.0, %v754
    %v756 = vpop.f32.mrb[0].mxu0
    %757 = vmatprep.mubr.bf16.mxu0 0
    %758 = vmatmul.mubr.bf16.gmra.mrb[0].mxu0 %v598
    %v759 = vpop.f32.mrb[0].mxu0
    %v760 = vadd.f32 0.0, %v759
    %v761 = vpop.f32.mrb[0].mxu0
    %v762 = vpop.f32.mrb[0].mxu0
    %v763 = vadd.f32 0.0, %v762
    %v764 = vpop.f32.mrb[0].mxu0
    %765 = vmatprep.mubr.bf16.mxu0 0
    %766 = vmatmul.mubr.bf16.gmra.mrb[0].mxu0 %v599
    %v767 = vpop.f32.mrb[0].mxu0
    %v768 = vadd.f32 0.0, %v767
    %v769 = vpop.f32.mrb[0].mxu0
    %v770 = vpop.f32.mrb[0].mxu0
    %v771 = vadd.f32 0.0, %v770
    %v772 = vpop.f32.mrb[0].mxu0
    %773 = vmatprep.mubr.bf16.mxu0 0
    %774 = vmatmul.mubr.bf16.gmra.mrb[0].mxu0 %v600
    %v775 = vpop.f32.mrb[0].mxu0
    %v776 = vadd.f32 0.0, %v775
    %v777 = vpop.f32.mrb[0].mxu0
    %v778 = vpop.f32.mrb[0].mxu0
    %v779 = vadd.f32 0.0, %v778
    %v780 = vpop.f32.mrb[0].mxu0
    %781 = vmatprep.mubr.bf16.mxu0 0
    %782 = vmatmul.mubr.bf16.gmra.mrb[0].mxu0 %v601
    %v783 = vpop.f32.mrb[0].mxu0
    %v784 = vadd.f32 0.0, %v783
    %v785 = vpop.f32.mrb[0].mxu0
    %v786 = vpop.f32.mrb[0].mxu0
    %v787 = vadd.f32 0.0, %v786
    %v788 = vpop.f32.mrb[0].mxu0
    %789 = vmatprep.mubr.bf16.mxu0 0
    %790 = vmatmul.mubr.bf16.gmra.mrb[0].mxu0 %v602
    %v791 = vpop.f32.mrb[0].mxu0
    %v792 = vadd.f32 0.0, %v791
    %v793 = vpop.f32.mrb[0].mxu0
    %v794 = vpop.f32.mrb[0].mxu0
    %v795 = vadd.f32 0.0, %v794
    %v796 = vpop.f32.mrb[0].mxu0
    %797 = vdwg.mxu0
    %v798 = vpack.c.bf16 %v659, %v656
    %v799 = vpack.c.bf16 %v667, %v664
    %v800 = vld [vmem:[#allocation2] sm:$0xff]
    %v801 = vld [vmem:[#allocation2 + $0x8] sm:$0xff]
    %v802 = vld [vmem:[#allocation2 + $0x10] sm:$0xff]
    %v803 = vld [vmem:[#allocation2 + $0x18] sm:$0xff]
    %v804 = vld [vmem:[#allocation2 + $0x20] sm:$0xff]
    %v805 = vld [vmem:[#allocation2 + $0x28] sm:$0xff]
    %v806 = vld [vmem:[#allocation2 + $0x30] sm:$0xff]
    %v807 = vld [vmem:[#allocation2 + $0x38] sm:$0xff]
    %v808 = vpack.c.bf16 %v675, %v672
    %v809 = vpack.c.bf16 %v683, %v680
    %v810 = vld [vmem:[#allocation2 + $0x40] sm:$0xff]
    %v811 = vld [vmem:[#allocation2 + $0x48] sm:$0xff]
    %v812 = vld [vmem:[#allocation2 + $0x50] sm:$0xff]
    %v813 = vld [vmem:[#allocation2 + $0x58] sm:$0xff]
    %v814 = vld [vmem:[#allocation2 + $0x60] sm:$0xff]
    %v815 = vld [vmem:[#allocation2 + $0x68] sm:$0xff]
    %v816 = vld [vmem:[#allocation2 + $0x70] sm:$0xff]
    %v817 = vld [vmem:[#allocation2 + $0x78] sm:$0xff]
    %818 = vmatprep.subr.bf16.mxu0 0
    %819 = vmatpush1.bf16.msra.mxu0 %v810
    %820 = vmatprep.subr.bf16.mxu0 0
    %821 = vmatpush1.bf16.msra.mxu0 %v811
    %822 = vmatprep.subr.bf16.mxu0 0
    %823 = vmatpush1.bf16.msra.mxu0 %v812
    %824 = vmatprep.subr.bf16.mxu0 0
    %825 = vmatpush1.bf16.msra.mxu0 %v813
    %826 = vmatprep.subr.bf16.mxu0 0
    %827 = vmatpush1.bf16.msra.mxu0 %v814
    %828 = vmatprep.subr.bf16.mxu0 0
    %829 = vmatpush1.bf16.msra.mxu0 %v815
    %830 = vmatprep.subr.bf16.mxu0 0
    %831 = vmatpush1.bf16.msra.mxu0 %v816
    %832 = vmatprep.subr.bf16.mxu0 0
    %833 = vmatpush1.bf16.msra.mxu0 %v817
    %834 = vmatprep.subr.bf16.mxu0 0
    %835 = vmatpush1.bf16.msra.mxu0 0
    %836 = vmatprep.subr.bf16.mxu0 0
    %837 = vmatpush1.bf16.msra.mxu0 0
    %838 = vmatprep.subr.bf16.mxu0 0
    %839 = vmatpush1.bf16.msra.mxu0 0
    %840 = vmatprep.subr.bf16.mxu0 0
    %841 = vmatpush1.bf16.msra.mxu0 0
    %842 = vmatprep.subr.bf16.mxu0 0
    %843 = vmatpush1.bf16.msra.mxu0 0
    %844 = vmatprep.subr.bf16.mxu0 0
    %845 = vmatpush1.bf16.msra.mxu0 0
    %846 = vmatprep.subr.bf16.mxu0 0
    %847 = vmatpush1.bf16.msra.mxu0 0
    %848 = vmatprep.subr.bf16.mxu0 0
    %849 = vmatpush1.bf16.msra.mxu0 0
    %850 = vmatprep.mubr.bf16.mxu0 0
    %851 = vmatmul.mubr.bf16.gmra.mrb[0].mxu0 %v808
    %v852 = vpop.f32.mrb[0].mxu0
    %v853 = vadd.f32 0.0, %v852
    %v854 = vpop.f32.mrb[0].mxu0
    %v855 = vpop.f32.mrb[0].mxu0
    %v856 = vadd.f32 0.0, %v855
    %v857 = vpop.f32.mrb[0].mxu0
    %858 = vmatprep.mubr.bf16.mxu0 0
    %859 = vmatmul.mubr.bf16.gmra.mrb[0].mxu0 %v809
    %v860 = vpop.f32.mrb[0].mxu0
    %v861 = vadd.f32 0.0, %v860
    %v862 = vpop.f32.mrb[0].mxu0
    %v863 = vpop.f32.mrb[0].mxu0
    %v864 = vadd.f32 0.0, %v863
    %v865 = vpop.f32.mrb[0].mxu0
    %866 = vdwg.mxu0
    %v867 = vpack.c.bf16 %v691, %v688
    %v868 = vpack.c.bf16 %v699, %v696
    %v869 = vld [vmem:[#allocation2 + $0x80] sm:$0xff]
    %v870 = vld [vmem:[#allocation2 + $0x88] sm:$0xff]
    %v871 = vld [vmem:[#allocation2 + $0x90] sm:$0xff]
    %v872 = vld [vmem:[#allocation2 + $0x98] sm:$0xff]
    %v873 = vld [vmem:[#allocation2 + $0xa0] sm:$0xff]
    %v874 = vld [vmem:[#allocation2 + $0xa8] sm:$0xff]
    %v875 = vld [vmem:[#allocation2 + $0xb0] sm:$0xff]
    %v876 = vld [vmem:[#allocation2 + $0xb8] sm:$0xff]
    %v877 = vpack.c.bf16 %v707, %v704
    %v878 = vpack.c.bf16 %v715, %v712
    %v879 = vld [vmem:[#allocation2 + $0xc0] sm:$0xff]
    %v880 = vld [vmem:[#allocation2 + $0xc8] sm:$0xff]
    %v881 = vld [vmem:[#allocation2 + $0xd0] sm:$0xff]
    %v882 = vld [vmem:[#allocation2 + $0xd8] sm:$0xff]
    %v883 = vld [vmem:[#allocation2 + $0xe0] sm:$0xff]
    %v884 = vld [vmem:[#allocation2 + $0xe8] sm:$0xff]
    %v885 = vld [vmem:[#allocation2 + $0xf0] sm:$0xff]
    %v886 = vld [vmem:[#allocation2 + $0xf8] sm:$0xff]
    %887 = vmatprep.subr.bf16.mxu0 0
    %888 = vmatpush1.bf16.msra.mxu0 %v879
    %889 = vmatprep.subr.bf16.mxu0 0
    %890 = vmatpush1.bf16.msra.mxu0 %v880
    %891 = vmatprep.subr.bf16.mxu0 0
    %892 = vmatpush1.bf16.msra.mxu0 %v881
    %893 = vmatprep.subr.bf16.mxu0 0
    %894 = vmatpush1.bf16.msra.mxu0 %v882
    %895 = vmatprep.subr.bf16.mxu0 0
    %896 = vmatpush1.bf16.msra.mxu0 %v883
    %897 = vmatprep.subr.bf16.mxu0 0
    %898 = vmatpush1.bf16.msra.mxu0 %v884
    %899 = vmatprep.subr.bf16.mxu0 0
    %900 = vmatpush1.bf16.msra.mxu0 %v885
    %901 = vmatprep.subr.bf16.mxu0 0
    %902 = vmatpush1.bf16.msra.mxu0 %v886
    %903 = vmatprep.subr.bf16.mxu0 0
    %904 = vmatpush1.bf16.msra.mxu0 0
    %905 = vmatprep.subr.bf16.mxu0 0
    %906 = vmatpush1.bf16.msra.mxu0 0
    %907 = vmatprep.subr.bf16.mxu0 0
    %908 = vmatpush1.bf16.msra.mxu0 0
    %909 = vmatprep.subr.bf16.mxu0 0
    %910 = vmatpush1.bf16.msra.mxu0 0
    %911 = vmatprep.subr.bf16.mxu0 0
    %912 = vmatpush1.bf16.msra.mxu0 0
    %913 = vmatprep.subr.bf16.mxu0 0
    %914 = vmatpush1.bf16.msra.mxu0 0
    %915 = vmatprep.subr.bf16.mxu0 0
    %916 = vmatpush1.bf16.msra.mxu0 0
    %917 = vmatprep.subr.bf16.mxu0 0
    %918 = vmatpush1.bf16.msra.mxu0 0
    %919 = vmatprep.mubr.bf16.mxu0 0
    %920 = vmatmul.mubr.bf16.gmra.mrb[0].mxu0 %v877
    %v921 = vpop.f32.mrb[0].mxu0
    %v922 = vadd.f32 0.0, %v921
    %v923 = vpop.f32.mrb[0].mxu0
    %v924 = vpop.f32.mrb[0].mxu0
    %v925 = vadd.f32 0.0, %v924
    %v926 = vpop.f32.mrb[0].mxu0
    %927 = vmatprep.mubr.bf16.mxu0 0
    %928 = vmatmul.mubr.bf16.gmra.mrb[0].mxu0 %v878
    %v929 = vpop.f32.mrb[0].mxu0
    %v930 = vadd.f32 0.0, %v929
    %v931 = vpop.f32.mrb[0].mxu0
    %v932 = vpop.f32.mrb[0].mxu0
    %v933 = vadd.f32 0.0, %v932
    %v934 = vpop.f32.mrb[0].mxu0
    %935 = vdwg.mxu0
    %v936 = vpack.c.bf16 %v723, %v720
    %v937 = vpack.c.bf16 %v731, %v728
    %v938 = vld [vmem:[#allocation2 + $0x100] sm:$0xff]
    %v939 = vld [vmem:[#allocation2 + $0x108] sm:$0xff]
    %v940 = vld [vmem:[#allocation2 + $0x110] sm:$0xff]
    %v941 = vld [vmem:[#allocation2 + $0x118] sm:$0xff]
    %v942 = vld [vmem:[#allocation2 + $0x120] sm:$0xff]
    %v943 = vld [vmem:[#allocation2 + $0x128] sm:$0xff]
    %v944 = vld [vmem:[#allocation2 + $0x130] sm:$0xff]
    %v945 = vld [vmem:[#allocation2 + $0x138] sm:$0xff]
    %v946 = vpack.c.bf16 %v739, %v736
    %v947 = vpack.c.bf16 %v747, %v744
    %v948 = vld [vmem:[#allocation2 + $0x140] sm:$0xff]
    %v949 = vld [vmem:[#allocation2 + $0x148] sm:$0xff]
    %v950 = vld [vmem:[#allocation2 + $0x150] sm:$0xff]
    %v951 = vld [vmem:[#allocation2 + $0x158] sm:$0xff]
    %v952 = vld [vmem:[#allocation2 + $0x160] sm:$0xff]
    %v953 = vld [vmem:[#allocation2 + $0x168] sm:$0xff]
    %v954 = vld [vmem:[#allocation2 + $0x170] sm:$0xff]
    %v955 = vld [vmem:[#allocation2 + $0x178] sm:$0xff]
    %956 = vmatprep.subr.bf16.mxu0 0
    %957 = vmatpush1.bf16.msra.mxu0 %v948
    %958 = vmatprep.subr.bf16.mxu0 0
    %959 = vmatpush1.bf16.msra.mxu0 %v949
    %960 = vmatprep.subr.bf16.mxu0 0
    %961 = vmatpush1.bf16.msra.mxu0 %v950
    %962 = vmatprep.subr.bf16.mxu0 0
    %963 = vmatpush1.bf16.msra.mxu0 %v951
    %964 = vmatprep.subr.bf16.mxu0 0
    %965 = vmatpush1.bf16.msra.mxu0 %v952
    %966 = vmatprep.subr.bf16.mxu0 0
    %967 = vmatpush1.bf16.msra.mxu0 %v953
    %968 = vmatprep.subr.bf16.mxu0 0
    %969 = vmatpush1.bf16.msra.mxu0 %v954
    %970 = vmatprep.subr.bf16.mxu0 0
    %971 = vmatpush1.bf16.msra.mxu0 %v955
    %972 = vmatprep.subr.bf16.mxu0 0
    %973 = vmatpush1.bf16.msra.mxu0 0
    %974 = vmatprep.subr.bf16.mxu0 0
    %975 = vmatpush1.bf16.msra.mxu0 0
    %976 = vmatprep.subr.bf16.mxu0 0
    %977 = vmatpush1.bf16.msra.mxu0 0
    %978 = vmatprep.subr.bf16.mxu0 0
    %979 = vmatpush1.bf16.msra.mxu0 0
    %980 = vmatprep.subr.bf16.mxu0 0
    %981 = vmatpush1.bf16.msra.mxu0 0
    %982 = vmatprep.subr.bf16.mxu0 0
    %983 = vmatpush1.bf16.msra.mxu0 0
    %984 = vmatprep.subr.bf16.mxu0 0
    %985 = vmatpush1.bf16.msra.mxu0 0
    %986 = vmatprep.subr.bf16.mxu0 0
    %987 = vmatpush1.bf16.msra.mxu0 0
    %988 = vmatprep.mubr.bf16.mxu0 0
    %989 = vmatmul.mubr.bf16.gmra.mrb[0].mxu0 %v946
    %v990 = vpop.f32.mrb[0].mxu0
    %v991 = vadd.f32 0.0, %v990
    %v992 = vpop.f32.mrb[0].mxu0
    %v993 = vpop.f32.mrb[0].mxu0
    %v994 = vadd.f32 0.0, %v993
    %v995 = vpop.f32.mrb[0].mxu0
    %996 = vmatprep.mubr.bf16.mxu0 0
    %997 = vmatmul.mubr.bf16.gmra.mrb[0].mxu0 %v947
    %v998 = vpop.f32.mrb[0].mxu0
    %v999 = vadd.f32 0.0, %v998
    %v1000 = vpop.f32.mrb[0].mxu0
    %v1001 = vpop.f32.mrb[0].mxu0
    %v1002 = vadd.f32 0.0, %v1001
    %v1003 = vpop.f32.mrb[0].mxu0
    %1004 = vdwg.mxu0
    %v1005 = vpack.c.bf16 %v755, %v752
    %v1006 = vpack.c.bf16 %v763, %v760
    %v1007 = vld [vmem:[#allocation2 + $0x180] sm:$0xff]
    %v1008 = vld [vmem:[#allocation2 + $0x188] sm:$0xff]
    %v1009 = vld [vmem:[#allocation2 + $0x190] sm:$0xff]
    %v1010 = vld [vmem:[#allocation2 + $0x198] sm:$0xff]
    %v1011 = vld [vmem:[#allocation2 + $0x1a0] sm:$0xff]
    %v1012 = vld [vmem:[#allocation2 + $0x1a8] sm:$0xff]
    %v1013 = vld [vmem:[#allocation2 + $0x1b0] sm:$0xff]
    %v1014 = vld [vmem:[#allocation2 + $0x1b8] sm:$0xff]
    %v1015 = vpack.c.bf16 %v771, %v768
    %v1016 = vpack.c.bf16 %v779, %v776
    %v1017 = vld [vmem:[#allocation2 + $0x1c0] sm:$0xff]
    %v1018 = vld [vmem:[#allocation2 + $0x1c8] sm:$0xff]
    %v1019 = vld [vmem:[#allocation2 + $0x1d0] sm:$0xff]
    %v1020 = vld [vmem:[#allocation2 + $0x1d8] sm:$0xff]
    %v1021 = vld [vmem:[#allocation2 + $0x1e0] sm:$0xff]
    %v1022 = vld [vmem:[#allocation2 + $0x1e8] sm:$0xff]
    %v1023 = vld [vmem:[#allocation2 + $0x1f0] sm:$0xff]
    %v1024 = vld [vmem:[#allocation2 + $0x1f8] sm:$0xff]
    %1025 = vmatprep.subr.bf16.mxu0 0
    %1026 = vmatpush1.bf16.msra.mxu0 %v1017
    %1027 = vmatprep.subr.bf16.mxu0 0
    %1028 = vmatpush1.bf16.msra.mxu0 %v1018
    %1029 = vmatprep.subr.bf16.mxu0 0
    %1030 = vmatpush1.bf16.msra.mxu0 %v1019
    %1031 = vmatprep.subr.bf16.mxu0 0
    %1032 = vmatpush1.bf16.msra.mxu0 %v1020
    %1033 = vmatprep.subr.bf16.mxu0 0
    %1034 = vmatpush1.bf16.msra.mxu0 %v1021
    %1035 = vmatprep.subr.bf16.mxu0 0
    %1036 = vmatpush1.bf16.msra.mxu0 %v1022
    %1037 = vmatprep.subr.bf16.mxu0 0
    %1038 = vmatpush1.bf16.msra.mxu0 %v1023
    %1039 = vmatprep.subr.bf16.mxu0 0
    %1040 = vmatpush1.bf16.msra.mxu0 %v1024
    %1041 = vmatprep.subr.bf16.mxu0 0
    %1042 = vmatpush1.bf16.msra.mxu0 0
    %1043 = vmatprep.subr.bf16.mxu0 0
    %1044 = vmatpush1.bf16.msra.mxu0 0
    %1045 = vmatprep.subr.bf16.mxu0 0
    %1046 = vmatpush1.bf16.msra.mxu0 0
    %1047 = vmatprep.subr.bf16.mxu0 0
    %1048 = vmatpush1.bf16.msra.mxu0 0
    %1049 = vmatprep.subr.bf16.mxu0 0
    %1050 = vmatpush1.bf16.msra.mxu0 0
    %1051 = vmatprep.subr.bf16.mxu0 0
    %1052 = vmatpush1.bf16.msra.mxu0 0
    %1053 = vmatprep.subr.bf16.mxu0 0
    %1054 = vmatpush1.bf16.msra.mxu0 0
    %1055 = vmatprep.subr.bf16.mxu0 0
    %1056 = vmatpush1.bf16.msra.mxu0 0
    %1057 = vmatprep.mubr.bf16.mxu0 0
    %1058 = vmatmul.mubr.bf16.gmra.mrb[0].mxu0 %v1015
    %v1059 = vpop.f32.mrb[0].mxu0
    %v1060 = vadd.f32 0.0, %v1059
    %v1061 = vpop.f32.mrb[0].mxu0
    %v1062 = vpop.f32.mrb[0].mxu0
    %v1063 = vadd.f32 0.0, %v1062
    %v1064 = vpop.f32.mrb[0].mxu0
    %1065 = vmatprep.mubr.bf16.mxu0 0
    %1066 = vmatmul.mubr.bf16.gmra.mrb[0].mxu0 %v1016
    %v1067 = vpop.f32.mrb[0].mxu0
    %v1068 = vadd.f32 0.0, %v1067
    %v1069 = vpop.f32.mrb[0].mxu0
    %v1070 = vpop.f32.mrb[0].mxu0
    %v1071 = vadd.f32 0.0, %v1070
    %v1072 = vpop.f32.mrb[0].mxu0
    %1073 = vdwg.mxu0
    %v1074 = vpack.c.bf16 %v787, %v784
    %v1075 = vpack.c.bf16 %v795, %v792
    %v1076 = vld [vmem:[#allocation2 + $0x200] sm:$0xff]
    %v1077 = vld [vmem:[#allocation2 + $0x208] sm:$0xff]
    %v1078 = vld [vmem:[#allocation2 + $0x210] sm:$0xff]
    %v1079 = vld [vmem:[#allocation2 + $0x218] sm:$0xff]
    %v1080 = vld [vmem:[#allocation2 + $0x220] sm:$0xff]
    %v1081 = vld [vmem:[#allocation2 + $0x228] sm:$0xff]
    %v1082 = vld [vmem:[#allocation2 + $0x230] sm:$0xff]
    %v1083 = vld [vmem:[#allocation2 + $0x238] sm:$0xff]
    %1084 = vmatprep.subr.bf16.mxu0 0
    %1085 = vmatpush1.bf16.msra.mxu0 %v1076
    %1086 = vmatprep.subr.bf16.mxu0 0
    %1087 = vmatpush1.bf16.msra.mxu0 %v1077
    %1088 = vmatprep.subr.bf16.mxu0 0
    %1089 = vmatpush1.bf16.msra.mxu0 %v1078
    %1090 = vmatprep.subr.bf16.mxu0 0
    %1091 = vmatpush1.bf16.msra.mxu0 %v1079
    %1092 = vmatprep.subr.bf16.mxu0 0
    %1093 = vmatpush1.bf16.msra.mxu0 %v1080
    %1094 = vmatprep.subr.bf16.mxu0 0
    %1095 = vmatpush1.bf16.msra.mxu0 %v1081
    %1096 = vmatprep.subr.bf16.mxu0 0
    %1097 = vmatpush1.bf16.msra.mxu0 %v1082
    %1098 = vmatprep.subr.bf16.mxu0 0
    %1099 = vmatpush1.bf16.msra.mxu0 %v1083
    %1100 = vmatprep.subr.bf16.mxu0 0
    %1101 = vmatpush1.bf16.msra.mxu0 0
    %1102 = vmatprep.subr.bf16.mxu0 0
    %1103 = vmatpush1.bf16.msra.mxu0 0
    %1104 = vmatprep.subr.bf16.mxu0 0
    %1105 = vmatpush1.bf16.msra.mxu0 0
    %1106 = vmatprep.subr.bf16.mxu0 0
    %1107 = vmatpush1.bf16.msra.mxu0 0
    %1108 = vmatprep.subr.bf16.mxu0 0
    %1109 = vmatpush1.bf16.msra.mxu0 0
    %1110 = vmatprep.subr.bf16.mxu0 0
    %1111 = vmatpush1.bf16.msra.mxu0 0
    %1112 = vmatprep.subr.bf16.mxu0 0
    %1113 = vmatpush1.bf16.msra.mxu0 0
    %1114 = vmatprep.subr.bf16.mxu0 0
    %1115 = vmatpush1.bf16.msra.mxu0 0
    %1116 = vmatprep.mubr.bf16.mxu0 0
    %1117 = vmatmul.mubr.bf16.gmra.mrb[0].mxu0 %v1074
    %v1118 = vpop.f32.mrb[0].mxu0
    %v1119 = vadd.f32 0.0, %v1118
    %v1120 = vpop.f32.mrb[0].mxu0
    %v1121 = vpop.f32.mrb[0].mxu0
    %v1122 = vadd.f32 0.0, %v1121
    %v1123 = vpop.f32.mrb[0].mxu0
    %1124 = vmatprep.mubr.bf16.mxu0 0
    %1125 = vmatmul.mubr.bf16.gmra.mrb[0].mxu0 %v1075
    %v1126 = vpop.f32.mrb[0].mxu0
    %v1127 = vadd.f32 0.0, %v1126
    %v1128 = vpop.f32.mrb[0].mxu0
    %v1129 = vpop.f32.mrb[0].mxu0
    %v1130 = vadd.f32 0.0, %v1129
    %v1131 = vpop.f32.mrb[0].mxu0
    %1132 = vdwg.mxu0
    %1133 = vmatprep.subr.bf16.mxu0 0
    %1134 = vmatpush1.bf16.msra.mxu0 %v800
    %1135 = vmatprep.subr.bf16.mxu0 0
    %1136 = vmatpush1.bf16.msra.mxu0 %v801
    %1137 = vmatprep.subr.bf16.mxu0 0
    %1138 = vmatpush1.bf16.msra.mxu0 %v802
    %1139 = vmatprep.subr.bf16.mxu0 0
    %1140 = vmatpush1.bf16.msra.mxu0 %v803
    %1141 = vmatprep.subr.bf16.mxu0 0
    %1142 = vmatpush1.bf16.msra.mxu0 %v804
    %1143 = vmatprep.subr.bf16.mxu0 0
    %1144 = vmatpush1.bf16.msra.mxu0 %v805
    %1145 = vmatprep.subr.bf16.mxu0 0
    %1146 = vmatpush1.bf16.msra.mxu0 %v806
    %1147 = vmatprep.subr.bf16.mxu0 0
    %1148 = vmatpush1.bf16.msra.mxu0 %v807
    %1149 = vmatprep.subr.bf16.mxu0 0
    %1150 = vmatpush1.bf16.msra.mxu0 0
    %1151 = vmatprep.subr.bf16.mxu0 0
    %1152 = vmatpush1.bf16.msra.mxu0 0
    %1153 = vmatprep.subr.bf16.mxu0 0
    %1154 = vmatpush1.bf16.msra.mxu0 0
    %1155 = vmatprep.subr.bf16.mxu0 0
    %1156 = vmatpush1.bf16.msra.mxu0 0
    %1157 = vmatprep.subr.bf16.mxu0 0
    %1158 = vmatpush1.bf16.msra.mxu0 0
    %1159 = vmatprep.subr.bf16.mxu0 0
    %1160 = vmatpush1.bf16.msra.mxu0 0
    %1161 = vmatprep.subr.bf16.mxu0 0
    %1162 = vmatpush1.bf16.msra.mxu0 0
    %1163 = vmatprep.subr.bf16.mxu0 0
    %1164 = vmatpush1.bf16.msra.mxu0 0
    %1165 = vmatprep.mubr.bf16.mxu0 0
    %1166 = vmatmul.mubr.bf16.gmra.mrb[0].mxu0 %v798
    %v1167 = vpop.f32.mrb[0].mxu0
    %v1168 = vadd.f32 %v853, %v1167
    %v1169 = vpop.f32.mrb[0].mxu0
    %v1170 = vpop.f32.mrb[0].mxu0
    %v1171 = vadd.f32 %v856, %v1170
    %v1172 = vpop.f32.mrb[0].mxu0
    %1173 = vmatprep.mubr.bf16.mxu0 0
    %1174 = vmatmul.mubr.bf16.gmra.mrb[0].mxu0 %v799
    %v1175 = vpop.f32.mrb[0].mxu0
    %v1176 = vadd.f32 %v861, %v1175
    %v1177 = vpop.f32.mrb[0].mxu0
    %v1178 = vpop.f32.mrb[0].mxu0
    %v1179 = vadd.f32 %v864, %v1178
    %v1180 = vpop.f32.mrb[0].mxu0
    %1181 = vdwg.mxu0
    %1182 = vmatprep.subr.bf16.mxu0 0
    %1183 = vmatpush1.bf16.msra.mxu0 %v869
    %1184 = vmatprep.subr.bf16.mxu0 0
    %1185 = vmatpush1.bf16.msra.mxu0 %v870
    %1186 = vmatprep.subr.bf16.mxu0 0
    %1187 = vmatpush1.bf16.msra.mxu0 %v871
    %1188 = vmatprep.subr.bf16.mxu0 0
    %1189 = vmatpush1.bf16.msra.mxu0 %v872
    %1190 = vmatprep.subr.bf16.mxu0 0
    %1191 = vmatpush1.bf16.msra.mxu0 %v873
    %1192 = vmatprep.subr.bf16.mxu0 0
    %1193 = vmatpush1.bf16.msra.mxu0 %v874
    %1194 = vmatprep.subr.bf16.mxu0 0
    %1195 = vmatpush1.bf16.msra.mxu0 %v875
    %1196 = vmatprep.subr.bf16.mxu0 0
    %1197 = vmatpush1.bf16.msra.mxu0 %v876
    %1198 = vmatprep.subr.bf16.mxu0 0
    %1199 = vmatpush1.bf16.msra.mxu0 0
    %1200 = vmatprep.subr.bf16.mxu0 0
    %1201 = vmatpush1.bf16.msra.mxu0 0
    %1202 = vmatprep.subr.bf16.mxu0 0
    %1203 = vmatpush1.bf16.msra.mxu0 0
    %1204 = vmatprep.subr.bf16.mxu0 0
    %1205 = vmatpush1.bf16.msra.mxu0 0
    %1206 = vmatprep.subr.bf16.mxu0 0
    %1207 = vmatpush1.bf16.msra.mxu0 0
    %1208 = vmatprep.subr.bf16.mxu0 0
    %1209 = vmatpush1.bf16.msra.mxu0 0
    %1210 = vmatprep.subr.bf16.mxu0 0
    %1211 = vmatpush1.bf16.msra.mxu0 0
    %1212 = vmatprep.subr.bf16.mxu0 0
    %1213 = vmatpush1.bf16.msra.mxu0 0
    %1214 = vmatprep.mubr.bf16.mxu0 0
    %1215 = vmatmul.mubr.bf16.gmra.mrb[0].mxu0 %v867
    %v1216 = vpop.f32.mrb[0].mxu0
    %v1217 = vadd.f32 %v922, %v1216
    %v1218 = vpop.f32.mrb[0].mxu0
    %v1219 = vpop.f32.mrb[0].mxu0
    %v1220 = vadd.f32 %v925, %v1219
    %v1221 = vpop.f32.mrb[0].mxu0
    %1222 = vmatprep.mubr.bf16.mxu0 0
    %1223 = vmatmul.mubr.bf16.gmra.mrb[0].mxu0 %v868
    %v1224 = vpop.f32.mrb[0].mxu0
    %v1225 = vadd.f32 %v930, %v1224
    %v1226 = vpop.f32.mrb[0].mxu0
    %v1227 = vpop.f32.mrb[0].mxu0
    %v1228 = vadd.f32 %v933, %v1227
    %v1229 = vpop.f32.mrb[0].mxu0
    %1230 = vdwg.mxu0
    %1231 = vmatprep.subr.bf16.mxu0 0
    %1232 = vmatpush1.bf16.msra.mxu0 %v938
    %1233 = vmatprep.subr.bf16.mxu0 0
    %1234 = vmatpush1.bf16.msra.mxu0 %v939
    %1235 = vmatprep.subr.bf16.mxu0 0
    %1236 = vmatpush1.bf16.msra.mxu0 %v940
    %1237 = vmatprep.subr.bf16.mxu0 0
    %1238 = vmatpush1.bf16.msra.mxu0 %v941
    %1239 = vmatprep.subr.bf16.mxu0 0
    %1240 = vmatpush1.bf16.msra.mxu0 %v942
    %1241 = vmatprep.subr.bf16.mxu0 0
    %1242 = vmatpush1.bf16.msra.mxu0 %v943
    %1243 = vmatprep.subr.bf16.mxu0 0
    %1244 = vmatpush1.bf16.msra.mxu0 %v944
    %1245 = vmatprep.subr.bf16.mxu0 0
    %1246 = vmatpush1.bf16.msra.mxu0 %v945
    %1247 = vmatprep.subr.bf16.mxu0 0
    %1248 = vmatpush1.bf16.msra.mxu0 0
    %1249 = vmatprep.subr.bf16.mxu0 0
    %1250 = vmatpush1.bf16.msra.mxu0 0
    %1251 = vmatprep.subr.bf16.mxu0 0
    %1252 = vmatpush1.bf16.msra.mxu0 0
    %1253 = vmatprep.subr.bf16.mxu0 0
    %1254 = vmatpush1.bf16.msra.mxu0 0
    %1255 = vmatprep.subr.bf16.mxu0 0
    %1256 = vmatpush1.bf16.msra.mxu0 0
    %1257 = vmatprep.subr.bf16.mxu0 0
    %1258 = vmatpush1.bf16.msra.mxu0 0
    %1259 = vmatprep.subr.bf16.mxu0 0
    %1260 = vmatpush1.bf16.msra.mxu0 0
    %1261 = vmatprep.subr.bf16.mxu0 0
    %1262 = vmatpush1.bf16.msra.mxu0 0
    %1263 = vmatprep.mubr.bf16.mxu0 0
    %1264 = vmatmul.mubr.bf16.gmra.mrb[0].mxu0 %v936
    %v1265 = vpop.f32.mrb[0].mxu0
    %v1266 = vadd.f32 %v991, %v1265
    %v1267 = vpop.f32.mrb[0].mxu0
    %v1268 = vpop.f32.mrb[0].mxu0
    %v1269 = vadd.f32 %v994, %v1268
    %v1270 = vpop.f32.mrb[0].mxu0
    %1271 = vmatprep.mubr.bf16.mxu0 0
    %1272 = vmatmul.mubr.bf16.gmra.mrb[0].mxu0 %v937
    %v1273 = vpop.f32.mrb[0].mxu0
    %v1274 = vadd.f32 %v999, %v1273
    %v1275 = vpop.f32.mrb[0].mxu0
    %v1276 = vpop.f32.mrb[0].mxu0
    %v1277 = vadd.f32 %v1002, %v1276
    %v1278 = vpop.f32.mrb[0].mxu0
    %1279 = vdwg.mxu0
    %1280 = vmatprep.subr.bf16.mxu0 0
    %1281 = vmatpush1.bf16.msra.mxu0 %v1007
    %1282 = vmatprep.subr.bf16.mxu0 0
    %1283 = vmatpush1.bf16.msra.mxu0 %v1008
    %1284 = vmatprep.subr.bf16.mxu0 0
    %1285 = vmatpush1.bf16.msra.mxu0 %v1009
    %1286 = vmatprep.subr.bf16.mxu0 0
    %1287 = vmatpush1.bf16.msra.mxu0 %v1010
    %1288 = vmatprep.subr.bf16.mxu0 0
    %1289 = vmatpush1.bf16.msra.mxu0 %v1011
    %1290 = vmatprep.subr.bf16.mxu0 0
    %1291 = vmatpush1.bf16.msra.mxu0 %v1012
    %1292 = vmatprep.subr.bf16.mxu0 0
    %1293 = vmatpush1.bf16.msra.mxu0 %v1013
    %1294 = vmatprep.subr.bf16.mxu0 0
    %1295 = vmatpush1.bf16.msra.mxu0 %v1014
    %1296 = vmatprep.subr.bf16.mxu0 0
    %1297 = vmatpush1.bf16.msra.mxu0 0
    %1298 = vmatprep.subr.bf16.mxu0 0
    %1299 = vmatpush1.bf16.msra.mxu0 0
    %1300 = vmatprep.subr.bf16.mxu0 0
    %1301 = vmatpush1.bf16.msra.mxu0 0
    %1302 = vmatprep.subr.bf16.mxu0 0
    %1303 = vmatpush1.bf16.msra.mxu0 0
    %1304 = vmatprep.subr.bf16.mxu0 0
    %1305 = vmatpush1.bf16.msra.mxu0 0
    %1306 = vmatprep.subr.bf16.mxu0 0
    %1307 = vmatpush1.bf16.msra.mxu0 0
    %1308 = vmatprep.subr.bf16.mxu0 0
    %1309 = vmatpush1.bf16.msra.mxu0 0
    %1310 = vmatprep.subr.bf16.mxu0 0
    %1311 = vmatpush1.bf16.msra.mxu0 0
    %1312 = vmatprep.mubr.bf16.mxu0 0
    %1313 = vmatmul.mubr.bf16.gmra.mrb[0].mxu0 %v1005
    %v1314 = vpop.f32.mrb[0].mxu0
    %v1315 = vadd.f32 %v1060, %v1314
    %v1316 = vpop.f32.mrb[0].mxu0
    %v1317 = vpop.f32.mrb[0].mxu0
    %v1318 = vadd.f32 %v1063, %v1317
    %v1319 = vpop.f32.mrb[0].mxu0
    %1320 = vmatprep.mubr.bf16.mxu0 0
    %1321 = vmatmul.mubr.bf16.gmra.mrb[0].mxu0 %v1006
    %v1322 = vpop.f32.mrb[0].mxu0
    %v1323 = vadd.f32 %v1068, %v1322
    %v1324 = vpop.f32.mrb[0].mxu0
    %v1325 = vpop.f32.mrb[0].mxu0
    %v1326 = vadd.f32 %v1071, %v1325
    %v1327 = vpop.f32.mrb[0].mxu0
    %1328 = vdwg.mxu0
    %v1329 = vadd.f32 %v1168, %v1217
    %v1330 = vadd.f32 %v1171, %v1220
    %v1331 = vadd.f32 %v1176, %v1225
    %v1332 = vadd.f32 %v1179, %v1228
    %v1333 = vadd.f32 %v1266, %v1315
    %v1334 = vadd.f32 %v1269, %v1318
    %v1335 = vadd.f32 %v1274, %v1323
    %v1336 = vadd.f32 %v1277, %v1326
    %v1337 = vadd.f32 %v1329, %v1333
    %v1338 = vadd.f32 %v1330, %v1334
    %v1339 = vadd.f32 %v1331, %v1335
    %v1340 = vadd.f32 %v1332, %v1336
    %v1341 = vadd.f32 %v1337, %v1119
    %v1342 = vadd.f32 %v1338, %v1122
    %v1343 = vadd.f32 %v1339, %v1127
    %v1344 = vadd.f32 %v1340, %v1130
    %v1345 = vlaneseq
    %v1346 = vshrl.u32 %v1345, 7
    %v1347 = vsub.s32 1, %v1346
    %v1348 = vrot.slane %v37, %v1347
    %v1349 = vadd.f32 %v1341, %v1348
    %v1350 = vadd.f32 %v1342, %v1348
    %v1351 = vadd.f32 %v1343, %v1348
    %v1352 = vadd.f32 %v1344, %v1348
    %vm1353 = vcmp.gt.f32.partialorder %v1349, 0.0
    %vm1354 = vcmp.gt.f32.partialorder %v1350, 0.0
    %vm1355 = vcmp.gt.f32.partialorder %v1351, 0.0
    %vm1356 = vcmp.gt.f32.partialorder %v1352, 0.0
    %v1357 = vmul.f32 %v1349, 0.2
    %v1358 = vmul.f32 %v1350, 0.2
    %v1359 = vmul.f32 %v1351, 0.2
    %v1360 = vmul.f32 %v1352, 0.2
    %v1361 = vsel %vm1353, %v1349, %v1357
    %v1362 = vsel %vm1354, %v1350, %v1358
    %v1363 = vsel %vm1355, %v1351, %v1359
    %v1364 = vsel %vm1356, %v1352, %v1360
    %v1365 = vadd.f32 %v1361, %v1362
    %v1366 = vadd.f32 %v1365, %v1363
    %v1367 = vadd.f32 %v1366, %v1364
    %v1368 = vrot.slane %v1367, 4
    %v1369 = vadd.f32 %v1367, %v1368
    %v1370 = vrot.slane %v1369, 2
    %v1371 = vadd.f32 %v1369, %v1370
    %v1372 = vrot.slane %v1371, 1
    %v1373 = vadd.f32 %v1371, %v1372
    %v1374 = vrcp.pop 32.0
    %v1375 = vmul.f32 %v1373, %v1374
    %v1376 = vsub.f32 %v1361, %v1375
    %v1377 = vsub.f32 %v1362, %v1375
    %v1378 = vsub.f32 %v1363, %v1375
    %v1379 = vsub.f32 %v1364, %v1375
    %v1380 = vmul.f32 %v1376, %v1376
    %v1381 = vmul.f32 %v1377, %v1377
    %v1382 = vmul.f32 %v1378, %v1378
    %v1383 = vmul.f32 %v1379, %v1379
    %v1384 = vadd.f32 %v1380, %v1381
    %v1385 = vadd.f32 %v1384, %v1382
    %v1386 = vadd.f32 %v1385, %v1383
    %v1387 = vrot.slane %v1386, 4
    %v1388 = vadd.f32 %v1386, %v1387
    %v1389 = vrot.slane %v1388, 2
    %v1390 = vadd.f32 %v1388, %v1389
    %v1391 = vrot.slane %v1390, 1
    %v1392 = vadd.f32 %v1390, %v1391
    %v1393 = vmul.f32 %v1392, %v1374
    %v1394 = vadd.f32 %v1393, 0.8
    %v1395 = vrsqrt.pop %v1394
    %v1396 = vmul.f32 %v1376, %v1395
    %v1397 = vmul.f32 %v1377, %v1395
    %v1398 = vmul.f32 %v1378, %v1395
    %v1399 = vmul.f32 %v1379, %v1395
    %v1400 = vlaneseq
    %v1401 = vshrl.u32 %v1400, 7
    %v1402 = vsub.s32 2, %v1401
    %v1403 = vrot.slane %v37, %v1402
    %v1404 = vmul.f32 %v1396, %v1403
    %v1405 = vmul.f32 %v1397, %v1403
    %v1406 = vmul.f32 %v1398, %v1403
    %v1407 = vmul.f32 %v1399, %v1403
    %v1408 = vlaneseq
    %v1409 = vshrl.u32 %v1408, 7
    %v1410 = vsub.s32 3, %v1409
    %v1411 = vrot.slane %v37, %v1410
    %v1412 = vadd.f32 %v1404, %v1411
    %v1413 = vadd.f32 %v1405, %v1411
    %v1414 = vadd.f32 %v1406, %v1411
    %v1415 = vadd.f32 %v1407, %v1411
    %v1416 = vpack.c.bf16 %v1413, %v1412
    %v1417 = vpack.c.bf16 %v1415, %v1414
    %v1418 = vld [vmem:[%s6] sm:$0xf]
    %v1419 = vld [vmem:[%s6 + $0x4] sm:$0xf]
    %v1420 = vld [vmem:[%s6 + $0x8] sm:$0xf]
    %v1421 = vld [vmem:[%s6 + $0xc] sm:$0xf]
    %v1426 = vunpack.c.l.b16 %v1418
    %v1427 = vunpack.c.l.b16 %v1419
    %v1428 = vunpack.c.l.b16 %v1420
    %v1429 = vunpack.c.l.b16 %v1421
    %v1430 = vpack.c.b16 %v1427, %v1426
    %v1431 = vpack.c.b16 %v1429, %v1428
    %1434 = vst [vmem:[#allocation2] sm:$0xff] %v1430
    %1435 = vst [vmem:[#allocation2 + $0x8] sm:$0xff] %v1431
    %v1436 = vld [vmem:[%s6 + $0x10] sm:$0xf]
    %v1437 = vld [vmem:[%s6 + $0x14] sm:$0xf]
    %v1438 = vld [vmem:[%s6 + $0x18] sm:$0xf]
    %v1439 = vld [vmem:[%s6 + $0x1c] sm:$0xf]
    %v1444 = vunpack.c.l.b16 %v1436
    %v1445 = vunpack.c.l.b16 %v1437
    %v1446 = vunpack.c.l.b16 %v1438
    %v1447 = vunpack.c.l.b16 %v1439
    %v1448 = vpack.c.b16 %v1445, %v1444
    %v1449 = vpack.c.b16 %v1447, %v1446
    %1452 = vst [vmem:[#allocation2 + $0x40] sm:$0xff] %v1448
    %1453 = vst [vmem:[#allocation2 + $0x48] sm:$0xff] %v1449
    %v1454 = vld [vmem:[%s6 + $0x20] sm:$0xf]
    %v1455 = vld [vmem:[%s6 + $0x24] sm:$0xf]
    %v1456 = vld [vmem:[%s6 + $0x28] sm:$0xf]
    %v1457 = vld [vmem:[%s6 + $0x2c] sm:$0xf]
    %v1462 = vunpack.c.l.b16 %v1454
    %v1463 = vunpack.c.l.b16 %v1455
    %v1464 = vunpack.c.l.b16 %v1456
    %v1465 = vunpack.c.l.b16 %v1457
    %v1466 = vpack.c.b16 %v1463, %v1462
    %v1467 = vpack.c.b16 %v1465, %v1464
    %1470 = vst [vmem:[#allocation2 + $0x80] sm:$0xff] %v1466
    %1471 = vst [vmem:[#allocation2 + $0x88] sm:$0xff] %v1467
    %v1472 = vld [vmem:[%s6 + $0x30] sm:$0xf]
    %v1473 = vld [vmem:[%s6 + $0x34] sm:$0xf]
    %v1474 = vld [vmem:[%s6 + $0x38] sm:$0xf]
    %v1475 = vld [vmem:[%s6 + $0x3c] sm:$0xf]
    %v1480 = vunpack.c.l.b16 %v1472
    %v1481 = vunpack.c.l.b16 %v1473
    %v1482 = vunpack.c.l.b16 %v1474
    %v1483 = vunpack.c.l.b16 %v1475
    %v1484 = vpack.c.b16 %v1481, %v1480
    %v1485 = vpack.c.b16 %v1483, %v1482
    %1488 = vst [vmem:[#allocation2 + $0xc0] sm:$0xff] %v1484
    %1489 = vst [vmem:[#allocation2 + $0xc8] sm:$0xff] %v1485
    %v1490 = vld [vmem:[%s6 + $0x40] sm:$0xf]
    %v1491 = vld [vmem:[%s6 + $0x44] sm:$0xf]
    %v1492 = vld [vmem:[%s6 + $0x48] sm:$0xf]
    %v1493 = vld [vmem:[%s6 + $0x4c] sm:$0xf]
    %v1498 = vunpack.c.l.b16 %v1490
    %v1499 = vunpack.c.l.b16 %v1491
    %v1500 = vunpack.c.l.b16 %v1492
    %v1501 = vunpack.c.l.b16 %v1493
    %v1502 = vpack.c.b16 %v1499, %v1498
    %v1503 = vpack.c.b16 %v1501, %v1500
    %1506 = vst [vmem:[#allocation2 + $0x100] sm:$0xff] %v1502
    %1507 = vst [vmem:[#allocation2 + $0x108] sm:$0xff] %v1503
    %v1508 = vld [vmem:[%s6 + $0x50] sm:$0xf]
    %v1509 = vld [vmem:[%s6 + $0x54] sm:$0xf]
    %v1510 = vld [vmem:[%s6 + $0x58] sm:$0xf]
    %v1511 = vld [vmem:[%s6 + $0x5c] sm:$0xf]
    %v1516 = vunpack.c.l.b16 %v1508
    %v1517 = vunpack.c.l.b16 %v1509
    %v1518 = vunpack.c.l.b16 %v1510
    %v1519 = vunpack.c.l.b16 %v1511
    %v1520 = vpack.c.b16 %v1517, %v1516
    %v1521 = vpack.c.b16 %v1519, %v1518
    %1524 = vst [vmem:[#allocation2 + $0x140] sm:$0xff] %v1520
    %1525 = vst [vmem:[#allocation2 + $0x148] sm:$0xff] %v1521
    %v1526 = vld [vmem:[%s6 + $0x60] sm:$0xf]
    %v1527 = vld [vmem:[%s6 + $0x64] sm:$0xf]
    %v1528 = vld [vmem:[%s6 + $0x68] sm:$0xf]
    %v1529 = vld [vmem:[%s6 + $0x6c] sm:$0xf]
    %v1534 = vunpack.c.l.b16 %v1526
    %v1535 = vunpack.c.l.b16 %v1527
    %v1536 = vunpack.c.l.b16 %v1528
    %v1537 = vunpack.c.l.b16 %v1529
    %v1538 = vpack.c.b16 %v1535, %v1534
    %v1539 = vpack.c.b16 %v1537, %v1536
    %1542 = vst [vmem:[#allocation2 + $0x180] sm:$0xff] %v1538
    %1543 = vst [vmem:[#allocation2 + $0x188] sm:$0xff] %v1539
    %v1544 = vld [vmem:[%s6 + $0x70] sm:$0xf]
    %v1545 = vld [vmem:[%s6 + $0x74] sm:$0xf]
    %v1546 = vld [vmem:[%s6 + $0x78] sm:$0xf]
    %v1547 = vld [vmem:[%s6 + $0x7c] sm:$0xf]
    %v1552 = vunpack.c.l.b16 %v1544
    %v1553 = vunpack.c.l.b16 %v1545
    %v1554 = vunpack.c.l.b16 %v1546
    %v1555 = vunpack.c.l.b16 %v1547
    %v1556 = vpack.c.b16 %v1553, %v1552
    %v1557 = vpack.c.b16 %v1555, %v1554
    %1560 = vst [vmem:[#allocation2 + $0x1c0] sm:$0xff] %v1556
    %1561 = vst [vmem:[#allocation2 + $0x1c8] sm:$0xff] %v1557
    %v1562 = vld [vmem:[%s6 + $0x80] sm:$0xf]
    %v1563 = vld [vmem:[%s6 + $0x84] sm:$0xf]
    %v1564 = vld [vmem:[%s6 + $0x88] sm:$0xf]
    %v1565 = vld [vmem:[%s6 + $0x8c] sm:$0xf]
    %v1570 = vunpack.c.l.b16 %v1562
    %v1571 = vunpack.c.l.b16 %v1563
    %v1572 = vunpack.c.l.b16 %v1564
    %v1573 = vunpack.c.l.b16 %v1565
    %v1574 = vpack.c.b16 %v1571, %v1570
    %v1575 = vpack.c.b16 %v1573, %v1572
    %1578 = vst [vmem:[#allocation2 + $0x200] sm:$0xff] %v1574
    %1579 = vst [vmem:[#allocation2 + $0x208] sm:$0xff] %v1575
    %v1580 = vld [vmem:[%s5] sm:$0xf]
    %v1581 = vld [vmem:[%s5 + $0x4] sm:$0xf]
    %v1582 = vld [vmem:[%s5 + $0x8] sm:$0xf]
    %v1583 = vld [vmem:[%s5 + $0xc] sm:$0xf]
    %v1584 = vld [vmem:[%s5 + $0x10] sm:$0xf]
    %v1585 = vld [vmem:[%s5 + $0x14] sm:$0xf]
    %v1586 = vld [vmem:[%s5 + $0x18] sm:$0xf]
    %v1587 = vld [vmem:[%s5 + $0x1c] sm:$0xf]
    %v1588 = vld [vmem:[%s5 + $0x20] sm:$0xf]
    %v1598 = vunpack.c.l.b16 %v1580
    %v1599 = vunpack.c.l.b16 %v1581
    %v1600 = vunpack.c.l.b16 %v1582
    %v1601 = vunpack.c.l.b16 %v1583
    %v1602 = vunpack.c.l.b16 %v1584
    %v1603 = vunpack.c.l.b16 %v1585
    %v1604 = vunpack.c.l.b16 %v1586
    %v1605 = vunpack.c.l.b16 %v1587
    %v1606 = vunpack.c.l.b16 %v1588
    %v1607 = vpack.c.b16 %v1599, %v1598
    %v1608 = vpack.c.b16 %v1601, %v1600
    %v1609 = vpack.c.b16 %v1603, %v1602
    %v1610 = vpack.c.b16 %v1605, %v1604
    %v1611 = vpack.c.b16 %v1606, %v1606
    %vm1612 = vcmask 261120
    %v1614 = vsel %vm1612, %v1607, 0
    %v1617 = vsel %vm1612, %v1608, 0
    %v1620 = vsel %vm1612, %v1609, 0
    %v1623 = vsel %vm1612, %v1610, 0
    %v1626 = vsel %vm1612, %v1611, 0
    %1628 = vmatprep.subr.bf16.mxu0 0
    %1629 = vmatpush1.bf16.msra.mxu0 %v1416
    %1630 = vmatprep.subr.bf16.mxu0 0
    %1631 = vmatpush1.bf16.msra.mxu0 %v1417
    %1632 = vmatprep.subr.bf16.mxu0 0
    %1633 = vmatpush1.bf16.msra.mxu0 0
    %1634 = vmatprep.subr.bf16.mxu0 0
    %1635 = vmatpush1.bf16.msra.mxu0 0
    %1636 = vmatprep.subr.bf16.mxu0 0
    %1637 = vmatpush1.bf16.msra.mxu0 0
    %1638 = vmatprep.subr.bf16.mxu0 0
    %1639 = vmatpush1.bf16.msra.mxu0 0
    %1640 = vmatprep.subr.bf16.mxu0 0
    %1641 = vmatpush1.bf16.msra.mxu0 0
    %1642 = vmatprep.subr.bf16.mxu0 0
    %1643 = vmatpush1.bf16.msra.mxu0 0
    %1644 = vmatprep.subr.bf16.mxu0 0
    %1645 = vmatpush1.bf16.msra.mxu0 0
    %1646 = vmatprep.subr.bf16.mxu0 0
    %1647 = vmatpush1.bf16.msra.mxu0 0
    %1648 = vmatprep.subr.bf16.mxu0 0
    %1649 = vmatpush1.bf16.msra.mxu0 0
    %1650 = vmatprep.subr.bf16.mxu0 0
    %1651 = vmatpush1.bf16.msra.mxu0 0
    %1652 = vmatprep.subr.bf16.mxu0 0
    %1653 = vmatpush1.bf16.msra.mxu0 0
    %1654 = vmatprep.subr.bf16.mxu0 0
    %1655 = vmatpush1.bf16.msra.mxu0 0
    %1656 = vmatprep.subr.bf16.mxu0 0
    %1657 = vmatpush1.bf16.msra.mxu0 0
    %1658 = vmatprep.subr.bf16.mxu0 0
    %1659 = vmatpush1.bf16.msra.mxu0 0
    %1660 = vmatprep.mubr.bf16.mxu0 0
    %1661 = vmatmul.mubr.bf16.gmra.mrb[0].mxu0 %v1614
    %v1662 = vpop.f32.mrb[0].mxu0
    %v1663 = vadd.f32 0.0, %v1662
    %v1664 = vpop.f32.mrb[0].mxu0
    %v1665 = vpop.f32.mrb[0].mxu0
    %v1666 = vadd.f32 0.0, %v1665
    %v1667 = vpop.f32.mrb[0].mxu0
    %1668 = vmatprep.mubr.bf16.mxu0 0
    %1669 = vmatmul.mubr.bf16.gmra.mrb[0].mxu0 %v1617
    %v1670 = vpop.f32.mrb[0].mxu0
    %v1671 = vadd.f32 0.0, %v1670
    %v1672 = vpop.f32.mrb[0].mxu0
    %v1673 = vpop.f32.mrb[0].mxu0
    %v1674 = vadd.f32 0.0, %v1673
    %v1675 = vpop.f32.mrb[0].mxu0
    %1676 = vmatprep.mubr.bf16.mxu0 0
    %1677 = vmatmul.mubr.bf16.gmra.mrb[0].mxu0 %v1620
    %v1678 = vpop.f32.mrb[0].mxu0
    %v1679 = vadd.f32 0.0, %v1678
    %v1680 = vpop.f32.mrb[0].mxu0
    %v1681 = vpop.f32.mrb[0].mxu0
    %v1682 = vadd.f32 0.0, %v1681
    %v1683 = vpop.f32.mrb[0].mxu0
    %1684 = vmatprep.mubr.bf16.mxu0 0
    %1685 = vmatmul.mubr.bf16.gmra.mrb[0].mxu0 %v1623
    %v1686 = vpop.f32.mrb[0].mxu0
    %v1687 = vadd.f32 0.0, %v1686
    %v1688 = vpop.f32.mrb[0].mxu0
    %v1689 = vpop.f32.mrb[0].mxu0
    %v1690 = vadd.f32 0.0, %v1689
    %v1691 = vpop.f32.mrb[0].mxu0
    %1692 = vmatprep.mubr.bf16.mxu0 0
    %1693 = vmatmul.mubr.bf16.gmra.mrb[0].mxu0 %v1626
    %v1694 = vpop.f32.mrb[0].mxu0
    %v1695 = vadd.f32 0.0, %v1694
    %v1696 = vpop.f32.mrb[0].mxu0
    %v1697 = vpop.f32.mrb[0].mxu0
    %v1698 = vpop.f32.mrb[0].mxu0
    %1699 = vdwg.mxu0
    %v1700 = vpack.c.bf16 %v1663, %v1663
    %v1701 = vld [vmem:[#allocation2] sm:$0xff]
    %v1702 = vld [vmem:[#allocation2 + $0x8] sm:$0xff]
    %v1703 = vld [vmem:[#allocation2 + $0x10] sm:$0xff]
    %v1704 = vld [vmem:[#allocation2 + $0x18] sm:$0xff]
    %v1705 = vld [vmem:[#allocation2 + $0x20] sm:$0xff]
    %v1706 = vld [vmem:[#allocation2 + $0x28] sm:$0xff]
    %v1707 = vld [vmem:[#allocation2 + $0x30] sm:$0xff]
    %v1708 = vld [vmem:[#allocation2 + $0x38] sm:$0xff]
    %v1709 = vpack.c.bf16 %v1666, %v1666
    %v1710 = vld [vmem:[#allocation2 + $0x40] sm:$0xff]
    %v1711 = vld [vmem:[#allocation2 + $0x48] sm:$0xff]
    %v1712 = vld [vmem:[#allocation2 + $0x50] sm:$0xff]
    %v1713 = vld [vmem:[#allocation2 + $0x58] sm:$0xff]
    %v1714 = vld [vmem:[#allocation2 + $0x60] sm:$0xff]
    %v1715 = vld [vmem:[#allocation2 + $0x68] sm:$0xff]
    %v1716 = vld [vmem:[#allocation2 + $0x70] sm:$0xff]
    %v1717 = vld [vmem:[#allocation2 + $0x78] sm:$0xff]
    %1718 = vmatprep.subr.bf16.mxu0 0
    %1719 = vmatpush1.bf16.msra.mxu0 %v1710
    %1720 = vmatprep.subr.bf16.mxu0 0
    %1721 = vmatpush1.bf16.msra.mxu0 %v1711
    %1722 = vmatprep.subr.bf16.mxu0 0
    %1723 = vmatpush1.bf16.msra.mxu0 %v1712
    %1724 = vmatprep.subr.bf16.mxu0 0
    %1725 = vmatpush1.bf16.msra.mxu0 %v1713
    %1726 = vmatprep.subr.bf16.mxu0 0
    %1727 = vmatpush1.bf16.msra.mxu0 %v1714
    %1728 = vmatprep.subr.bf16.mxu0 0
    %1729 = vmatpush1.bf16.msra.mxu0 %v1715
    %1730 = vmatprep.subr.bf16.mxu0 0
    %1731 = vmatpush1.bf16.msra.mxu0 %v1716
    %1732 = vmatprep.subr.bf16.mxu0 0
    %1733 = vmatpush1.bf16.msra.mxu0 %v1717
    %1734 = vmatprep.subr.bf16.mxu0 0
    %1735 = vmatpush1.bf16.msra.mxu0 0
    %1736 = vmatprep.subr.bf16.mxu0 0
    %1737 = vmatpush1.bf16.msra.mxu0 0
    %1738 = vmatprep.subr.bf16.mxu0 0
    %1739 = vmatpush1.bf16.msra.mxu0 0
    %1740 = vmatprep.subr.bf16.mxu0 0
    %1741 = vmatpush1.bf16.msra.mxu0 0
    %1742 = vmatprep.subr.bf16.mxu0 0
    %1743 = vmatpush1.bf16.msra.mxu0 0
    %1744 = vmatprep.subr.bf16.mxu0 0
    %1745 = vmatpush1.bf16.msra.mxu0 0
    %1746 = vmatprep.subr.bf16.mxu0 0
    %1747 = vmatpush1.bf16.msra.mxu0 0
    %1748 = vmatprep.subr.bf16.mxu0 0
    %1749 = vmatpush1.bf16.msra.mxu0 0
    %1750 = vmatprep.mubr.bf16.mxu0 0
    %1751 = vmatmul.mubr.bf16.gmra.mrb[0].mxu0 %v1709
    %v1752 = vpop.f32.mrb[0].mxu0
    %v1753 = vadd.f32 0.0, %v1752
    %v1754 = vpop.f32.mrb[0].mxu0
    %v1755 = vpop.f32.mrb[0].mxu0
    %v1756 = vpop.f32.mrb[0].mxu0
    %1757 = vdwg.mxu0
    %v1758 = vpack.c.bf16 %v1671, %v1671
    %v1759 = vld [vmem:[#allocation2 + $0x80] sm:$0xff]
    %v1760 = vld [vmem:[#allocation2 + $0x88] sm:$0xff]
    %v1761 = vld [vmem:[#allocation2 + $0x90] sm:$0xff]
    %v1762 = vld [vmem:[#allocation2 + $0x98] sm:$0xff]
    %v1763 = vld [vmem:[#allocation2 + $0xa0] sm:$0xff]
    %v1764 = vld [vmem:[#allocation2 + $0xa8] sm:$0xff]
    %v1765 = vld [vmem:[#allocation2 + $0xb0] sm:$0xff]
    %v1766 = vld [vmem:[#allocation2 + $0xb8] sm:$0xff]
    %v1767 = vpack.c.bf16 %v1674, %v1674
    %v1768 = vld [vmem:[#allocation2 + $0xc0] sm:$0xff]
    %v1769 = vld [vmem:[#allocation2 + $0xc8] sm:$0xff]
    %v1770 = vld [vmem:[#allocation2 + $0xd0] sm:$0xff]
    %v1771 = vld [vmem:[#allocation2 + $0xd8] sm:$0xff]
    %v1772 = vld [vmem:[#allocation2 + $0xe0] sm:$0xff]
    %v1773 = vld [vmem:[#allocation2 + $0xe8] sm:$0xff]
    %v1774 = vld [vmem:[#allocation2 + $0xf0] sm:$0xff]
    %v1775 = vld [vmem:[#allocation2 + $0xf8] sm:$0xff]
    %1776 = vmatprep.subr.bf16.mxu0 0
    %1777 = vmatpush1.bf16.msra.mxu0 %v1768
    %1778 = vmatprep.subr.bf16.mxu0 0
    %1779 = vmatpush1.bf16.msra.mxu0 %v1769
    %1780 = vmatprep.subr.bf16.mxu0 0
    %1781 = vmatpush1.bf16.msra.mxu0 %v1770
    %1782 = vmatprep.subr.bf16.mxu0 0
    %1783 = vmatpush1.bf16.msra.mxu0 %v1771
    %1784 = vmatprep.subr.bf16.mxu0 0
    %1785 = vmatpush1.bf16.msra.mxu0 %v1772
    %1786 = vmatprep.subr.bf16.mxu0 0
    %1787 = vmatpush1.bf16.msra.mxu0 %v1773
    %1788 = vmatprep.subr.bf16.mxu0 0
    %1789 = vmatpush1.bf16.msra.mxu0 %v1774
    %1790 = vmatprep.subr.bf16.mxu0 0
    %1791 = vmatpush1.bf16.msra.mxu0 %v1775
    %1792 = vmatprep.subr.bf16.mxu0 0
    %1793 = vmatpush1.bf16.msra.mxu0 0
    %1794 = vmatprep.subr.bf16.mxu0 0
    %1795 = vmatpush1.bf16.msra.mxu0 0
    %1796 = vmatprep.subr.bf16.mxu0 0
    %1797 = vmatpush1.bf16.msra.mxu0 0
    %1798 = vmatprep.subr.bf16.mxu0 0
    %1799 = vmatpush1.bf16.msra.mxu0 0
    %1800 = vmatprep.subr.bf16.mxu0 0
    %1801 = vmatpush1.bf16.msra.mxu0 0
    %1802 = vmatprep.subr.bf16.mxu0 0
    %1803 = vmatpush1.bf16.msra.mxu0 0
    %1804 = vmatprep.subr.bf16.mxu0 0
    %1805 = vmatpush1.bf16.msra.mxu0 0
    %1806 = vmatprep.subr.bf16.mxu0 0
    %1807 = vmatpush1.bf16.msra.mxu0 0
    %1808 = vmatprep.mubr.bf16.mxu0 0
    %1809 = vmatmul.mubr.bf16.gmra.mrb[0].mxu0 %v1767
    %v1810 = vpop.f32.mrb[0].mxu0
    %v1811 = vadd.f32 0.0, %v1810
    %v1812 = vpop.f32.mrb[0].mxu0
    %v1813 = vpop.f32.mrb[0].mxu0
    %v1814 = vpop.f32.mrb[0].mxu0
    %1815 = vdwg.mxu0
    %v1816 = vpack.c.bf16 %v1679, %v1679
    %v1817 = vld [vmem:[#allocation2 + $0x100] sm:$0xff]
    %v1818 = vld [vmem:[#allocation2 + $0x108] sm:$0xff]
    %v1819 = vld [vmem:[#allocation2 + $0x110] sm:$0xff]
    %v1820 = vld [vmem:[#allocation2 + $0x118] sm:$0xff]
    %v1821 = vld [vmem:[#allocation2 + $0x120] sm:$0xff]
    %v1822 = vld [vmem:[#allocation2 + $0x128] sm:$0xff]
    %v1823 = vld [vmem:[#allocation2 + $0x130] sm:$0xff]
    %v1824 = vld [vmem:[#allocation2 + $0x138] sm:$0xff]
    %v1825 = vpack.c.bf16 %v1682, %v1682
    %v1826 = vld [vmem:[#allocation2 + $0x140] sm:$0xff]
    %v1827 = vld [vmem:[#allocation2 + $0x148] sm:$0xff]
    %v1828 = vld [vmem:[#allocation2 + $0x150] sm:$0xff]
    %v1829 = vld [vmem:[#allocation2 + $0x158] sm:$0xff]
    %v1830 = vld [vmem:[#allocation2 + $0x160] sm:$0xff]
    %v1831 = vld [vmem:[#allocation2 + $0x168] sm:$0xff]
    %v1832 = vld [vmem:[#allocation2 + $0x170] sm:$0xff]
    %v1833 = vld [vmem:[#allocation2 + $0x178] sm:$0xff]
    %1834 = vmatprep.subr.bf16.mxu0 0
    %1835 = vmatpush1.bf16.msra.mxu0 %v1826
    %1836 = vmatprep.subr.bf16.mxu0 0
    %1837 = vmatpush1.bf16.msra.mxu0 %v1827
    %1838 = vmatprep.subr.bf16.mxu0 0
    %1839 = vmatpush1.bf16.msra.mxu0 %v1828
    %1840 = vmatprep.subr.bf16.mxu0 0
    %1841 = vmatpush1.bf16.msra.mxu0 %v1829
    %1842 = vmatprep.subr.bf16.mxu0 0
    %1843 = vmatpush1.bf16.msra.mxu0 %v1830
    %1844 = vmatprep.subr.bf16.mxu0 0
    %1845 = vmatpush1.bf16.msra.mxu0 %v1831
    %1846 = vmatprep.subr.bf16.mxu0 0
    %1847 = vmatpush1.bf16.msra.mxu0 %v1832
    %1848 = vmatprep.subr.bf16.mxu0 0
    %1849 = vmatpush1.bf16.msra.mxu0 %v1833
    %1850 = vmatprep.subr.bf16.mxu0 0
    %1851 = vmatpush1.bf16.msra.mxu0 0
    %1852 = vmatprep.subr.bf16.mxu0 0
    %1853 = vmatpush1.bf16.msra.mxu0 0
    %1854 = vmatprep.subr.bf16.mxu0 0
    %1855 = vmatpush1.bf16.msra.mxu0 0
    %1856 = vmatprep.subr.bf16.mxu0 0
    %1857 = vmatpush1.bf16.msra.mxu0 0
    %1858 = vmatprep.subr.bf16.mxu0 0
    %1859 = vmatpush1.bf16.msra.mxu0 0
    %1860 = vmatprep.subr.bf16.mxu0 0
    %1861 = vmatpush1.bf16.msra.mxu0 0
    %1862 = vmatprep.subr.bf16.mxu0 0
    %1863 = vmatpush1.bf16.msra.mxu0 0
    %1864 = vmatprep.subr.bf16.mxu0 0
    %1865 = vmatpush1.bf16.msra.mxu0 0
    %1866 = vmatprep.mubr.bf16.mxu0 0
    %1867 = vmatmul.mubr.bf16.gmra.mrb[0].mxu0 %v1825
    %v1868 = vpop.f32.mrb[0].mxu0
    %v1869 = vadd.f32 0.0, %v1868
    %v1870 = vpop.f32.mrb[0].mxu0
    %v1871 = vpop.f32.mrb[0].mxu0
    %v1872 = vpop.f32.mrb[0].mxu0
    %1873 = vdwg.mxu0
    %v1874 = vpack.c.bf16 %v1687, %v1687
    %v1875 = vld [vmem:[#allocation2 + $0x180] sm:$0xff]
    %v1876 = vld [vmem:[#allocation2 + $0x188] sm:$0xff]
    %v1877 = vld [vmem:[#allocation2 + $0x190] sm:$0xff]
    %v1878 = vld [vmem:[#allocation2 + $0x198] sm:$0xff]
    %v1879 = vld [vmem:[#allocation2 + $0x1a0] sm:$0xff]
    %v1880 = vld [vmem:[#allocation2 + $0x1a8] sm:$0xff]
    %v1881 = vld [vmem:[#allocation2 + $0x1b0] sm:$0xff]
    %v1882 = vld [vmem:[#allocation2 + $0x1b8] sm:$0xff]
    %v1883 = vpack.c.bf16 %v1690, %v1690
    %v1884 = vld [vmem:[#allocation2 + $0x1c0] sm:$0xff]
    %v1885 = vld [vmem:[#allocation2 + $0x1c8] sm:$0xff]
    %v1886 = vld [vmem:[#allocation2 + $0x1d0] sm:$0xff]
    %v1887 = vld [vmem:[#allocation2 + $0x1d8] sm:$0xff]
    %v1888 = vld [vmem:[#allocation2 + $0x1e0] sm:$0xff]
    %v1889 = vld [vmem:[#allocation2 + $0x1e8] sm:$0xff]
    %v1890 = vld [vmem:[#allocation2 + $0x1f0] sm:$0xff]
    %v1891 = vld [vmem:[#allocation2 + $0x1f8] sm:$0xff]
    %1892 = vmatprep.subr.bf16.mxu0 0
    %1893 = vmatpush1.bf16.msra.mxu0 %v1884
    %1894 = vmatprep.subr.bf16.mxu0 0
    %1895 = vmatpush1.bf16.msra.mxu0 %v1885
    %1896 = vmatprep.subr.bf16.mxu0 0
    %1897 = vmatpush1.bf16.msra.mxu0 %v1886
    %1898 = vmatprep.subr.bf16.mxu0 0
    %1899 = vmatpush1.bf16.msra.mxu0 %v1887
    %1900 = vmatprep.subr.bf16.mxu0 0
    %1901 = vmatpush1.bf16.msra.mxu0 %v1888
    %1902 = vmatprep.subr.bf16.mxu0 0
    %1903 = vmatpush1.bf16.msra.mxu0 %v1889
    %1904 = vmatprep.subr.bf16.mxu0 0
    %1905 = vmatpush1.bf16.msra.mxu0 %v1890
    %1906 = vmatprep.subr.bf16.mxu0 0
    %1907 = vmatpush1.bf16.msra.mxu0 %v1891
    %1908 = vmatprep.subr.bf16.mxu0 0
    %1909 = vmatpush1.bf16.msra.mxu0 0
    %1910 = vmatprep.subr.bf16.mxu0 0
    %1911 = vmatpush1.bf16.msra.mxu0 0
    %1912 = vmatprep.subr.bf16.mxu0 0
    %1913 = vmatpush1.bf16.msra.mxu0 0
    %1914 = vmatprep.subr.bf16.mxu0 0
    %1915 = vmatpush1.bf16.msra.mxu0 0
    %1916 = vmatprep.subr.bf16.mxu0 0
    %1917 = vmatpush1.bf16.msra.mxu0 0
    %1918 = vmatprep.subr.bf16.mxu0 0
    %1919 = vmatpush1.bf16.msra.mxu0 0
    %1920 = vmatprep.subr.bf16.mxu0 0
    %1921 = vmatpush1.bf16.msra.mxu0 0
    %1922 = vmatprep.subr.bf16.mxu0 0
    %1923 = vmatpush1.bf16.msra.mxu0 0
    %1924 = vmatprep.mubr.bf16.mxu0 0
    %1925 = vmatmul.mubr.bf16.gmra.mrb[0].mxu0 %v1883
    %v1926 = vpop.f32.mrb[0].mxu0
    %v1927 = vadd.f32 0.0, %v1926
    %v1928 = vpop.f32.mrb[0].mxu0
    %v1929 = vpop.f32.mrb[0].mxu0
    %v1930 = vpop.f32.mrb[0].mxu0
    %1931 = vdwg.mxu0
    %v1932 = vpack.c.bf16 %v1695, %v1695
    %v1933 = vld [vmem:[#allocation2 + $0x200] sm:$0xff]
    %v1934 = vld [vmem:[#allocation2 + $0x208] sm:$0xff]
    %v1935 = vld [vmem:[#allocation2 + $0x210] sm:$0xff]
    %v1936 = vld [vmem:[#allocation2 + $0x218] sm:$0xff]
    %v1937 = vld [vmem:[#allocation2 + $0x220] sm:$0xff]
    %v1938 = vld [vmem:[#allocation2 + $0x228] sm:$0xff]
    %v1939 = vld [vmem:[#allocation2 + $0x230] sm:$0xff]
    %v1940 = vld [vmem:[#allocation2 + $0x238] sm:$0xff]
    %1941 = vmatprep.subr.bf16.mxu0 0
    %1942 = vmatpush1.bf16.msra.mxu0 %v1933
    %1943 = vmatprep.subr.bf16.mxu0 0
    %1944 = vmatpush1.bf16.msra.mxu0 %v1934
    %1945 = vmatprep.subr.bf16.mxu0 0
    %1946 = vmatpush1.bf16.msra.mxu0 %v1935
    %1947 = vmatprep.subr.bf16.mxu0 0
    %1948 = vmatpush1.bf16.msra.mxu0 %v1936
    %1949 = vmatprep.subr.bf16.mxu0 0
    %1950 = vmatpush1.bf16.msra.mxu0 %v1937
    %1951 = vmatprep.subr.bf16.mxu0 0
    %1952 = vmatpush1.bf16.msra.mxu0 %v1938
    %1953 = vmatprep.subr.bf16.mxu0 0
    %1954 = vmatpush1.bf16.msra.mxu0 %v1939
    %1955 = vmatprep.subr.bf16.mxu0 0
    %1956 = vmatpush1.bf16.msra.mxu0 %v1940
    %1957 = vmatprep.subr.bf16.mxu0 0
    %1958 = vmatpush1.bf16.msra.mxu0 0
    %1959 = vmatprep.subr.bf16.mxu0 0
    %1960 = vmatpush1.bf16.msra.mxu0 0
    %1961 = vmatprep.subr.bf16.mxu0 0
    %1962 = vmatpush1.bf16.msra.mxu0 0
    %1963 = vmatprep.subr.bf16.mxu0 0
    %1964 = vmatpush1.bf16.msra.mxu0 0
    %1965 = vmatprep.subr.bf16.mxu0 0
    %1966 = vmatpush1.bf16.msra.mxu0 0
    %1967 = vmatprep.subr.bf16.mxu0 0
    %1968 = vmatpush1.bf16.msra.mxu0 0
    %1969 = vmatprep.subr.bf16.mxu0 0
    %1970 = vmatpush1.bf16.msra.mxu0 0
    %1971 = vmatprep.subr.bf16.mxu0 0
    %1972 = vmatpush1.bf16.msra.mxu0 0
    %1973 = vmatprep.mubr.bf16.mxu0 0
    %1974 = vmatmul.mubr.bf16.gmra.mrb[0].mxu0 %v1932
    %v1975 = vpop.f32.mrb[0].mxu0
    %v1976 = vadd.f32 0.0, %v1975
    %v1977 = vpop.f32.mrb[0].mxu0
    %v1978 = vpop.f32.mrb[0].mxu0
    %v1979 = vpop.f32.mrb[0].mxu0
    %1980 = vdwg.mxu0
    %1981 = vmatprep.subr.bf16.mxu0 0
    %1982 = vmatpush1.bf16.msra.mxu0 %v1701
    %1983 = vmatprep.subr.bf16.mxu0 0
    %1984 = vmatpush1.bf16.msra.mxu0 %v1702
    %1985 = vmatprep.subr.bf16.mxu0 0
    %1986 = vmatpush1.bf16.msra.mxu0 %v1703
    %1987 = vmatprep.subr.bf16.mxu0 0
    %1988 = vmatpush1.bf16.msra.mxu0 %v1704
    %1989 = vmatprep.subr.bf16.mxu0 0
    %1990 = vmatpush1.bf16.msra.mxu0 %v1705
    %1991 = vmatprep.subr.bf16.mxu0 0
    %1992 = vmatpush1.bf16.msra.mxu0 %v1706
    %1993 = vmatprep.subr.bf16.mxu0 0
    %1994 = vmatpush1.bf16.msra.mxu0 %v1707
    %1995 = vmatprep.subr.bf16.mxu0 0
    %1996 = vmatpush1.bf16.msra.mxu0 %v1708
    %1997 = vmatprep.subr.bf16.mxu0 0
    %1998 = vmatpush1.bf16.msra.mxu0 0
    %1999 = vmatprep.subr.bf16.mxu0 0
    %2000 = vmatpush1.bf16.msra.mxu0 0
    %2001 = vmatprep.subr.bf16.mxu0 0
    %2002 = vmatpush1.bf16.msra.mxu0 0
    %2003 = vmatprep.subr.bf16.mxu0 0
    %2004 = vmatpush1.bf16.msra.mxu0 0
    %2005 = vmatprep.subr.bf16.mxu0 0
    %2006 = vmatpush1.bf16.msra.mxu0 0
    %2007 = vmatprep.subr.bf16.mxu0 0
    %2008 = vmatpush1.bf16.msra.mxu0 0
    %2009 = vmatprep.subr.bf16.mxu0 0
    %2010 = vmatpush1.bf16.msra.mxu0 0
    %2011 = vmatprep.subr.bf16.mxu0 0
    %2012 = vmatpush1.bf16.msra.mxu0 0
    %2013 = vmatprep.mubr.bf16.mxu0 0
    %2014 = vmatmul.mubr.bf16.gmra.mrb[0].mxu0 %v1700
    %v2015 = vpop.f32.mrb[0].mxu0
    %v2016 = vadd.f32 %v1753, %v2015
    %v2017 = vpop.f32.mrb[0].mxu0
    %v2018 = vpop.f32.mrb[0].mxu0
    %v2019 = vpop.f32.mrb[0].mxu0
    %2020 = vdwg.mxu0
    %2021 = vmatprep.subr.bf16.mxu0 0
    %2022 = vmatpush1.bf16.msra.mxu0 %v1759
    %2023 = vmatprep.subr.bf16.mxu0 0
    %2024 = vmatpush1.bf16.msra.mxu0 %v1760
    %2025 = vmatprep.subr.bf16.mxu0 0
    %2026 = vmatpush1.bf16.msra.mxu0 %v1761
    %2027 = vmatprep.subr.bf16.mxu0 0
    %2028 = vmatpush1.bf16.msra.mxu0 %v1762
    %2029 = vmatprep.subr.bf16.mxu0 0
    %2030 = vmatpush1.bf16.msra.mxu0 %v1763
    %2031 = vmatprep.subr.bf16.mxu0 0
    %2032 = vmatpush1.bf16.msra.mxu0 %v1764
    %2033 = vmatprep.subr.bf16.mxu0 0
    %2034 = vmatpush1.bf16.msra.mxu0 %v1765
    %2035 = vmatprep.subr.bf16.mxu0 0
    %2036 = vmatpush1.bf16.msra.mxu0 %v1766
    %2037 = vmatprep.subr.bf16.mxu0 0
    %2038 = vmatpush1.bf16.msra.mxu0 0
    %2039 = vmatprep.subr.bf16.mxu0 0
    %2040 = vmatpush1.bf16.msra.mxu0 0
    %2041 = vmatprep.subr.bf16.mxu0 0
    %2042 = vmatpush1.bf16.msra.mxu0 0
    %2043 = vmatprep.subr.bf16.mxu0 0
    %2044 = vmatpush1.bf16.msra.mxu0 0
    %2045 = vmatprep.subr.bf16.mxu0 0
    %2046 = vmatpush1.bf16.msra.mxu0 0
    %2047 = vmatprep.subr.bf16.mxu0 0
    %2048 = vmatpush1.bf16.msra.mxu0 0
    %2049 = vmatprep.subr.bf16.mxu0 0
    %2050 = vmatpush1.bf16.msra.mxu0 0
    %2051 = vmatprep.subr.bf16.mxu0 0
    %2052 = vmatpush1.bf16.msra.mxu0 0
    %2053 = vmatprep.mubr.bf16.mxu0 0
    %2054 = vmatmul.mubr.bf16.gmra.mrb[0].mxu0 %v1758
    %v2055 = vpop.f32.mrb[0].mxu0
    %v2056 = vadd.f32 %v1811, %v2055
    %v2057 = vpop.f32.mrb[0].mxu0
    %v2058 = vpop.f32.mrb[0].mxu0
    %v2059 = vpop.f32.mrb[0].mxu0
    %2060 = vdwg.mxu0
    %2061 = vmatprep.subr.bf16.mxu0 0
    %2062 = vmatpush1.bf16.msra.mxu0 %v1817
    %2063 = vmatprep.subr.bf16.mxu0 0
    %2064 = vmatpush1.bf16.msra.mxu0 %v1818
    %2065 = vmatprep.subr.bf16.mxu0 0
    %2066 = vmatpush1.bf16.msra.mxu0 %v1819
    %2067 = vmatprep.subr.bf16.mxu0 0
    %2068 = vmatpush1.bf16.msra.mxu0 %v1820
    %2069 = vmatprep.subr.bf16.mxu0 0
    %2070 = vmatpush1.bf16.msra.mxu0 %v1821
    %2071 = vmatprep.subr.bf16.mxu0 0
    %2072 = vmatpush1.bf16.msra.mxu0 %v1822
    %2073 = vmatprep.subr.bf16.mxu0 0
    %2074 = vmatpush1.bf16.msra.mxu0 %v1823
    %2075 = vmatprep.subr.bf16.mxu0 0
    %2076 = vmatpush1.bf16.msra.mxu0 %v1824
    %2077 = vmatprep.subr.bf16.mxu0 0
    %2078 = vmatpush1.bf16.msra.mxu0 0
    %2079 = vmatprep.subr.bf16.mxu0 0
    %2080 = vmatpush1.bf16.msra.mxu0 0
    %2081 = vmatprep.subr.bf16.mxu0 0
    %2082 = vmatpush1.bf16.msra.mxu0 0
    %2083 = vmatprep.subr.bf16.mxu0 0
    %2084 = vmatpush1.bf16.msra.mxu0 0
    %2085 = vmatprep.subr.bf16.mxu0 0
    %2086 = vmatpush1.bf16.msra.mxu0 0
    %2087 = vmatprep.subr.bf16.mxu0 0
    %2088 = vmatpush1.bf16.msra.mxu0 0
    %2089 = vmatprep.subr.bf16.mxu0 0
    %2090 = vmatpush1.bf16.msra.mxu0 0
    %2091 = vmatprep.subr.bf16.mxu0 0
    %2092 = vmatpush1.bf16.msra.mxu0 0
    %2093 = vmatprep.mubr.bf16.mxu0 0
    %2094 = vmatmul.mubr.bf16.gmra.mrb[0].mxu0 %v1816
    %v2095 = vpop.f32.mrb[0].mxu0
    %v2096 = vadd.f32 %v1869, %v2095
    %v2097 = vpop.f32.mrb[0].mxu0
    %v2098 = vpop.f32.mrb[0].mxu0
    %v2099 = vpop.f32.mrb[0].mxu0
    %2100 = vdwg.mxu0
    %2101 = vmatprep.subr.bf16.mxu0 0
    %2102 = vmatpush1.bf16.msra.mxu0 %v1875
    %2103 = vmatprep.subr.bf16.mxu0 0
    %2104 = vmatpush1.bf16.msra.mxu0 %v1876
    %2105 = vmatprep.subr.bf16.mxu0 0
    %2106 = vmatpush1.bf16.msra.mxu0 %v1877
    %2107 = vmatprep.subr.bf16.mxu0 0
    %2108 = vmatpush1.bf16.msra.mxu0 %v1878
    %2109 = vmatprep.subr.bf16.mxu0 0
    %2110 = vmatpush1.bf16.msra.mxu0 %v1879
    %2111 = vmatprep.subr.bf16.mxu0 0
    %2112 = vmatpush1.bf16.msra.mxu0 %v1880
    %2113 = vmatprep.subr.bf16.mxu0 0
    %2114 = vmatpush1.bf16.msra.mxu0 %v1881
    %2115 = vmatprep.subr.bf16.mxu0 0
    %2116 = vmatpush1.bf16.msra.mxu0 %v1882
    %2117 = vmatprep.subr.bf16.mxu0 0
    %2118 = vmatpush1.bf16.msra.mxu0 0
    %2119 = vmatprep.subr.bf16.mxu0 0
    %2120 = vmatpush1.bf16.msra.mxu0 0
    %2121 = vmatprep.subr.bf16.mxu0 0
    %2122 = vmatpush1.bf16.msra.mxu0 0
    %2123 = vmatprep.subr.bf16.mxu0 0
    %2124 = vmatpush1.bf16.msra.mxu0 0
    %2125 = vmatprep.subr.bf16.mxu0 0
    %2126 = vmatpush1.bf16.msra.mxu0 0
    %2127 = vmatprep.subr.bf16.mxu0 0
    %2128 = vmatpush1.bf16.msra.mxu0 0
    %2129 = vmatprep.subr.bf16.mxu0 0
    %2130 = vmatpush1.bf16.msra.mxu0 0
    %2131 = vmatprep.subr.bf16.mxu0 0
    %2132 = vmatpush1.bf16.msra.mxu0 0
    %2133 = vmatprep.mubr.bf16.mxu0 0
    %2134 = vmatmul.mubr.bf16.gmra.mrb[0].mxu0 %v1874
    %v2135 = vpop.f32.mrb[0].mxu0
    %v2136 = vadd.f32 %v1927, %v2135
    %v2137 = vpop.f32.mrb[0].mxu0
    %v2138 = vpop.f32.mrb[0].mxu0
    %v2139 = vpop.f32.mrb[0].mxu0
    %2140 = vdwg.mxu0
    %v2141 = vadd.f32 %v2016, %v2056
    %v2142 = vadd.f32 %v2096, %v2136
    %v2143 = vadd.f32 %v2141, %v2142
    %v2144 = vadd.f32 %v2143, %v1976
    %v2145 = vlaneseq
    %v2146 = vshrl.u32 %v2145, 7
    %v2147 = vsub.s32 4, %v2146
    %v2148 = vrot.slane %v37, %v2147
    %v2149 = vadd.f32 %v2144, %v2148
    %vm2150 = vcmp.gt.f32.partialorder %v2149, 0.0
    %v2151 = vmul.f32 %v2149, 0.2
    %v2152 = vsel %vm2150, %v2149, %v2151
    %v2153 = vrot.slane %v2152, 4
    %v2154 = vadd.f32 %v2152, %v2153
    %v2155 = vrot.slane %v2154, 2
    %v2156 = vadd.f32 %v2154, %v2155
    %v2157 = vrot.slane %v2156, 1
    %v2158 = vadd.f32 %v2156, %v2157
    %v2159 = vrcp.pop 8.0
    %v2160 = vmul.f32 %v2158, %v2159
    %v2161 = vsub.f32 %v2152, %v2160
    %v2162 = vmul.f32 %v2161, %v2161
    %v2163 = vrot.slane %v2162, 4
    %v2164 = vadd.f32 %v2162, %v2163
    %v2165 = vrot.slane %v2164, 2
    %v2166 = vadd.f32 %v2164, %v2165
    %v2167 = vrot.slane %v2166, 1
    %v2168 = vadd.f32 %v2166, %v2167
    %v2169 = vmul.f32 %v2168, %v2159
    %v2170 = vadd.f32 %v2169, 0.8
    %v2171 = vrsqrt.pop %v2170
    %v2172 = vmul.f32 %v2161, %v2171
    %v2173 = vlaneseq
    %v2174 = vshrl.u32 %v2173, 7
    %v2175 = vsub.s32 5, %v2174
    %v2176 = vrot.slane %v37, %v2175
    %v2177 = vmul.f32 %v2172, %v2176
    %v2178 = vlaneseq
    %v2179 = vshrl.u32 %v2178, 7
    %v2180 = vsub.s32 6, %v2179
    %v2181 = vrot.slane %v37, %v2180
    %v2182 = vadd.f32 %v2177, %v2181
    %v2183 = vpack.c.bf16 %v2182, %v2182
    %v2184 = vld [vmem:[%s8] sm:$0xf]
    %v2185 = vld [vmem:[%s8 + $0x4] sm:$0xf]
    %v2186 = vld [vmem:[%s8 + $0x8] sm:$0xf]
    %v2187 = vld [vmem:[%s8 + $0xc] sm:$0xf]
    %v2188 = vld [vmem:[%s8 + $0x10] sm:$0xf]
    %v2189 = vld [vmem:[%s8 + $0x14] sm:$0xf]
    %v2190 = vld [vmem:[%s8 + $0x18] sm:$0xf]
    %v2191 = vld [vmem:[%s8 + $0x1c] sm:$0xf]
    %v2200 = vunpack.c.l.b16 %v2184
    %v2201 = vunpack.c.l.b16 %v2185
    %v2202 = vunpack.c.l.b16 %v2186
    %v2203 = vunpack.c.l.b16 %v2187
    %v2204 = vunpack.c.l.b16 %v2188
    %v2205 = vunpack.c.l.b16 %v2189
    %v2206 = vunpack.c.l.b16 %v2190
    %v2207 = vunpack.c.l.b16 %v2191
    %v2208 = vpack.c.b16 %v2201, %v2200
    %v2209 = vpack.c.b16 %v2203, %v2202
    %v2210 = vpack.c.b16 %v2205, %v2204
    %v2211 = vpack.c.b16 %v2207, %v2206
    %2216 = vst [vmem:[#allocation2] sm:$0xff] %v2208
    %2217 = vst [vmem:[#allocation2 + $0x8] sm:$0xff] %v2209
    %2218 = vst [vmem:[#allocation2 + $0x10] sm:$0xff] %v2210
    %2219 = vst [vmem:[#allocation2 + $0x18] sm:$0xff] %v2211
    %v2220 = vld [vmem:[%s8 + $0x20] sm:$0xf]
    %v2221 = vld [vmem:[%s8 + $0x24] sm:$0xf]
    %v2222 = vld [vmem:[%s8 + $0x28] sm:$0xf]
    %v2223 = vld [vmem:[%s8 + $0x2c] sm:$0xf]
    %v2224 = vld [vmem:[%s8 + $0x30] sm:$0xf]
    %v2225 = vld [vmem:[%s8 + $0x34] sm:$0xf]
    %v2226 = vld [vmem:[%s8 + $0x38] sm:$0xf]
    %v2227 = vld [vmem:[%s8 + $0x3c] sm:$0xf]
    %v2236 = vunpack.c.l.b16 %v2220
    %v2237 = vunpack.c.l.b16 %v2221
    %v2238 = vunpack.c.l.b16 %v2222
    %v2239 = vunpack.c.l.b16 %v2223
    %v2240 = vunpack.c.l.b16 %v2224
    %v2241 = vunpack.c.l.b16 %v2225
    %v2242 = vunpack.c.l.b16 %v2226
    %v2243 = vunpack.c.l.b16 %v2227
    %v2244 = vpack.c.b16 %v2237, %v2236
    %v2245 = vpack.c.b16 %v2239, %v2238
    %v2246 = vpack.c.b16 %v2241, %v2240
    %v2247 = vpack.c.b16 %v2243, %v2242
    %2252 = vst [vmem:[#allocation2 + $0x40] sm:$0xff] %v2244
    %2253 = vst [vmem:[#allocation2 + $0x48] sm:$0xff] %v2245
    %2254 = vst [vmem:[#allocation2 + $0x50] sm:$0xff] %v2246
    %2255 = vst [vmem:[#allocation2 + $0x58] sm:$0xff] %v2247
    %v2256 = vld [vmem:[%s8 + $0x40] sm:$0xf]
    %v2257 = vld [vmem:[%s8 + $0x44] sm:$0xf]
    %v2258 = vld [vmem:[%s8 + $0x48] sm:$0xf]
    %v2259 = vld [vmem:[%s8 + $0x4c] sm:$0xf]
    %v2260 = vld [vmem:[%s8 + $0x50] sm:$0xf]
    %v2261 = vld [vmem:[%s8 + $0x54] sm:$0xf]
    %v2262 = vld [vmem:[%s8 + $0x58] sm:$0xf]
    %v2263 = vld [vmem:[%s8 + $0x5c] sm:$0xf]
    %v2272 = vunpack.c.l.b16 %v2256
    %v2273 = vunpack.c.l.b16 %v2257
    %v2274 = vunpack.c.l.b16 %v2258
    %v2275 = vunpack.c.l.b16 %v2259
    %v2276 = vunpack.c.l.b16 %v2260
    %v2277 = vunpack.c.l.b16 %v2261
    %v2278 = vunpack.c.l.b16 %v2262
    %v2279 = vunpack.c.l.b16 %v2263
    %v2280 = vpack.c.b16 %v2273, %v2272
    %v2281 = vpack.c.b16 %v2275, %v2274
    %v2282 = vpack.c.b16 %v2277, %v2276
    %v2283 = vpack.c.b16 %v2279, %v2278
    %2288 = vst [vmem:[#allocation2 + $0x80] sm:$0xff] %v2280
    %2289 = vst [vmem:[#allocation2 + $0x88] sm:$0xff] %v2281
    %2290 = vst [vmem:[#allocation2 + $0x90] sm:$0xff] %v2282
    %2291 = vst [vmem:[#allocation2 + $0x98] sm:$0xff] %v2283
    %v2292 = vld [vmem:[%s8 + $0x60] sm:$0xf]
    %v2293 = vld [vmem:[%s8 + $0x64] sm:$0xf]
    %v2294 = vld [vmem:[%s8 + $0x68] sm:$0xf]
    %v2295 = vld [vmem:[%s8 + $0x6c] sm:$0xf]
    %v2296 = vld [vmem:[%s8 + $0x70] sm:$0xf]
    %v2297 = vld [vmem:[%s8 + $0x74] sm:$0xf]
    %v2298 = vld [vmem:[%s8 + $0x78] sm:$0xf]
    %v2299 = vld [vmem:[%s8 + $0x7c] sm:$0xf]
    %v2308 = vunpack.c.l.b16 %v2292
    %v2309 = vunpack.c.l.b16 %v2293
    %v2310 = vunpack.c.l.b16 %v2294
    %v2311 = vunpack.c.l.b16 %v2295
    %v2312 = vunpack.c.l.b16 %v2296
    %v2313 = vunpack.c.l.b16 %v2297
    %v2314 = vunpack.c.l.b16 %v2298
    %v2315 = vunpack.c.l.b16 %v2299
    %v2316 = vpack.c.b16 %v2309, %v2308
    %v2317 = vpack.c.b16 %v2311, %v2310
    %v2318 = vpack.c.b16 %v2313, %v2312
    %v2319 = vpack.c.b16 %v2315, %v2314
    %2324 = vst [vmem:[#allocation2 + $0xc0] sm:$0xff] %v2316
    %2325 = vst [vmem:[#allocation2 + $0xc8] sm:$0xff] %v2317
    %2326 = vst [vmem:[#allocation2 + $0xd0] sm:$0xff] %v2318
    %2327 = vst [vmem:[#allocation2 + $0xd8] sm:$0xff] %v2319
    %v2328 = vld [vmem:[%s8 + $0x80] sm:$0xf]
    %v2329 = vld [vmem:[%s8 + $0x84] sm:$0xf]
    %v2330 = vld [vmem:[%s8 + $0x88] sm:$0xf]
    %v2331 = vld [vmem:[%s8 + $0x8c] sm:$0xf]
    %v2332 = vld [vmem:[%s8 + $0x90] sm:$0xf]
    %v2333 = vld [vmem:[%s8 + $0x94] sm:$0xf]
    %v2334 = vld [vmem:[%s8 + $0x98] sm:$0xf]
    %v2335 = vld [vmem:[%s8 + $0x9c] sm:$0xf]
    %v2344 = vunpack.c.l.b16 %v2328
    %v2345 = vunpack.c.l.b16 %v2329
    %v2346 = vunpack.c.l.b16 %v2330
    %v2347 = vunpack.c.l.b16 %v2331
    %v2348 = vunpack.c.l.b16 %v2332
    %v2349 = vunpack.c.l.b16 %v2333
    %v2350 = vunpack.c.l.b16 %v2334
    %v2351 = vunpack.c.l.b16 %v2335
    %v2352 = vpack.c.b16 %v2345, %v2344
    %v2353 = vpack.c.b16 %v2347, %v2346
    %v2354 = vpack.c.b16 %v2349, %v2348
    %v2355 = vpack.c.b16 %v2351, %v2350
    %2360 = vst [vmem:[#allocation2 + $0x100] sm:$0xff] %v2352
    %2361 = vst [vmem:[#allocation2 + $0x108] sm:$0xff] %v2353
    %2362 = vst [vmem:[#allocation2 + $0x110] sm:$0xff] %v2354
    %2363 = vst [vmem:[#allocation2 + $0x118] sm:$0xff] %v2355
    %v2364 = vld [vmem:[%s8 + $0xa0] sm:$0xf]
    %v2365 = vld [vmem:[%s8 + $0xa4] sm:$0xf]
    %v2366 = vld [vmem:[%s8 + $0xa8] sm:$0xf]
    %v2367 = vld [vmem:[%s8 + $0xac] sm:$0xf]
    %v2368 = vld [vmem:[%s8 + $0xb0] sm:$0xf]
    %v2369 = vld [vmem:[%s8 + $0xb4] sm:$0xf]
    %v2370 = vld [vmem:[%s8 + $0xb8] sm:$0xf]
    %v2371 = vld [vmem:[%s8 + $0xbc] sm:$0xf]
    %v2380 = vunpack.c.l.b16 %v2364
    %v2381 = vunpack.c.l.b16 %v2365
    %v2382 = vunpack.c.l.b16 %v2366
    %v2383 = vunpack.c.l.b16 %v2367
    %v2384 = vunpack.c.l.b16 %v2368
    %v2385 = vunpack.c.l.b16 %v2369
    %v2386 = vunpack.c.l.b16 %v2370
    %v2387 = vunpack.c.l.b16 %v2371
    %v2388 = vpack.c.b16 %v2381, %v2380
    %v2389 = vpack.c.b16 %v2383, %v2382
    %v2390 = vpack.c.b16 %v2385, %v2384
    %v2391 = vpack.c.b16 %v2387, %v2386
    %2396 = vst [vmem:[#allocation2 + $0x140] sm:$0xff] %v2388
    %2397 = vst [vmem:[#allocation2 + $0x148] sm:$0xff] %v2389
    %2398 = vst [vmem:[#allocation2 + $0x150] sm:$0xff] %v2390
    %2399 = vst [vmem:[#allocation2 + $0x158] sm:$0xff] %v2391
    %v2400 = vld [vmem:[%s8 + $0xc0] sm:$0xf]
    %v2401 = vld [vmem:[%s8 + $0xc4] sm:$0xf]
    %v2402 = vld [vmem:[%s8 + $0xc8] sm:$0xf]
    %v2403 = vld [vmem:[%s8 + $0xcc] sm:$0xf]
    %v2404 = vld [vmem:[%s8 + $0xd0] sm:$0xf]
    %v2405 = vld [vmem:[%s8 + $0xd4] sm:$0xf]
    %v2406 = vld [vmem:[%s8 + $0xd8] sm:$0xf]
    %v2407 = vld [vmem:[%s8 + $0xdc] sm:$0xf]
    %v2416 = vunpack.c.l.b16 %v2400
    %v2417 = vunpack.c.l.b16 %v2401
    %v2418 = vunpack.c.l.b16 %v2402
    %v2419 = vunpack.c.l.b16 %v2403
    %v2420 = vunpack.c.l.b16 %v2404
    %v2421 = vunpack.c.l.b16 %v2405
    %v2422 = vunpack.c.l.b16 %v2406
    %v2423 = vunpack.c.l.b16 %v2407
    %v2424 = vpack.c.b16 %v2417, %v2416
    %v2425 = vpack.c.b16 %v2419, %v2418
    %v2426 = vpack.c.b16 %v2421, %v2420
    %v2427 = vpack.c.b16 %v2423, %v2422
    %2432 = vst [vmem:[#allocation2 + $0x180] sm:$0xff] %v2424
    %2433 = vst [vmem:[#allocation2 + $0x188] sm:$0xff] %v2425
    %2434 = vst [vmem:[#allocation2 + $0x190] sm:$0xff] %v2426
    %2435 = vst [vmem:[#allocation2 + $0x198] sm:$0xff] %v2427
    %v2436 = vld [vmem:[%s8 + $0xe0] sm:$0xf]
    %v2437 = vld [vmem:[%s8 + $0xe4] sm:$0xf]
    %v2438 = vld [vmem:[%s8 + $0xe8] sm:$0xf]
    %v2439 = vld [vmem:[%s8 + $0xec] sm:$0xf]
    %v2440 = vld [vmem:[%s8 + $0xf0] sm:$0xf]
    %v2441 = vld [vmem:[%s8 + $0xf4] sm:$0xf]
    %v2442 = vld [vmem:[%s8 + $0xf8] sm:$0xf]
    %v2443 = vld [vmem:[%s8 + $0xfc] sm:$0xf]
    %v2452 = vunpack.c.l.b16 %v2436
    %v2453 = vunpack.c.l.b16 %v2437
    %v2454 = vunpack.c.l.b16 %v2438
    %v2455 = vunpack.c.l.b16 %v2439
    %v2456 = vunpack.c.l.b16 %v2440
    %v2457 = vunpack.c.l.b16 %v2441
    %v2458 = vunpack.c.l.b16 %v2442
    %v2459 = vunpack.c.l.b16 %v2443
    %v2460 = vpack.c.b16 %v2453, %v2452
    %v2461 = vpack.c.b16 %v2455, %v2454
    %v2462 = vpack.c.b16 %v2457, %v2456
    %v2463 = vpack.c.b16 %v2459, %v2458
    %2468 = vst [vmem:[#allocation2 + $0x1c0] sm:$0xff] %v2460
    %2469 = vst [vmem:[#allocation2 + $0x1c8] sm:$0xff] %v2461
    %2470 = vst [vmem:[#allocation2 + $0x1d0] sm:$0xff] %v2462
    %2471 = vst [vmem:[#allocation2 + $0x1d8] sm:$0xff] %v2463
    %v2472 = vld [vmem:[%s8 + $0x100] sm:$0xf]
    %v2473 = vld [vmem:[%s8 + $0x104] sm:$0xf]
    %v2474 = vld [vmem:[%s8 + $0x108] sm:$0xf]
    %v2475 = vld [vmem:[%s8 + $0x10c] sm:$0xf]
    %v2476 = vld [vmem:[%s8 + $0x110] sm:$0xf]
    %v2477 = vld [vmem:[%s8 + $0x114] sm:$0xf]
    %v2478 = vld [vmem:[%s8 + $0x118] sm:$0xf]
    %v2479 = vld [vmem:[%s8 + $0x11c] sm:$0xf]
    %v2488 = vunpack.c.l.b16 %v2472
    %v2489 = vunpack.c.l.b16 %v2473
    %v2490 = vunpack.c.l.b16 %v2474
    %v2491 = vunpack.c.l.b16 %v2475
    %v2492 = vunpack.c.l.b16 %v2476
    %v2493 = vunpack.c.l.b16 %v2477
    %v2494 = vunpack.c.l.b16 %v2478
    %v2495 = vunpack.c.l.b16 %v2479
    %v2496 = vpack.c.b16 %v2489, %v2488
    %v2497 = vpack.c.b16 %v2491, %v2490
    %v2498 = vpack.c.b16 %v2493, %v2492
    %v2499 = vpack.c.b16 %v2495, %v2494
    %2504 = vst [vmem:[#allocation2 + $0x200] sm:$0xff] %v2496
    %2505 = vst [vmem:[#allocation2 + $0x208] sm:$0xff] %v2497
    %2506 = vst [vmem:[#allocation2 + $0x210] sm:$0xff] %v2498
    %2507 = vst [vmem:[#allocation2 + $0x218] sm:$0xff] %v2499
    %v2508 = vld [vmem:[%s7] sm:$0xf]
    %v2509 = vld [vmem:[%s7 + $0x4] sm:$0xf]
    %v2510 = vld [vmem:[%s7 + $0x8] sm:$0xf]
    %v2511 = vld [vmem:[%s7 + $0xc] sm:$0xf]
    %v2512 = vld [vmem:[%s7 + $0x10] sm:$0xf]
    %v2513 = vld [vmem:[%s7 + $0x14] sm:$0xf]
    %v2514 = vld [vmem:[%s7 + $0x18] sm:$0xf]
    %v2515 = vld [vmem:[%s7 + $0x1c] sm:$0xf]
    %v2516 = vld [vmem:[%s7 + $0x20] sm:$0xf]
    %v2526 = vunpack.c.l.b16 %v2508
    %v2527 = vunpack.c.l.b16 %v2509
    %v2528 = vunpack.c.l.b16 %v2510
    %v2529 = vunpack.c.l.b16 %v2511
    %v2530 = vunpack.c.l.b16 %v2512
    %v2531 = vunpack.c.l.b16 %v2513
    %v2532 = vunpack.c.l.b16 %v2514
    %v2533 = vunpack.c.l.b16 %v2515
    %v2534 = vunpack.c.l.b16 %v2516
    %v2535 = vpack.c.b16 %v2527, %v2526
    %v2536 = vpack.c.b16 %v2529, %v2528
    %v2537 = vpack.c.b16 %v2531, %v2530
    %v2538 = vpack.c.b16 %v2533, %v2532
    %v2539 = vpack.c.b16 %v2534, %v2534
    %vm2540 = vcmask 64512
    %v2542 = vsel %vm2540, %v2535, 0
    %v2545 = vsel %vm2540, %v2536, 0
    %v2548 = vsel %vm2540, %v2537, 0
    %v2551 = vsel %vm2540, %v2538, 0
    %v2554 = vsel %vm2540, %v2539, 0
    %vm2556 = vcmask 1043456
    %v2558 = vsel %vm2556, %v2183, 0
    %2560 = vmatprep.subr.bf16.mxu0 0
    %2561 = vmatpush1.bf16.msra.mxu0 %v2558
    %2562 = vmatprep.subr.bf16.mxu0 0
    %2563 = vmatpush1.bf16.msra.mxu0 0
    %2564 = vmatprep.subr.bf16.mxu0 0
    %2565 = vmatpush1.bf16.msra.mxu0 0
    %2566 = vmatprep.subr.bf16.mxu0 0
    %2567 = vmatpush1.bf16.msra.mxu0 0
    %2568 = vmatprep.subr.bf16.mxu0 0
    %2569 = vmatpush1.bf16.msra.mxu0 0
    %2570 = vmatprep.subr.bf16.mxu0 0
    %2571 = vmatpush1.bf16.msra.mxu0 0
    %2572 = vmatprep.subr.bf16.mxu0 0
    %2573 = vmatpush1.bf16.msra.mxu0 0
    %2574 = vmatprep.subr.bf16.mxu0 0
    %2575 = vmatpush1.bf16.msra.mxu0 0
    %2576 = vmatprep.subr.bf16.mxu0 0
    %2577 = vmatpush1.bf16.msra.mxu0 0
    %2578 = vmatprep.subr.bf16.mxu0 0
    %2579 = vmatpush1.bf16.msra.mxu0 0
    %2580 = vmatprep.subr.bf16.mxu0 0
    %2581 = vmatpush1.bf16.msra.mxu0 0
    %2582 = vmatprep.subr.bf16.mxu0 0
    %2583 = vmatpush1.bf16.msra.mxu0 0
    %2584 = vmatprep.subr.bf16.mxu0 0
    %2585 = vmatpush1.bf16.msra.mxu0 0
    %2586 = vmatprep.subr.bf16.mxu0 0
    %2587 = vmatpush1.bf16.msra.mxu0 0
    %2588 = vmatprep.subr.bf16.mxu0 0
    %2589 = vmatpush1.bf16.msra.mxu0 0
    %2590 = vmatprep.subr.bf16.mxu0 0
    %2591 = vmatpush1.bf16.msra.mxu0 0
    %2592 = vmatprep.mubr.bf16.mxu0 0
    %2593 = vmatmul.mubr.bf16.gmra.mrb[0].mxu0 %v2542
    %v2594 = vpop.f32.mrb[0].mxu0
    %v2595 = vadd.f32 0.0, %v2594
    %v2596 = vpop.f32.mrb[0].mxu0
    %v2597 = vpop.f32.mrb[0].mxu0
    %v2598 = vadd.f32 0.0, %v2597
    %v2599 = vpop.f32.mrb[0].mxu0
    %2600 = vmatprep.mubr.bf16.mxu0 0
    %2601 = vmatmul.mubr.bf16.gmra.mrb[0].mxu0 %v2545
    %v2602 = vpop.f32.mrb[0].mxu0
    %v2603 = vadd.f32 0.0, %v2602
    %v2604 = vpop.f32.mrb[0].mxu0
    %v2605 = vpop.f32.mrb[0].mxu0
    %v2606 = vadd.f32 0.0, %v2605
    %v2607 = vpop.f32.mrb[0].mxu0
    %2608 = vmatprep.mubr.bf16.mxu0 0
    %2609 = vmatmul.mubr.bf16.gmra.mrb[0].mxu0 %v2548
    %v2610 = vpop.f32.mrb[0].mxu0
    %v2611 = vadd.f32 0.0, %v2610
    %v2612 = vpop.f32.mrb[0].mxu0
    %v2613 = vpop.f32.mrb[0].mxu0
    %v2614 = vadd.f32 0.0, %v2613
    %v2615 = vpop.f32.mrb[0].mxu0
    %2616 = vmatprep.mubr.bf16.mxu0 0
    %2617 = vmatmul.mubr.bf16.gmra.mrb[0].mxu0 %v2551
    %v2618 = vpop.f32.mrb[0].mxu0
    %v2619 = vadd.f32 0.0, %v2618
    %v2620 = vpop.f32.mrb[0].mxu0
    %v2621 = vpop.f32.mrb[0].mxu0
    %v2622 = vadd.f32 0.0, %v2621
    %v2623 = vpop.f32.mrb[0].mxu0
    %2624 = vmatprep.mubr.bf16.mxu0 0
    %2625 = vmatmul.mubr.bf16.gmra.mrb[0].mxu0 %v2554
    %v2626 = vpop.f32.mrb[0].mxu0
    %v2627 = vadd.f32 0.0, %v2626
    %v2628 = vpop.f32.mrb[0].mxu0
    %v2629 = vpop.f32.mrb[0].mxu0
    %v2630 = vpop.f32.mrb[0].mxu0
    %2631 = vdwg.mxu0
    %v2632 = vpack.c.bf16 %v2595, %v2595
    %v2633 = vld [vmem:[#allocation2] sm:$0xff]
    %v2634 = vld [vmem:[#allocation2 + $0x8] sm:$0xff]
    %v2635 = vld [vmem:[#allocation2 + $0x10] sm:$0xff]
    %v2636 = vld [vmem:[#allocation2 + $0x18] sm:$0xff]
    %v2637 = vld [vmem:[#allocation2 + $0x20] sm:$0xff]
    %v2638 = vld [vmem:[#allocation2 + $0x28] sm:$0xff]
    %v2639 = vld [vmem:[#allocation2 + $0x30] sm:$0xff]
    %v2640 = vld [vmem:[#allocation2 + $0x38] sm:$0xff]
    %v2641 = vpack.c.bf16 %v2598, %v2598
    %v2642 = vld [vmem:[#allocation2 + $0x40] sm:$0xff]
    %v2643 = vld [vmem:[#allocation2 + $0x48] sm:$0xff]
    %v2644 = vld [vmem:[#allocation2 + $0x50] sm:$0xff]
    %v2645 = vld [vmem:[#allocation2 + $0x58] sm:$0xff]
    %v2646 = vld [vmem:[#allocation2 + $0x60] sm:$0xff]
    %v2647 = vld [vmem:[#allocation2 + $0x68] sm:$0xff]
    %v2648 = vld [vmem:[#allocation2 + $0x70] sm:$0xff]
    %v2649 = vld [vmem:[#allocation2 + $0x78] sm:$0xff]
    %2650 = vmatprep.subr.bf16.mxu0 0
    %2651 = vmatpush1.bf16.msra.mxu0 %v2642
    %2652 = vmatprep.subr.bf16.mxu0 0
    %2653 = vmatpush1.bf16.msra.mxu0 %v2643
    %2654 = vmatprep.subr.bf16.mxu0 0
    %2655 = vmatpush1.bf16.msra.mxu0 %v2644
    %2656 = vmatprep.subr.bf16.mxu0 0
    %2657 = vmatpush1.bf16.msra.mxu0 %v2645
    %2658 = vmatprep.subr.bf16.mxu0 0
    %2659 = vmatpush1.bf16.msra.mxu0 %v2646
    %2660 = vmatprep.subr.bf16.mxu0 0
    %2661 = vmatpush1.bf16.msra.mxu0 %v2647
    %2662 = vmatprep.subr.bf16.mxu0 0
    %2663 = vmatpush1.bf16.msra.mxu0 %v2648
    %2664 = vmatprep.subr.bf16.mxu0 0
    %2665 = vmatpush1.bf16.msra.mxu0 %v2649
    %2666 = vmatprep.subr.bf16.mxu0 0
    %2667 = vmatpush1.bf16.msra.mxu0 0
    %2668 = vmatprep.subr.bf16.mxu0 0
    %2669 = vmatpush1.bf16.msra.mxu0 0
    %2670 = vmatprep.subr.bf16.mxu0 0
    %2671 = vmatpush1.bf16.msra.mxu0 0
    %2672 = vmatprep.subr.bf16.mxu0 0
    %2673 = vmatpush1.bf16.msra.mxu0 0
    %2674 = vmatprep.subr.bf16.mxu0 0
    %2675 = vmatpush1.bf16.msra.mxu0 0
    %2676 = vmatprep.subr.bf16.mxu0 0
    %2677 = vmatpush1.bf16.msra.mxu0 0
    %2678 = vmatprep.subr.bf16.mxu0 0
    %2679 = vmatpush1.bf16.msra.mxu0 0
    %2680 = vmatprep.subr.bf16.mxu0 0
    %2681 = vmatpush1.bf16.msra.mxu0 0
    %2682 = vmatprep.mubr.bf16.mxu0 0
    %2683 = vmatmul.mubr.bf16.gmra.mrb[0].mxu0 %v2641
    %v2684 = vpop.f32.mrb[0].mxu0
    %v2685 = vadd.f32 0.0, %v2684
    %v2686 = vpop.f32.mrb[0].mxu0
    %v2687 = vpop.f32.mrb[0].mxu0
    %v2688 = vpop.f32.mrb[0].mxu0
    %2689 = vdwg.mxu0
    %v2690 = vpack.c.bf16 %v2603, %v2603
    %v2691 = vld [vmem:[#allocation2 + $0x80] sm:$0xff]
    %v2692 = vld [vmem:[#allocation2 + $0x88] sm:$0xff]
    %v2693 = vld [vmem:[#allocation2 + $0x90] sm:$0xff]
    %v2694 = vld [vmem:[#allocation2 + $0x98] sm:$0xff]
    %v2695 = vld [vmem:[#allocation2 + $0xa0] sm:$0xff]
    %v2696 = vld [vmem:[#allocation2 + $0xa8] sm:$0xff]
    %v2697 = vld [vmem:[#allocation2 + $0xb0] sm:$0xff]
    %v2698 = vld [vmem:[#allocation2 + $0xb8] sm:$0xff]
    %v2699 = vpack.c.bf16 %v2606, %v2606
    %v2700 = vld [vmem:[#allocation2 + $0xc0] sm:$0xff]
    %v2701 = vld [vmem:[#allocation2 + $0xc8] sm:$0xff]
    %v2702 = vld [vmem:[#allocation2 + $0xd0] sm:$0xff]
    %v2703 = vld [vmem:[#allocation2 + $0xd8] sm:$0xff]
    %v2704 = vld [vmem:[#allocation2 + $0xe0] sm:$0xff]
    %v2705 = vld [vmem:[#allocation2 + $0xe8] sm:$0xff]
    %v2706 = vld [vmem:[#allocation2 + $0xf0] sm:$0xff]
    %v2707 = vld [vmem:[#allocation2 + $0xf8] sm:$0xff]
    %2708 = vmatprep.subr.bf16.mxu0 0
    %2709 = vmatpush1.bf16.msra.mxu0 %v2700
    %2710 = vmatprep.subr.bf16.mxu0 0
    %2711 = vmatpush1.bf16.msra.mxu0 %v2701
    %2712 = vmatprep.subr.bf16.mxu0 0
    %2713 = vmatpush1.bf16.msra.mxu0 %v2702
    %2714 = vmatprep.subr.bf16.mxu0 0
    %2715 = vmatpush1.bf16.msra.mxu0 %v2703
    %2716 = vmatprep.subr.bf16.mxu0 0
    %2717 = vmatpush1.bf16.msra.mxu0 %v2704
    %2718 = vmatprep.subr.bf16.mxu0 0
    %2719 = vmatpush1.bf16.msra.mxu0 %v2705
    %2720 = vmatprep.subr.bf16.mxu0 0
    %2721 = vmatpush1.bf16.msra.mxu0 %v2706
    %2722 = vmatprep.subr.bf16.mxu0 0
    %2723 = vmatpush1.bf16.msra.mxu0 %v2707
    %2724 = vmatprep.subr.bf16.mxu0 0
    %2725 = vmatpush1.bf16.msra.mxu0 0
    %2726 = vmatprep.subr.bf16.mxu0 0
    %2727 = vmatpush1.bf16.msra.mxu0 0
    %2728 = vmatprep.subr.bf16.mxu0 0
    %2729 = vmatpush1.bf16.msra.mxu0 0
    %2730 = vmatprep.subr.bf16.mxu0 0
    %2731 = vmatpush1.bf16.msra.mxu0 0
    %2732 = vmatprep.subr.bf16.mxu0 0
    %2733 = vmatpush1.bf16.msra.mxu0 0
    %2734 = vmatprep.subr.bf16.mxu0 0
    %2735 = vmatpush1.bf16.msra.mxu0 0
    %2736 = vmatprep.subr.bf16.mxu0 0
    %2737 = vmatpush1.bf16.msra.mxu0 0
    %2738 = vmatprep.subr.bf16.mxu0 0
    %2739 = vmatpush1.bf16.msra.mxu0 0
    %2740 = vmatprep.mubr.bf16.mxu0 0
    %2741 = vmatmul.mubr.bf16.gmra.mrb[0].mxu0 %v2699
    %v2742 = vpop.f32.mrb[0].mxu0
    %v2743 = vadd.f32 0.0, %v2742
    %v2744 = vpop.f32.mrb[0].mxu0
    %v2745 = vpop.f32.mrb[0].mxu0
    %v2746 = vpop.f32.mrb[0].mxu0
    %2747 = vdwg.mxu0
    %v2748 = vpack.c.bf16 %v2611, %v2611
    %v2749 = vld [vmem:[#allocation2 + $0x100] sm:$0xff]
    %v2750 = vld [vmem:[#allocation2 + $0x108] sm:$0xff]
    %v2751 = vld [vmem:[#allocation2 + $0x110] sm:$0xff]
    %v2752 = vld [vmem:[#allocation2 + $0x118] sm:$0xff]
    %v2753 = vld [vmem:[#allocation2 + $0x120] sm:$0xff]
    %v2754 = vld [vmem:[#allocation2 + $0x128] sm:$0xff]
    %v2755 = vld [vmem:[#allocation2 + $0x130] sm:$0xff]
    %v2756 = vld [vmem:[#allocation2 + $0x138] sm:$0xff]
    %v2757 = vpack.c.bf16 %v2614, %v2614
    %v2758 = vld [vmem:[#allocation2 + $0x140] sm:$0xff]
    %v2759 = vld [vmem:[#allocation2 + $0x148] sm:$0xff]
    %v2760 = vld [vmem:[#allocation2 + $0x150] sm:$0xff]
    %v2761 = vld [vmem:[#allocation2 + $0x158] sm:$0xff]
    %v2762 = vld [vmem:[#allocation2 + $0x160] sm:$0xff]
    %v2763 = vld [vmem:[#allocation2 + $0x168] sm:$0xff]
    %v2764 = vld [vmem:[#allocation2 + $0x170] sm:$0xff]
    %v2765 = vld [vmem:[#allocation2 + $0x178] sm:$0xff]
    %2766 = vmatprep.subr.bf16.mxu0 0
    %2767 = vmatpush1.bf16.msra.mxu0 %v2758
    %2768 = vmatprep.subr.bf16.mxu0 0
    %2769 = vmatpush1.bf16.msra.mxu0 %v2759
    %2770 = vmatprep.subr.bf16.mxu0 0
    %2771 = vmatpush1.bf16.msra.mxu0 %v2760
    %2772 = vmatprep.subr.bf16.mxu0 0
    %2773 = vmatpush1.bf16.msra.mxu0 %v2761
    %2774 = vmatprep.subr.bf16.mxu0 0
    %2775 = vmatpush1.bf16.msra.mxu0 %v2762
    %2776 = vmatprep.subr.bf16.mxu0 0
    %2777 = vmatpush1.bf16.msra.mxu0 %v2763
    %2778 = vmatprep.subr.bf16.mxu0 0
    %2779 = vmatpush1.bf16.msra.mxu0 %v2764
    %2780 = vmatprep.subr.bf16.mxu0 0
    %2781 = vmatpush1.bf16.msra.mxu0 %v2765
    %2782 = vmatprep.subr.bf16.mxu0 0
    %2783 = vmatpush1.bf16.msra.mxu0 0
    %2784 = vmatprep.subr.bf16.mxu0 0
    %2785 = vmatpush1.bf16.msra.mxu0 0
    %2786 = vmatprep.subr.bf16.mxu0 0
    %2787 = vmatpush1.bf16.msra.mxu0 0
    %2788 = vmatprep.subr.bf16.mxu0 0
    %2789 = vmatpush1.bf16.msra.mxu0 0
    %2790 = vmatprep.subr.bf16.mxu0 0
    %2791 = vmatpush1.bf16.msra.mxu0 0
    %2792 = vmatprep.subr.bf16.mxu0 0
    %2793 = vmatpush1.bf16.msra.mxu0 0
    %2794 = vmatprep.subr.bf16.mxu0 0
    %2795 = vmatpush1.bf16.msra.mxu0 0
    %2796 = vmatprep.subr.bf16.mxu0 0
    %2797 = vmatpush1.bf16.msra.mxu0 0
    %2798 = vmatprep.mubr.bf16.mxu0 0
    %2799 = vmatmul.mubr.bf16.gmra.mrb[0].mxu0 %v2757
    %v2800 = vpop.f32.mrb[0].mxu0
    %v2801 = vadd.f32 0.0, %v2800
    %v2802 = vpop.f32.mrb[0].mxu0
    %v2803 = vpop.f32.mrb[0].mxu0
    %v2804 = vpop.f32.mrb[0].mxu0
    %2805 = vdwg.mxu0
    %v2806 = vpack.c.bf16 %v2619, %v2619
    %v2807 = vld [vmem:[#allocation2 + $0x180] sm:$0xff]
    %v2808 = vld [vmem:[#allocation2 + $0x188] sm:$0xff]
    %v2809 = vld [vmem:[#allocation2 + $0x190] sm:$0xff]
    %v2810 = vld [vmem:[#allocation2 + $0x198] sm:$0xff]
    %v2811 = vld [vmem:[#allocation2 + $0x1a0] sm:$0xff]
    %v2812 = vld [vmem:[#allocation2 + $0x1a8] sm:$0xff]
    %v2813 = vld [vmem:[#allocation2 + $0x1b0] sm:$0xff]
    %v2814 = vld [vmem:[#allocation2 + $0x1b8] sm:$0xff]
    %v2815 = vpack.c.bf16 %v2622, %v2622
    %v2816 = vld [vmem:[#allocation2 + $0x1c0] sm:$0xff]
    %v2817 = vld [vmem:[#allocation2 + $0x1c8] sm:$0xff]
    %v2818 = vld [vmem:[#allocation2 + $0x1d0] sm:$0xff]
    %v2819 = vld [vmem:[#allocation2 + $0x1d8] sm:$0xff]
    %v2820 = vld [vmem:[#allocation2 + $0x1e0] sm:$0xff]
    %v2821 = vld [vmem:[#allocation2 + $0x1e8] sm:$0xff]
    %v2822 = vld [vmem:[#allocation2 + $0x1f0] sm:$0xff]
    %v2823 = vld [vmem:[#allocation2 + $0x1f8] sm:$0xff]
    %2824 = vmatprep.subr.bf16.mxu0 0
    %2825 = vmatpush1.bf16.msra.mxu0 %v2816
    %2826 = vmatprep.subr.bf16.mxu0 0
    %2827 = vmatpush1.bf16.msra.mxu0 %v2817
    %2828 = vmatprep.subr.bf16.mxu0 0
    %2829 = vmatpush1.bf16.msra.mxu0 %v2818
    %2830 = vmatprep.subr.bf16.mxu0 0
    %2831 = vmatpush1.bf16.msra.mxu0 %v2819
    %2832 = vmatprep.subr.bf16.mxu0 0
    %2833 = vmatpush1.bf16.msra.mxu0 %v2820
    %2834 = vmatprep.subr.bf16.mxu0 0
    %2835 = vmatpush1.bf16.msra.mxu0 %v2821
    %2836 = vmatprep.subr.bf16.mxu0 0
    %2837 = vmatpush1.bf16.msra.mxu0 %v2822
    %2838 = vmatprep.subr.bf16.mxu0 0
    %2839 = vmatpush1.bf16.msra.mxu0 %v2823
    %2840 = vmatprep.subr.bf16.mxu0 0
    %2841 = vmatpush1.bf16.msra.mxu0 0
    %2842 = vmatprep.subr.bf16.mxu0 0
    %2843 = vmatpush1.bf16.msra.mxu0 0
    %2844 = vmatprep.subr.bf16.mxu0 0
    %2845 = vmatpush1.bf16.msra.mxu0 0
    %2846 = vmatprep.subr.bf16.mxu0 0
    %2847 = vmatpush1.bf16.msra.mxu0 0
    %2848 = vmatprep.subr.bf16.mxu0 0
    %2849 = vmatpush1.bf16.msra.mxu0 0
    %2850 = vmatprep.subr.bf16.mxu0 0
    %2851 = vmatpush1.bf16.msra.mxu0 0
    %2852 = vmatprep.subr.bf16.mxu0 0
    %2853 = vmatpush1.bf16.msra.mxu0 0
    %2854 = vmatprep.subr.bf16.mxu0 0
    %2855 = vmatpush1.bf16.msra.mxu0 0
    %2856 = vmatprep.mubr.bf16.mxu0 0
    %2857 = vmatmul.mubr.bf16.gmra.mrb[0].mxu0 %v2815
    %v2858 = vpop.f32.mrb[0].mxu0
    %v2859 = vadd.f32 0.0, %v2858
    %v2860 = vpop.f32.mrb[0].mxu0
    %v2861 = vpop.f32.mrb[0].mxu0
    %v2862 = vpop.f32.mrb[0].mxu0
    %2863 = vdwg.mxu0
    %v2864 = vpack.c.bf16 %v2627, %v2627
    %v2865 = vld [vmem:[#allocation2 + $0x200] sm:$0xff]
    %v2866 = vld [vmem:[#allocation2 + $0x208] sm:$0xff]
    %v2867 = vld [vmem:[#allocation2 + $0x210] sm:$0xff]
    %v2868 = vld [vmem:[#allocation2 + $0x218] sm:$0xff]
    %v2869 = vld [vmem:[#allocation2 + $0x220] sm:$0xff]
    %v2870 = vld [vmem:[#allocation2 + $0x228] sm:$0xff]
    %v2871 = vld [vmem:[#allocation2 + $0x230] sm:$0xff]
    %v2872 = vld [vmem:[#allocation2 + $0x238] sm:$0xff]
    %2873 = vmatprep.subr.bf16.mxu0 0
    %2874 = vmatpush1.bf16.msra.mxu0 %v2865
    %2875 = vmatprep.subr.bf16.mxu0 0
    %2876 = vmatpush1.bf16.msra.mxu0 %v2866
    %2877 = vmatprep.subr.bf16.mxu0 0
    %2878 = vmatpush1.bf16.msra.mxu0 %v2867
    %2879 = vmatprep.subr.bf16.mxu0 0
    %2880 = vmatpush1.bf16.msra.mxu0 %v2868
    %2881 = vmatprep.subr.bf16.mxu0 0
    %2882 = vmatpush1.bf16.msra.mxu0 %v2869
    %2883 = vmatprep.subr.bf16.mxu0 0
    %2884 = vmatpush1.bf16.msra.mxu0 %v2870
    %2885 = vmatprep.subr.bf16.mxu0 0
    %2886 = vmatpush1.bf16.msra.mxu0 %v2871
    %2887 = vmatprep.subr.bf16.mxu0 0
    %2888 = vmatpush1.bf16.msra.mxu0 %v2872
    %2889 = vmatprep.subr.bf16.mxu0 0
    %2890 = vmatpush1.bf16.msra.mxu0 0
    %2891 = vmatprep.subr.bf16.mxu0 0
    %2892 = vmatpush1.bf16.msra.mxu0 0
    %2893 = vmatprep.subr.bf16.mxu0 0
    %2894 = vmatpush1.bf16.msra.mxu0 0
    %2895 = vmatprep.subr.bf16.mxu0 0
    %2896 = vmatpush1.bf16.msra.mxu0 0
    %2897 = vmatprep.subr.bf16.mxu0 0
    %2898 = vmatpush1.bf16.msra.mxu0 0
    %2899 = vmatprep.subr.bf16.mxu0 0
    %2900 = vmatpush1.bf16.msra.mxu0 0
    %2901 = vmatprep.subr.bf16.mxu0 0
    %2902 = vmatpush1.bf16.msra.mxu0 0
    %2903 = vmatprep.subr.bf16.mxu0 0
    %2904 = vmatpush1.bf16.msra.mxu0 0
    %2905 = vmatprep.mubr.bf16.mxu0 0
    %2906 = vmatmul.mubr.bf16.gmra.mrb[0].mxu0 %v2864
    %v2907 = vpop.f32.mrb[0].mxu0
    %v2908 = vadd.f32 0.0, %v2907
    %v2909 = vpop.f32.mrb[0].mxu0
    %v2910 = vpop.f32.mrb[0].mxu0
    %v2911 = vpop.f32.mrb[0].mxu0
    %2912 = vdwg.mxu0
    %2913 = vmatprep.subr.bf16.mxu0 0
    %2914 = vmatpush1.bf16.msra.mxu0 %v2633
    %2915 = vmatprep.subr.bf16.mxu0 0
    %2916 = vmatpush1.bf16.msra.mxu0 %v2634
    %2917 = vmatprep.subr.bf16.mxu0 0
    %2918 = vmatpush1.bf16.msra.mxu0 %v2635
    %2919 = vmatprep.subr.bf16.mxu0 0
    %2920 = vmatpush1.bf16.msra.mxu0 %v2636
    %2921 = vmatprep.subr.bf16.mxu0 0
    %2922 = vmatpush1.bf16.msra.mxu0 %v2637
    %2923 = vmatprep.subr.bf16.mxu0 0
    %2924 = vmatpush1.bf16.msra.mxu0 %v2638
    %2925 = vmatprep.subr.bf16.mxu0 0
    %2926 = vmatpush1.bf16.msra.mxu0 %v2639
    %2927 = vmatprep.subr.bf16.mxu0 0
    %2928 = vmatpush1.bf16.msra.mxu0 %v2640
    %2929 = vmatprep.subr.bf16.mxu0 0
    %2930 = vmatpush1.bf16.msra.mxu0 0
    %2931 = vmatprep.subr.bf16.mxu0 0
    %2932 = vmatpush1.bf16.msra.mxu0 0
    %2933 = vmatprep.subr.bf16.mxu0 0
    %2934 = vmatpush1.bf16.msra.mxu0 0
    %2935 = vmatprep.subr.bf16.mxu0 0
    %2936 = vmatpush1.bf16.msra.mxu0 0
    %2937 = vmatprep.subr.bf16.mxu0 0
    %2938 = vmatpush1.bf16.msra.mxu0 0
    %2939 = vmatprep.subr.bf16.mxu0 0
    %2940 = vmatpush1.bf16.msra.mxu0 0
    %2941 = vmatprep.subr.bf16.mxu0 0
    %2942 = vmatpush1.bf16.msra.mxu0 0
    %2943 = vmatprep.subr.bf16.mxu0 0
    %2944 = vmatpush1.bf16.msra.mxu0 0
    %2945 = vmatprep.mubr.bf16.mxu0 0
    %2946 = vmatmul.mubr.bf16.gmra.mrb[0].mxu0 %v2632
    %v2947 = vpop.f32.mrb[0].mxu0
    %v2948 = vadd.f32 %v2685, %v2947
    %v2949 = vpop.f32.mrb[0].mxu0
    %v2950 = vpop.f32.mrb[0].mxu0
    %v2951 = vpop.f32.mrb[0].mxu0
    %2952 = vdwg.mxu0
    %2953 = vmatprep.subr.bf16.mxu0 0
    %2954 = vmatpush1.bf16.msra.mxu0 %v2691
    %2955 = vmatprep.subr.bf16.mxu0 0
    %2956 = vmatpush1.bf16.msra.mxu0 %v2692
    %2957 = vmatprep.subr.bf16.mxu0 0
    %2958 = vmatpush1.bf16.msra.mxu0 %v2693
    %2959 = vmatprep.subr.bf16.mxu0 0
    %2960 = vmatpush1.bf16.msra.mxu0 %v2694
    %2961 = vmatprep.subr.bf16.mxu0 0
    %2962 = vmatpush1.bf16.msra.mxu0 %v2695
    %2963 = vmatprep.subr.bf16.mxu0 0
    %2964 = vmatpush1.bf16.msra.mxu0 %v2696
    %2965 = vmatprep.subr.bf16.mxu0 0
    %2966 = vmatpush1.bf16.msra.mxu0 %v2697
    %2967 = vmatprep.subr.bf16.mxu0 0
    %2968 = vmatpush1.bf16.msra.mxu0 %v2698
    %2969 = vmatprep.subr.bf16.mxu0 0
    %2970 = vmatpush1.bf16.msra.mxu0 0
    %2971 = vmatprep.subr.bf16.mxu0 0
    %2972 = vmatpush1.bf16.msra.mxu0 0
    %2973 = vmatprep.subr.bf16.mxu0 0
    %2974 = vmatpush1.bf16.msra.mxu0 0
    %2975 = vmatprep.subr.bf16.mxu0 0
    %2976 = vmatpush1.bf16.msra.mxu0 0
    %2977 = vmatprep.subr.bf16.mxu0 0
    %2978 = vmatpush1.bf16.msra.mxu0 0
    %2979 = vmatprep.subr.bf16.mxu0 0
    %2980 = vmatpush1.bf16.msra.mxu0 0
    %2981 = vmatprep.subr.bf16.mxu0 0
    %2982 = vmatpush1.bf16.msra.mxu0 0
    %2983 = vmatprep.subr.bf16.mxu0 0
    %2984 = vmatpush1.bf16.msra.mxu0 0
    %2985 = vmatprep.mubr.bf16.mxu0 0
    %2986 = vmatmul.mubr.bf16.gmra.mrb[0].mxu0 %v2690
    %v2987 = vpop.f32.mrb[0].mxu0
    %v2988 = vadd.f32 %v2743, %v2987
    %v2989 = vpop.f32.mrb[0].mxu0
    %v2990 = vpop.f32.mrb[0].mxu0
    %v2991 = vpop.f32.mrb[0].mxu0
    %2992 = vdwg.mxu0
    %2993 = vmatprep.subr.bf16.mxu0 0
    %2994 = vmatpush1.bf16.msra.mxu0 %v2749
    %2995 = vmatprep.subr.bf16.mxu0 0
    %2996 = vmatpush1.bf16.msra.mxu0 %v2750
    %2997 = vmatprep.subr.bf16.mxu0 0
    %2998 = vmatpush1.bf16.msra.mxu0 %v2751
    %2999 = vmatprep.subr.bf16.mxu0 0
    %3000 = vmatpush1.bf16.msra.mxu0 %v2752
    %3001 = vmatprep.subr.bf16.mxu0 0
    %3002 = vmatpush1.bf16.msra.mxu0 %v2753
    %3003 = vmatprep.subr.bf16.mxu0 0
    %3004 = vmatpush1.bf16.msra.mxu0 %v2754
    %3005 = vmatprep.subr.bf16.mxu0 0
    %3006 = vmatpush1.bf16.msra.mxu0 %v2755
    %3007 = vmatprep.subr.bf16.mxu0 0
    %3008 = vmatpush1.bf16.msra.mxu0 %v2756
    %3009 = vmatprep.subr.bf16.mxu0 0
    %3010 = vmatpush1.bf16.msra.mxu0 0
    %3011 = vmatprep.subr.bf16.mxu0 0
    %3012 = vmatpush1.bf16.msra.mxu0 0
    %3013 = vmatprep.subr.bf16.mxu0 0
    %3014 = vmatpush1.bf16.msra.mxu0 0
    %3015 = vmatprep.subr.bf16.mxu0 0
    %3016 = vmatpush1.bf16.msra.mxu0 0
    %3017 = vmatprep.subr.bf16.mxu0 0
    %3018 = vmatpush1.bf16.msra.mxu0 0
    %3019 = vmatprep.subr.bf16.mxu0 0
    %3020 = vmatpush1.bf16.msra.mxu0 0
    %3021 = vmatprep.subr.bf16.mxu0 0
    %3022 = vmatpush1.bf16.msra.mxu0 0
    %3023 = vmatprep.subr.bf16.mxu0 0
    %3024 = vmatpush1.bf16.msra.mxu0 0
    %3025 = vmatprep.mubr.bf16.mxu0 0
    %3026 = vmatmul.mubr.bf16.gmra.mrb[0].mxu0 %v2748
    %v3027 = vpop.f32.mrb[0].mxu0
    %v3028 = vadd.f32 %v2801, %v3027
    %v3029 = vpop.f32.mrb[0].mxu0
    %v3030 = vpop.f32.mrb[0].mxu0
    %v3031 = vpop.f32.mrb[0].mxu0
    %3032 = vdwg.mxu0
    %3033 = vmatprep.subr.bf16.mxu0 0
    %3034 = vmatpush1.bf16.msra.mxu0 %v2807
    %3035 = vmatprep.subr.bf16.mxu0 0
    %3036 = vmatpush1.bf16.msra.mxu0 %v2808
    %3037 = vmatprep.subr.bf16.mxu0 0
    %3038 = vmatpush1.bf16.msra.mxu0 %v2809
    %3039 = vmatprep.subr.bf16.mxu0 0
    %3040 = vmatpush1.bf16.msra.mxu0 %v2810
    %3041 = vmatprep.subr.bf16.mxu0 0
    %3042 = vmatpush1.bf16.msra.mxu0 %v2811
    %3043 = vmatprep.subr.bf16.mxu0 0
    %3044 = vmatpush1.bf16.msra.mxu0 %v2812
    %3045 = vmatprep.subr.bf16.mxu0 0
    %3046 = vmatpush1.bf16.msra.mxu0 %v2813
    %3047 = vmatprep.subr.bf16.mxu0 0
    %3048 = vmatpush1.bf16.msra.mxu0 %v2814
    %3049 = vmatprep.subr.bf16.mxu0 0
    %3050 = vmatpush1.bf16.msra.mxu0 0
    %3051 = vmatprep.subr.bf16.mxu0 0
    %3052 = vmatpush1.bf16.msra.mxu0 0
    %3053 = vmatprep.subr.bf16.mxu0 0
    %3054 = vmatpush1.bf16.msra.mxu0 0
    %3055 = vmatprep.subr.bf16.mxu0 0
    %3056 = vmatpush1.bf16.msra.mxu0 0
    %3057 = vmatprep.subr.bf16.mxu0 0
    %3058 = vmatpush1.bf16.msra.mxu0 0
    %3059 = vmatprep.subr.bf16.mxu0 0
    %3060 = vmatpush1.bf16.msra.mxu0 0
    %3061 = vmatprep.subr.bf16.mxu0 0
    %3062 = vmatpush1.bf16.msra.mxu0 0
    %3063 = vmatprep.subr.bf16.mxu0 0
    %3064 = vmatpush1.bf16.msra.mxu0 0
    %3065 = vmatprep.mubr.bf16.mxu0 0
    %3066 = vmatmul.mubr.bf16.gmra.mrb[0].mxu0 %v2806
    %v3067 = vpop.f32.mrb[0].mxu0
    %v3068 = vadd.f32 %v2859, %v3067
    %v3069 = vpop.f32.mrb[0].mxu0
    %v3070 = vpop.f32.mrb[0].mxu0
    %v3071 = vpop.f32.mrb[0].mxu0
    %3072 = vdwg.mxu0
    %v3073 = vadd.f32 %v2948, %v2988
    %v3074 = vadd.f32 %v3028, %v3068
    %v3075 = vadd.f32 %v3073, %v3074
    %v3076 = vadd.f32 %v3075, %v2908
    %v3077 = vlaneseq
    %v3078 = vshrl.u32 %v3077, 7
    %v3079 = vsub.s32 7, %v3078
    %v3080 = vrot.slane %v37, %v3079
    %v3081 = vadd.f32 %v3076, %v3080
    %vm3082 = vcmp.gt.f32.partialorder %v3081, 0.0
    %v3083 = vmul.f32 %v3081, 0.2
    %v3084 = vsel %vm3082, %v3081, %v3083
    %v3085 = vlaneseq
    %v3086 = vshrl.u32 %v3085, 7
    %vm3087 = vcmp.lt.s32.totalorder %v3086, 2
    %v3088 = vsel %vm3087, 1, 0
    %v3089 = vcvt.s32.f32 %v3088
    %v3090 = vmul.f32 %v3084, %v3089
    %v3091 = vrot.slane %v3090, 4
    %v3092 = vadd.f32 %v3090, %v3091
    %v3093 = vrot.slane %v3092, 2
    %v3094 = vadd.f32 %v3092, %v3093
    %v3095 = vrot.slane %v3094, 1
    %v3096 = vadd.f32 %v3094, %v3095
    %v3097 = vmul.f32 %v3096, 0.5
    %v3098 = vsub.f32 %v3084, %v3097
    %v3099 = vmul.f32 %v3098, %v3098
    %v3100 = vmul.f32 %v3099, %v3089
    %v3101 = vrot.slane %v3100, 4
    %v3102 = vadd.f32 %v3100, %v3101
    %v3103 = vrot.slane %v3102, 2
    %v3104 = vadd.f32 %v3102, %v3103
    %v3105 = vrot.slane %v3104, 1
    %v3106 = vadd.f32 %v3104, %v3105
    %v3107 = vmul.f32 %v3106, 0.5
    %v3108 = vadd.f32 %v3107, 0.8
    %v3109 = vrsqrt.pop %v3108
    %v3110 = vmul.f32 %v3098, %v3109
    %v3111 = vlaneseq
    %v3112 = vshrl.u32 %v3111, 7
    %v3113 = vsub.s32 0, %v3112
    %v3114 = vrot.slane %v38, %v3113
    %v3115 = vmul.f32 %v3110, %v3114
    %v3116 = vlaneseq
    %v3117 = vshrl.u32 %v3116, 7
    %v3118 = vsub.s32 1, %v3117
    %v3119 = vrot.slane %v38, %v3118
    %v3120 = vadd.f32 %v3115, %v3119
    %v3121 = vpack.c.bf16 %v3120, %v3120
    %v3122 = vld [vmem:[%s9] sm:$0xf]
    %v3123 = vld [vmem:[%s9 + $0x4] sm:$0xf]
    %v3124 = vld [vmem:[%s9 + $0x8] sm:$0xf]
    %v3125 = vld [vmem:[%s9 + $0xc] sm:$0xf]
    %v3126 = vld [vmem:[%s9 + $0x10] sm:$0xf]
    %v3127 = vld [vmem:[%s9 + $0x14] sm:$0xf]
    %v3128 = vld [vmem:[%s9 + $0x18] sm:$0xf]
    %v3129 = vld [vmem:[%s9 + $0x1c] sm:$0xf]
    %v3130 = vld [vmem:[%s9 + $0x20] sm:$0xf]
    %v3131 = vld [vmem:[%s9 + $0x24] sm:$0xf]
    %v3132 = vld [vmem:[%s9 + $0x28] sm:$0xf]
    %v3133 = vld [vmem:[%s9 + $0x2c] sm:$0xf]
    %v3134 = vld [vmem:[%s9 + $0x30] sm:$0xf]
    %v3135 = vld [vmem:[%s9 + $0x34] sm:$0xf]
    %v3136 = vld [vmem:[%s9 + $0x38] sm:$0xf]
    %v3137 = vld [vmem:[%s9 + $0x3c] sm:$0xf]
    %v3138 = vlaneseq
    %v3139 = vshrl.u32 %v3138, 7
    %v3140 = vsub.s32 2, %v3139
    %v3141 = vrot.slane %v38, %v3140
    %v3158 = vunpack.c.l.b16 %v3122
    %v3159 = vunpack.c.l.b16 %v3123
    %v3160 = vunpack.c.l.b16 %v3124
    %v3161 = vunpack.c.l.b16 %v3125
    %v3162 = vunpack.c.l.b16 %v3126
    %v3163 = vunpack.c.l.b16 %v3127
    %v3164 = vunpack.c.l.b16 %v3128
    %v3165 = vunpack.c.l.b16 %v3129
    %v3166 = vunpack.c.l.b16 %v3130
    %v3167 = vunpack.c.l.b16 %v3131
    %v3168 = vunpack.c.l.b16 %v3132
    %v3169 = vunpack.c.l.b16 %v3133
    %v3170 = vunpack.c.l.b16 %v3134
    %v3171 = vunpack.c.l.b16 %v3135
    %v3172 = vunpack.c.l.b16 %v3136
    %v3173 = vunpack.c.l.b16 %v3137
    %v3174 = vpack.c.b16 %v3159, %v3158
    %v3175 = vpack.c.b16 %v3161, %v3160
    %v3176 = vpack.c.b16 %v3163, %v3162
    %v3177 = vpack.c.b16 %v3165, %v3164
    %v3178 = vpack.c.b16 %v3167, %v3166
    %v3179 = vpack.c.b16 %v3169, %v3168
    %v3180 = vpack.c.b16 %v3171, %v3170
    %v3181 = vpack.c.b16 %v3173, %v3172
    %3190 = vmatprep.subr.bf16.mxu0 0
    %3191 = vmatpush1.bf16.msra.mxu0 %v3174
    %3192 = vmatprep.subr.bf16.mxu0 0
    %3193 = vmatpush1.bf16.msra.mxu0 %v3175
    %3194 = vmatprep.subr.bf16.mxu0 0
    %3195 = vmatpush1.bf16.msra.mxu0 %v3176
    %3196 = vmatprep.subr.bf16.mxu0 0
    %3197 = vmatpush1.bf16.msra.mxu0 %v3177
    %3198 = vmatprep.subr.bf16.mxu0 0
    %3199 = vmatpush1.bf16.msra.mxu0 %v3178
    %3200 = vmatprep.subr.bf16.mxu0 0
    %3201 = vmatpush1.bf16.msra.mxu0 %v3179
    %3202 = vmatprep.subr.bf16.mxu0 0
    %3203 = vmatpush1.bf16.msra.mxu0 %v3180
    %3204 = vmatprep.subr.bf16.mxu0 0
    %3205 = vmatpush1.bf16.msra.mxu0 %v3181
    %3206 = vmatprep.subr.bf16.mxu0 0
    %3207 = vmatpush1.bf16.msra.mxu0 0
    %3208 = vmatprep.subr.bf16.mxu0 0
    %3209 = vmatpush1.bf16.msra.mxu0 0
    %3210 = vmatprep.subr.bf16.mxu0 0
    %3211 = vmatpush1.bf16.msra.mxu0 0
    %3212 = vmatprep.subr.bf16.mxu0 0
    %3213 = vmatpush1.bf16.msra.mxu0 0
    %3214 = vmatprep.subr.bf16.mxu0 0
    %3215 = vmatpush1.bf16.msra.mxu0 0
    %3216 = vmatprep.subr.bf16.mxu0 0
    %3217 = vmatpush1.bf16.msra.mxu0 0
    %3218 = vmatprep.subr.bf16.mxu0 0
    %3219 = vmatpush1.bf16.msra.mxu0 0
    %3220 = vmatprep.subr.bf16.mxu0 0
    %3221 = vmatpush1.bf16.msra.mxu0 0
    %3222 = vmatprep.mubr.bf16.mxu0 0
    %3223 = vmatmul.mubr.bf16.gmra.mrb[0].mxu0 %v3121
    %v3224 = vpop.f32.mrb[0].mxu0
    %v3225 = vadd.f32 %v3141, %v3224
    %v3226 = vpop.f32.mrb[0].mxu0
    %v3227 = vpop.f32.mrb[0].mxu0
    %v3228 = vpop.f32.mrb[0].mxu0
    %3229 = vdwg.mxu0
    %3230 = vst [vmem:[#allocation3] sm:$0x3] %v3225
    // Predicated region
    $region42: #{featurizer_forward.1} parent=1 // pred_check
      _
    $region43: #{featurizer_forward.1} parent=1 // pred_check_branch
      %3232 = sbr.rel (0) target = $region45
    $region44: #{featurizer_forward.1} parent=1 // pred_region
      %s3234 = ssub.s32 32, 32
      %3235 = vsyncadd [#allocation4], %s3234
      %s3237 = sshll.u32 [#allocation3], 4
      %s3238 = int_to_ptr.vmem [resolvable:$true] %s3237
      %3240 = dma.vmem_to_hbm [thread:$0]  %s3238, 32, %s10, [#allocation4]
    $region45: #{featurizer_forward.1} parent=1 // pred_fallthru
      _
    // Predicated region
    $region46: #{featurizer_forward.1} parent=1 // pred_check
      _
    $region47: #{featurizer_forward.1} parent=1 // pred_check_branch
      %3242 = sbr.rel (0) target = $region49
    $region48: #{featurizer_forward.1} parent=1 // pred_region
      %3243 = dma.done [#allocation4], 32
    $region49: #{featurizer_forward.1} parent=1 // pred_fallthru
      _
    %3244 = vsyncpa [#allocation4], 1

</llo_original>
